<compile_context>
chip_gen: v7x
topology: tpu7x:2x2x1
jax: 0.10.0
libtpu: 0.0.40
codegen_flags: <defaults>
</compile_context>

<pallas_src>
import functools

import jax
import jax.numpy as jnp
from jax import lax
from jax.experimental import pallas as pl
from jax.experimental.pallas import tpu as pltpu

H_IMG = 7
W_IMG = 7
C_IN = 512
C1 = 256
C2 = 64
FLAT = C2 * H_IMG * W_IMG            # 64 * 7 * 7 = 3136 (self.flattened_size)
BN_EPS = 1e-5

ROW_TILE = 512                        # pixel-row tile (multiple of 256 for MXU M)
IMG_TILE = 256                        # image-row tile for the fc/projection kernel


def _round_up(x, m):
    return ((x + m - 1) // m) * m


# --------------------------------------------------------------------------
# Phase 1: conv1 (1x1 conv == matmul) + partial bn1 statistics per row tile.
# --------------------------------------------------------------------------
def _conv1_stats_kernel(x_ref, w1_ref, b1_ref,
                        conv1_ref, sum_ref, sq_ref, *, row_tile, n_valid):
    x = x_ref[...]                                               # (row_tile, 512)
    h1 = jnp.dot(x, w1_ref[...], preferred_element_type=jnp.float32) + b1_ref[...]
    conv1_ref[...] = h1                                          # pre-BN conv1 rows

    # Mask padded rows out of the batch-norm statistics.
    row0 = pl.program_id(0) * row_tile
    rid = row0 + lax.broadcasted_iota(jnp.int32, (row_tile, 1), 0)
    h1m = jnp.where(rid < n_valid, h1, 0.0)
    s = jnp.sum(h1m, axis=0, keepdims=True)                      # (1, C1)
    sq = jnp.sum(h1m * h1m, axis=0, keepdims=True)               # (1, C1)
    sum_ref[...] = s[None]
    sq_ref[...] = sq[None]


# --------------------------------------------------------------------------
# Phase 2: bn1 (precomputed scale/shift) + relu + conv2 + partial bn2 stats.
# --------------------------------------------------------------------------
def _bn1_conv2_stats_kernel(h1_ref, sc1_ref, sh1_ref, w2_ref, b2_ref,
                            conv2_ref, sum_ref, sq_ref, *, row_tile, n_valid):
    a1 = jnp.maximum(h1_ref[...] * sc1_ref[...] + sh1_ref[...], 0.0)
    h2 = jnp.dot(a1, w2_ref[...], preferred_element_type=jnp.float32) + b2_ref[...]
    conv2_ref[...] = h2                                          # pre-BN conv2 rows

    row0 = pl.program_id(0) * row_tile
    rid = row0 + lax.broadcasted_iota(jnp.int32, (row_tile, 1), 0)
    h2m = jnp.where(rid < n_valid, h2, 0.0)
    sum_ref[...] = jnp.sum(h2m, axis=0, keepdims=True)[None]
    sq_ref[...] = jnp.sum(h2m * h2m, axis=0, keepdims=True)[None]


# --------------------------------------------------------------------------
# Phase 3: bn2 + relu + fc + LSTM input projection, batched over all frames.
# (The time-independent matmuls are hoisted out of the sequential LSTM loop.)
# --------------------------------------------------------------------------
def _bn2_fc_proj_kernel(f_ref, sc2_ref, sh2_ref, wfc_ref, bfc_ref,
                        wih_ref, bl_ref, xg_ref):
    a2 = jnp.maximum(f_ref[...] * sc2_ref[...] + sh2_ref[...], 0.0)   # (tile, 3136)
    xf = jnp.dot(a2, wfc_ref[...], preferred_element_type=jnp.float32) + bfc_ref[...]
    xg_ref[...] = (jnp.dot(xf, wih_ref[...], preferred_element_type=jnp.float32)
                   + bl_ref[...])                                      # (tile, 4H)


# --------------------------------------------------------------------------
# Phase 4: recurrent LSTM step, grid over time; h/c persist in VMEM scratch.
# PyTorch gate order: i, f, g, o.
# --------------------------------------------------------------------------
def _lstm_step_kernel(xg_ref, whh_ref, out_ref, h_scr, c_scr, *, hidden):
    @pl.when(pl.program_id(0) == 0)
    def _():
        h_scr[...] = jnp.zeros_like(h_scr)
        c_scr[...] = jnp.zeros_like(c_scr)

    gates = xg_ref[0] + jnp.dot(h_scr[...], whh_ref[...],
                                preferred_element_type=jnp.float32)    # (B, 4H)
    i = jax.nn.sigmoid(gates[:, 0 * hidden:1 * hidden])
    f = jax.nn.sigmoid(gates[:, 1 * hidden:2 * hidden])
    g = jnp.tanh(gates[:, 2 * hidden:3 * hidden])
    o = jax.nn.sigmoid(gates[:, 3 * hidden:4 * hidden])
    c_new = f * c_scr[...] + i * g
    h_new = o * jnp.tanh(c_new)
    c_scr[...] = c_new
    h_scr[...] = h_new
    out_ref[0] = h_new


# --------------------------------------------------------------------------
# Parameters (synthetic, in matmul layouts of the PyTorch module weights).
# --------------------------------------------------------------------------
def init_params(key, dframe, rnn_hidden):
    """wfc rows follow PyTorch's NCHW flatten order (j = c*49 + h*7 + w)."""
    ks = jax.random.split(key, 8)
    s = 0.05
    return dict(
        w1=jax.random.normal(ks[0], (C_IN, C1), jnp.float32) * s,   # conv1.weight[..,0,0].T
        b1=jax.random.normal(ks[1], (1, C1), jnp.float32) * s,
        g1=jnp.ones((1, C1), jnp.float32),                          # bn1.weight
        be1=jnp.zeros((1, C1), jnp.float32),                        # bn1.bias
        w2=jax.random.normal(ks[2], (C1, C2), jnp.float32) * s,     # conv2.weight[..,0,0].T
        b2=jax.random.normal(ks[3], (1, C2), jnp.float32) * s,
        g2=jnp.ones((1, C2), jnp.float32),                          # bn2.weight
        be2=jnp.zeros((1, C2), jnp.float32),                        # bn2.bias
        wfc=jax.random.normal(ks[4], (FLAT, dframe), jnp.float32) * s,  # fc.weight.T
        bfc=jax.random.normal(ks[5], (1, dframe), jnp.float32) * s,
        wih=jax.random.normal(ks[6], (dframe, 4 * rnn_hidden), jnp.float32) * s,
        whh=jax.random.normal(ks[7], (rnn_hidden, 4 * rnn_hidden), jnp.float32) * s,
        bl=jnp.zeros((1, 4 * rnn_hidden), jnp.float32),             # bias_ih + bias_hh
    )


def prepare_params(params):
    """One-time prep: fold the NCHW flatten permutation into the fc weight.

    Kernel features are HWC-flattened (q = (h*7+w)*64 + c); PyTorch's
    view(-1, 3136) is channel-major (j = c*49 + h*7 + w).  Permuting wfc rows
    once makes the fc consume HWC features directly (deletes a runtime
    NHWC->NCHW transpose of relu2 on every forward call).
    """
    q = jnp.arange(FLAT)
    src = (q % C2) * (H_IMG * W_IMG) + (q // C2)
    p = dict(params)
    p["wfc"] = params["wfc"][src, :]
    return p


# --------------------------------------------------------------------------
# Forward pass.
# --------------------------------------------------------------------------
@functools.partial(jax.jit, static_argnames=("rnn_hidden",))
def forward(x, params, rnn_hidden=128):
    B, S, C, H, W = x.shape
    N = B * S
    n_pix = N * H * W
    dframe = params["wfc"].shape[1]
    H4 = 4 * rnn_hidden

    # NCHW -> pixel rows (N*H*W, C); row = n*49 + h*7 + w, cols = channels.
    x_rows = x.reshape(N, C, H * W).transpose(0, 2, 1).reshape(n_pix, C)

    row_tile = min(ROW_TILE, _round_up(n_pix, 8))
    P = _round_up(n_pix, row_tile)
    if P != n_pix:
        x_rows = jnp.pad(x_rows, ((0, P - n_pix), (0, 0)))
    grid_rows = P // row_tile

    par = pltpu.CompilerParams(dimension_semantics=("parallel",))
    seq = pltpu.CompilerParams(dimension_semantics=("arbitrary",))

    # ---------------- phase 1: conv1 + bn1 partial stats ----------------
    conv1_rows, sum1_p, sq1_p = pl.pallas_call(
        functools.partial(_conv1_stats_kernel, row_tile=row_tile, n_valid=n_pix),
        grid=(grid_rows,),
        in_specs=[
            pl.BlockSpec((row_tile, C_IN), lambda i: (i, 0)),
            pl.BlockSpec((C_IN, C1), lambda i: (0, 0)),
            pl.BlockSpec((1, C1), lambda i: (0, 0)),
        ],
        out_specs=(
            pl.BlockSpec((row_tile, C1), lambda i: (i, 0)),
            pl.BlockSpec((1, 1, C1), lambda i: (i, 0, 0)),
            pl.BlockSpec((1, 1, C1), lambda i: (i, 0, 0)),
        ),
        out_shape=(
            jax.ShapeDtypeStruct((P, C1), jnp.float32),
            jax.ShapeDtypeStruct((grid_rows, 1, C1), jnp.float32),
            jax.ShapeDtypeStruct((grid_rows, 1, C1), jnp.float32),
        ),
        compiler_params=par,
    )(x_rows, params["w1"], params["b1"])

    # Global bn1 statistics (biased variance, training-mode).
    # TODO(synk): E[x^2]-E[x]^2 in f32; switch to a shifted accumulation if
    # activation magnitudes ever make cancellation an issue.
    sum1 = jnp.sum(sum1_p, axis=(0, 1))
    sq1 = jnp.sum(sq1_p, axis=(0, 1))
    mean1 = sum1 / n_pix
    var1 = jnp.maximum(sq1 / n_pix - mean1 * mean1, 0.0)
    scale1 = params["g1"] * lax.rsqrt(var1 + BN_EPS)        # (1, C1)
    shift1 = params["be1"] - mean1 * scale1                 # (1, C1)

    # ---------------- phase 2: bn1+relu+conv2 + bn2 partial stats --------
    conv2_rows, sum2_p, sq2_p = pl.pallas_call(
        functools.partial(_bn1_conv2_stats_kernel, row_tile=row_tile, n_valid=n_pix),
        grid=(grid_rows,),
        in_specs=[
            pl.BlockSpec((row_tile, C1), lambda i: (i, 0)),
            pl.BlockSpec((1, C1), lambda i: (0, 0)),
            pl.BlockSpec((1, C1), lambda i: (0, 0)),
            pl.BlockSpec((C1, C2), lambda i: (0, 0)),
            pl.BlockSpec((1, C2), lambda i: (0, 0)),
        ],
        out_specs=(
            pl.BlockSpec((row_tile, C2), lambda i: (i, 0)),
            pl.BlockSpec((1, 1, C2), lambda i: (i, 0, 0)),
            pl.BlockSpec((1, 1, C2), lambda i: (i, 0, 0)),
        ),
        out_shape=(
            jax.ShapeDtypeStruct((P, C2), jnp.float32),
            jax.ShapeDtypeStruct((grid_rows, 1, C2), jnp.float32),
            jax.ShapeDtypeStruct((grid_rows, 1, C2), jnp.float32),
        ),
        compiler_params=par,
    )(conv1_rows, scale1, shift1, params["w2"], params["b2"])

    sum2 = jnp.sum(sum2_p, axis=(0, 1))
    sq2 = jnp.sum(sq2_p, axis=(0, 1))
    mean2 = sum2 / n_pix
    var2 = jnp.maximum(sq2 / n_pix - mean2 * mean2, 0.0)
    scale2 = params["g2"] * lax.rsqrt(var2 + BN_EPS)        # (1, C2)
    shift2 = params["be2"] - mean2 * scale2                 # (1, C2)

    # Returned conv activations, converted back to PyTorch NCHW.
    # TODO(synk): NCHW output requires an XLA transpose with 7-wide minor dims;
    # kept for API fidelity with the PyTorch module.
    conv1_out = conv1_rows[:n_pix].reshape(N, H * W, C1).transpose(0, 2, 1) \
                                  .reshape(N, C1, H, W)
    conv2_out = conv2_rows[:n_pix].reshape(N, H * W, C2).transpose(0, 2, 1) \
                                  .reshape(N, C2, H, W)

    # ---------------- phase 3: bn2+relu + fc + LSTM input projection -----
    # HWC-flattened features: free row-major reshape of the pixel-row layout;
    # the PyTorch channel-major flatten order is folded into wfc (prepare_params).
    feats = conv2_rows[:n_pix].reshape(N, FLAT)
    img_tile = min(IMG_TILE, _round_up(N, 8))
    Npad = _round_up(N, img_tile)
    if Npad != N:
        feats = jnp.pad(feats, ((0, Npad - N), (0, 0)))
    # Per-channel bn2 scale/shift broadcast to the HWC flat layout (q % 64 == c).
    scale2f = jnp.tile(scale2.reshape(-1), H * W).reshape(1, FLAT)
    shift2f = jnp.tile(shift2.reshape(-1), H * W).reshape(1, FLAT)

    xg_rows = pl.pallas_call(
        _bn2_fc_proj_kernel,
        grid=(Npad // img_tile,),
        in_specs=[
            pl.BlockSpec((img_tile, FLAT), lambda i: (i, 0)),
            pl.BlockSpec((1, FLAT), lambda i: (0, 0)),
            pl.BlockSpec((1, FLAT), lambda i: (0, 0)),
            pl.BlockSpec((FLAT, dframe), lambda i: (0, 0)),
            pl.BlockSpec((1, dframe), lambda i: (0, 0)),
            pl.BlockSpec((dframe, H4), lambda i: (0, 0)),
            pl.BlockSpec((1, H4), lambda i: (0, 0)),
        ],
        out_specs=pl.BlockSpec((img_tile, H4), lambda i: (i, 0)),
        out_shape=jax.ShapeDtypeStruct((Npad, H4), jnp.float32),
        compiler_params=par,
    )(feats, scale2f, shift2f, params["wfc"], params["bfc"],
      params["wih"], params["bl"])

    # Sequence-major precomputed gate inputs for the recurrent kernel.
    xg_seq = xg_rows[:N].reshape(B, S, H4).transpose(1, 0, 2)       # (S, B, 4H)

    # ---------------- phase 4: recurrent LSTM over time ------------------
    out_seq = pl.pallas_call(
        functools.partial(_lstm_step_kernel, hidden=rnn_hidden),
        grid=(S,),
        in_specs=[
            pl.BlockSpec((1, B, H4), lambda t: (t, 0, 0)),
            pl.BlockSpec((rnn_hidden, H4), lambda t: (0, 0)),
        ],
        out_specs=pl.BlockSpec((1, B, rnn_hidden), lambda t: (t, 0, 0)),
        out_shape=jax.ShapeDtypeStruct((S, B, rnn_hidden), jnp.float32),
        scratch_shapes=[pltpu.VMEM((B, rnn_hidden), jnp.float32),   # h state
                        pltpu.VMEM((B, rnn_hidden), jnp.float32)],  # c state
        compiler_params=seq,
    )(xg_seq, params["whh"])

    output = out_seq.transpose(1, 0, 2)   # (B, S, hidden), batch_first=True
    return output, conv1_out, conv2_out


if __name__ == "__main__":
    key = jax.random.PRNGKey(0)
    B, S = 2, 2
    dframe, rnn_hidden = 64, 128

    kx, kp = jax.random.split(key)
    x = jax.random.normal(kx, (B, S, C_IN, H_IMG, W_IMG), jnp.float32)
    params = prepare_params(init_params(kp, dframe, rnn_hidden))

    output, conv1_out, conv2_out = forward(x, params, rnn_hidden=rnn_hidden)
    jax.block_until_ready((output, conv1_out, conv2_out))

    assert output.shape == (B, S, rnn_hidden)
    assert conv1_out.shape == (B * S, C1, H_IMG, W_IMG)
    assert conv2_out.shape == (B * S, C2, H_IMG, W_IMG)
    assert bool(jnp.all(jnp.isfinite(output)))
    assert bool(jnp.all(jnp.isfinite(conv1_out)))
    assert bool(jnp.all(jnp.isfinite(conv2_out)))

    print("KERNEL_OK")
</pallas_src>

<mosaic_0001>
module attributes {stable_mosaic.version = 11 : i64} {
  func.func @_conv1_stats_kernel(%arg0: i32, %arg1: memref<200x512xf32, #tpu.memory_space<vmem>>, %arg2: memref<512x256xf32, #tpu.memory_space<vmem>>, %arg3: memref<1x256xf32, #tpu.memory_space<vmem>>, %arg4: memref<200x256xf32, #tpu.memory_space<vmem>>, %arg5: memref<1x1x256xf32, #tpu.memory_space<vmem>>, %arg6: memref<1x1x256xf32, #tpu.memory_space<vmem>>) attributes {dimension_semantics = [#tpu.dimension_semantics<parallel>], iteration_bounds = array<i64: 1>, scalar_prefetch = 0 : i64, scratch_operands = 0 : i64, tpu.core_type = #tpu.core_type<tc>, window_params = [{transform_indices = @transform_0, window_bounds = array<i64: 200, 512>}, {pipeline_mode = #tpu.pipeline_mode<synchronous>, transform_indices = @transform_1, window_bounds = array<i64: 512, 256>}, {pipeline_mode = #tpu.pipeline_mode<synchronous>, transform_indices = @transform_2, window_bounds = array<i64: 1, 256>}, {transform_indices = @transform_3, window_bounds = array<i64: 200, 256>}, {transform_indices = @transform_4, window_bounds = array<i64: 1, 1, 256>}, {transform_indices = @transform_5, window_bounds = array<i64: 1, 1, 256>}]} {
    %c0 = arith.constant 0 : index
    %c0_0 = arith.constant 0 : index
    %0 = vector.load %arg1[%c0, %c0_0] : memref<200x512xf32, #tpu.memory_space<vmem>>, vector<200x512xf32>
    %c0_1 = arith.constant 0 : index
    %c0_2 = arith.constant 0 : index
    %1 = vector.load %arg2[%c0_1, %c0_2] : memref<512x256xf32, #tpu.memory_space<vmem>>, vector<512x256xf32>
    %cst = arith.constant dense<0.000000e+00> : vector<200x256xf32>
    %2 = tpu.matmul %0, %1, %cst {dimension_numbers = #tpu.dot_dimension_numbers<[1], [0], [0], [1], [0, 0, 1, 1], [], []>} : vector<200x512xf32>, vector<512x256xf32>, vector<200x256xf32> -> vector<200x256xf32>
    %c0_3 = arith.constant 0 : index
    %c0_4 = arith.constant 0 : index
    %3 = vector.load %arg3[%c0_3, %c0_4] : memref<1x256xf32, #tpu.memory_space<vmem>>, vector<1x256xf32>
    %4 = vector.broadcast %3 : vector<1x256xf32> to vector<200x256xf32>
    %5 = arith.addf %2, %4 : vector<200x256xf32>
    %c0_5 = arith.constant 0 : index
    %c0_6 = arith.constant 0 : index
    %6 = vector.load %arg4[%c0_5, %c0_6] : memref<200x256xf32, #tpu.memory_space<vmem>>, vector<200x256xf32>
    tpu.vector_store %arg4[%c0_5, %c0_6], %5 {strides = array<i32>} : memref<200x256xf32, #tpu.memory_space<vmem>>, vector<200x256xf32>,
    %c200_i32 = arith.constant 200 : i32
    %7 = arith.muli %arg0, %c200_i32 : i32
    %8 = tpu.iota {dimensions = array<i32: 0>} : vector<200x1xi32>
    %9 = vector.broadcast %7 : i32 to vector<200x1xi32>
    %10 = arith.addi %9, %8 : vector<200x1xi32>
    %c196_i32 = arith.constant 196 : i32
    %11 = vector.broadcast %c196_i32 : i32 to vector<200x1xi32>
    %12 = arith.cmpi slt, %10, %11 : vector<200x1xi32>
    %cst_7 = arith.constant 0.000000e+00 : f32
    %13 = vector.shape_cast %12 : vector<200x1xi1> to vector<200x1xi1>
    %14 = vector.broadcast %13 : vector<200x1xi1> to vector<200x256xi1>
    %15 = vector.broadcast %cst_7 : f32 to vector<200x256xf32>
    %16 = arith.select %14, %5, %15 : vector<200x256xi1>, vector<200x256xf32>
    %cst_8 = arith.constant dense<0.000000e+00> : vector<256xf32>
    %17 = vector.multi_reduction <add>, %16, %cst_8 [0] : vector<200x256xf32> to vector<256xf32>
    %18 = vector.shape_cast %17 : vector<256xf32> to vector<1x256xf32>
    %19 = arith.mulf %16, %16 : vector<200x256xf32>
    %cst_9 = arith.constant dense<0.000000e+00> : vector<256xf32>
    %20 = vector.multi_reduction <add>, %19, %cst_9 [0] : vector<200x256xf32> to vector<256xf32>
    %21 = vector.shape_cast %20 : vector<256xf32> to vector<1x256xf32>
    %22 = vector.shape_cast %18 : vector<1x256xf32> to vector<1x1x256xf32>
    %c0_10 = arith.constant 0 : index
    %c0_11 = arith.constant 0 : index
    %c0_12 = arith.constant 0 : index
    %23 = vector.load %arg5[%c0_10, %c0_11, %c0_12] : memref<1x1x256xf32, #tpu.memory_space<vmem>>, vector<1x1x256xf32>
    tpu.vector_store %arg5[%c0_10, %c0_11, %c0_12], %22 {strides = array<i32>} : memref<1x1x256xf32, #tpu.memory_space<vmem>>, vector<1x1x256xf32>,
    %24 = vector.shape_cast %21 : vector<1x256xf32> to vector<1x1x256xf32>
    %c0_13 = arith.constant 0 : index
    %c0_14 = arith.constant 0 : index
    %c0_15 = arith.constant 0 : index
    %25 = vector.load %arg6[%c0_13, %c0_14, %c0_15] : memref<1x1x256xf32, #tpu.memory_space<vmem>>, vector<1x1x256xf32>
    tpu.vector_store %arg6[%c0_13, %c0_14, %c0_15], %24 {strides = array<i32>} : memref<1x1x256xf32, #tpu.memory_space<vmem>>, vector<1x1x256xf32>,
    return
  }
  func.func @transform_0(%arg0: i32) -> (i32, i32) {
    %c0_i32 = arith.constant 0 : i32
    %c0_i32_0 = arith.constant 0 : i32
    return %arg0, %c0_i32 : i32, i32
  }
  func.func @transform_1(%arg0: i32) -> (i32, i32) {
    %c0_i32 = arith.constant 0 : i32
    %c0_i32_0 = arith.constant 0 : i32
    %c0_i32_1 = arith.constant 0 : i32
    return %c0_i32, %c0_i32_0 : i32, i32
  }
  func.func @transform_2(%arg0: i32) -> (i32, i32) {
    %c0_i32 = arith.constant 0 : i32
    %c0_i32_0 = arith.constant 0 : i32
    %c0_i32_1 = arith.constant 0 : i32
    return %c0_i32, %c0_i32_0 : i32, i32
  }
  func.func @transform_3(%arg0: i32) -> (i32, i32) {
    %c0_i32 = arith.constant 0 : i32
    %c0_i32_0 = arith.constant 0 : i32
    return %arg0, %c0_i32 : i32, i32
  }
  func.func @transform_4(%arg0: i32) -> (i32, i32, i32) {
    %c0_i32 = arith.constant 0 : i32
    %c0_i32_0 = arith.constant 0 : i32
    %c0_i32_1 = arith.constant 0 : i32
    return %arg0, %c0_i32, %c0_i32_0 : i32, i32, i32
  }
  func.func @transform_5(%arg0: i32) -> (i32, i32, i32) {
    %c0_i32 = arith.constant 0 : i32
    %c0_i32_0 = arith.constant 0 : i32
    %c0_i32_1 = arith.constant 0 : i32
    return %arg0, %c0_i32, %c0_i32_0 : i32, i32, i32
  }
}

module attributes {stable_mosaic.version = 11 : i64} {
  func.func @_bn1_conv2_stats_kernel(%arg0: i32, %arg1: memref<200x256xf32, #tpu.memory_space<vmem>>, %arg2: memref<1x256xf32, #tpu.memory_space<vmem>>, %arg3: memref<1x256xf32, #tpu.memory_space<vmem>>, %arg4: memref<256x64xf32, #tpu.memory_space<vmem>>, %arg5: memref<1x64xf32, #tpu.memory_space<vmem>>, %arg6: memref<200x64xf32, #tpu.memory_space<vmem>>, %arg7: memref<1x1x64xf32, #tpu.memory_space<vmem>>, %arg8: memref<1x1x64xf32, #tpu.memory_space<vmem>>) attributes {dimension_semantics = [#tpu.dimension_semantics<parallel>], iteration_bounds = array<i64: 1>, scalar_prefetch = 0 : i64, scratch_operands = 0 : i64, tpu.core_type = #tpu.core_type<tc>, window_params = [{transform_indices = @transform_0, window_bounds = array<i64: 200, 256>}, {pipeline_mode = #tpu.pipeline_mode<synchronous>, transform_indices = @transform_1, window_bounds = array<i64: 1, 256>}, {pipeline_mode = #tpu.pipeline_mode<synchronous>, transform_indices = @transform_2, window_bounds = array<i64: 1, 256>}, {pipeline_mode = #tpu.pipeline_mode<synchronous>, transform_indices = @transform_3, window_bounds = array<i64: 256, 64>}, {pipeline_mode = #tpu.pipeline_mode<synchronous>, transform_indices = @transform_4, window_bounds = array<i64: 1, 64>}, {transform_indices = @transform_5, window_bounds = array<i64: 200, 64>}, {transform_indices = @transform_6, window_bounds = array<i64: 1, 1, 64>}, {transform_indices = @transform_7, window_bounds = array<i64: 1, 1, 64>}]} {
    %c0 = arith.constant 0 : index
    %c0_0 = arith.constant 0 : index
    %0 = vector.load %arg1[%c0, %c0_0] : memref<200x256xf32, #tpu.memory_space<vmem>>, vector<200x256xf32>
    %c0_1 = arith.constant 0 : index
    %c0_2 = arith.constant 0 : index
    %1 = vector.load %arg2[%c0_1, %c0_2] : memref<1x256xf32, #tpu.memory_space<vmem>>, vector<1x256xf32>
    %2 = vector.broadcast %1 : vector<1x256xf32> to vector<200x256xf32>
    %3 = arith.mulf %0, %2 : vector<200x256xf32>
    %c0_3 = arith.constant 0 : index
    %c0_4 = arith.constant 0 : index
    %4 = vector.load %arg3[%c0_3, %c0_4] : memref<1x256xf32, #tpu.memory_space<vmem>>, vector<1x256xf32>
    %5 = vector.broadcast %4 : vector<1x256xf32> to vector<200x256xf32>
    %6 = arith.addf %3, %5 : vector<200x256xf32>
    %cst = arith.constant 0.000000e+00 : f32
    %7 = vector.broadcast %cst : f32 to vector<200x256xf32>
    %8 = arith.maximumf %6, %7 : vector<200x256xf32>
    %c0_5 = arith.constant 0 : index
    %c0_6 = arith.constant 0 : index
    %9 = vector.load %arg4[%c0_5, %c0_6] : memref<256x64xf32, #tpu.memory_space<vmem>>, vector<256x64xf32>
    %cst_7 = arith.constant dense<0.000000e+00> : vector<200x64xf32>
    %10 = tpu.matmul %8, %9, %cst_7 {dimension_numbers = #tpu.dot_dimension_numbers<[1], [0], [0], [1], [0, 0, 1, 1], [], []>} : vector<200x256xf32>, vector<256x64xf32>, vector<200x64xf32> -> vector<200x64xf32>
    %c0_8 = arith.constant 0 : index
    %c0_9 = arith.constant 0 : index
    %11 = vector.load %arg5[%c0_8, %c0_9] : memref<1x64xf32, #tpu.memory_space<vmem>>, vector<1x64xf32>
    %12 = vector.broadcast %11 : vector<1x64xf32> to vector<200x64xf32>
    %13 = arith.addf %10, %12 : vector<200x64xf32>
    %c0_10 = arith.constant 0 : index
    %c0_11 = arith.constant 0 : index
    %14 = vector.load %arg6[%c0_10, %c0_11] : memref<200x64xf32, #tpu.memory_space<vmem>>, vector<200x64xf32>
    tpu.vector_store %arg6[%c0_10, %c0_11], %13 {strides = array<i32>} : memref<200x64xf32, #tpu.memory_space<vmem>>, vector<200x64xf32>,
    %c200_i32 = arith.constant 200 : i32
    %15 = arith.muli %arg0, %c200_i32 : i32
    %16 = tpu.iota {dimensions = array<i32: 0>} : vector<200x1xi32>
    %17 = vector.broadcast %15 : i32 to vector<200x1xi32>
    %18 = arith.addi %17, %16 : vector<200x1xi32>
    %c196_i32 = arith.constant 196 : i32
    %19 = vector.broadcast %c196_i32 : i32 to vector<200x1xi32>
    %20 = arith.cmpi slt, %18, %19 : vector<200x1xi32>
    %cst_12 = arith.constant 0.000000e+00 : f32
    %21 = vector.shape_cast %20 : vector<200x1xi1> to vector<200x1xi1>
    %22 = vector.broadcast %21 : vector<200x1xi1> to vector<200x64xi1>
    %23 = vector.broadcast %cst_12 : f32 to vector<200x64xf32>
    %24 = arith.select %22, %13, %23 : vector<200x64xi1>, vector<200x64xf32>
    %cst_13 = arith.constant dense<0.000000e+00> : vector<64xf32>
    %25 = vector.multi_reduction <add>, %24, %cst_13 [0] : vector<200x64xf32> to vector<64xf32>
    %26 = vector.shape_cast %25 : vector<64xf32> to vector<1x64xf32>
    %27 = vector.shape_cast %26 : vector<1x64xf32> to vector<1x1x64xf32>
    %c0_14 = arith.constant 0 : index
    %c0_15 = arith.constant 0 : index
    %c0_16 = arith.constant 0 : index
    %28 = vector.load %arg7[%c0_14, %c0_15, %c0_16] : memref<1x1x64xf32, #tpu.memory_space<vmem>>, vector<1x1x64xf32>
    tpu.vector_store %arg7[%c0_14, %c0_15, %c0_16], %27 {strides = array<i32>} : memref<1x1x64xf32, #tpu.memory_space<vmem>>, vector<1x1x64xf32>,
    %29 = arith.mulf %24, %24 : vector<200x64xf32>
    %cst_17 = arith.constant dense<0.000000e+00> : vector<64xf32>
    %30 = vector.multi_reduction <add>, %29, %cst_17 [0] : vector<200x64xf32> to vector<64xf32>
    %31 = vector.shape_cast %30 : vector<64xf32> to vector<1x64xf32>
    %32 = vector.shape_cast %31 : vector<1x64xf32> to vector<1x1x64xf32>
    %c0_18 = arith.constant 0 : index
    %c0_19 = arith.constant 0 : index
    %c0_20 = arith.constant 0 : index
    %33 = vector.load %arg8[%c0_18, %c0_19, %c0_20] : memref<1x1x64xf32, #tpu.memory_space<vmem>>, vector<1x1x64xf32>
    tpu.vector_store %arg8[%c0_18, %c0_19, %c0_20], %32 {strides = array<i32>} : memref<1x1x64xf32, #tpu.memory_space<vmem>>, vector<1x1x64xf32>,
    return
  }
  func.func @transform_0(%arg0: i32) -> (i32, i32) {
    %c0_i32 = arith.constant 0 : i32
    %c0_i32_0 = arith.constant 0 : i32
    return %arg0, %c0_i32 : i32, i32
  }
  func.func @transform_1(%arg0: i32) -> (i32, i32) {
    %c0_i32 = arith.constant 0 : i32
    %c0_i32_0 = arith.constant 0 : i32
    %c0_i32_1 = arith.constant 0 : i32
    return %c0_i32, %c0_i32_0 : i32, i32
  }
  func.func @transform_2(%arg0: i32) -> (i32, i32) {
    %c0_i32 = arith.constant 0 : i32
    %c0_i32_0 = arith.constant 0 : i32
    %c0_i32_1 = arith.constant 0 : i32
    return %c0_i32, %c0_i32_0 : i32, i32
  }
  func.func @transform_3(%arg0: i32) -> (i32, i32) {
    %c0_i32 = arith.constant 0 : i32
    %c0_i32_0 = arith.constant 0 : i32
    %c0_i32_1 = arith.constant 0 : i32
    return %c0_i32, %c0_i32_0 : i32, i32
  }
  func.func @transform_4(%arg0: i32) -> (i32, i32) {
    %c0_i32 = arith.constant 0 : i32
    %c0_i32_0 = arith.constant 0 : i32
    %c0_i32_1 = arith.constant 0 : i32
    return %c0_i32, %c0_i32_0 : i32, i32
  }
  func.func @transform_5(%arg0: i32) -> (i32, i32) {
    %c0_i32 = arith.constant 0 : i32
    %c0_i32_0 = arith.constant 0 : i32
    return %arg0, %c0_i32 : i32, i32
  }
  func.func @transform_6(%arg0: i32) -> (i32, i32, i32) {
    %c0_i32 = arith.constant 0 : i32
    %c0_i32_0 = arith.constant 0 : i32
    %c0_i32_1 = arith.constant 0 : i32
    return %arg0, %c0_i32, %c0_i32_0 : i32, i32, i32
  }
  func.func @transform_7(%arg0: i32) -> (i32, i32, i32) {
    %c0_i32 = arith.constant 0 : i32
    %c0_i32_0 = arith.constant 0 : i32
    %c0_i32_1 = arith.constant 0 : i32
    return %arg0, %c0_i32, %c0_i32_0 : i32, i32, i32
  }
}

module attributes {stable_mosaic.version = 11 : i64} {
  func.func @_bn2_fc_proj_kernel(%arg0: i32, %arg1: memref<8x3136xf32, #tpu.memory_space<vmem>>, %arg2: memref<1x3136xf32, #tpu.memory_space<vmem>>, %arg3: memref<1x3136xf32, #tpu.memory_space<vmem>>, %arg4: memref<3136x64xf32, #tpu.memory_space<vmem>>, %arg5: memref<1x64xf32, #tpu.memory_space<vmem>>, %arg6: memref<64x512xf32, #tpu.memory_space<vmem>>, %arg7: memref<1x512xf32, #tpu.memory_space<vmem>>, %arg8: memref<8x512xf32, #tpu.memory_space<vmem>>) attributes {dimension_semantics = [#tpu.dimension_semantics<parallel>], iteration_bounds = array<i64: 1>, scalar_prefetch = 0 : i64, scratch_operands = 0 : i64, tpu.core_type = #tpu.core_type<tc>, window_params = [{transform_indices = @transform_0, window_bounds = array<i64: 8, 3136>}, {pipeline_mode = #tpu.pipeline_mode<synchronous>, transform_indices = @transform_1, window_bounds = array<i64: 1, 3136>}, {pipeline_mode = #tpu.pipeline_mode<synchronous>, transform_indices = @transform_2, window_bounds = array<i64: 1, 3136>}, {pipeline_mode = #tpu.pipeline_mode<synchronous>, transform_indices = @transform_3, window_bounds = array<i64: 3136, 64>}, {pipeline_mode = #tpu.pipeline_mode<synchronous>, transform_indices = @transform_4, window_bounds = array<i64: 1, 64>}, {pipeline_mode = #tpu.pipeline_mode<synchronous>, transform_indices = @transform_5, window_bounds = array<i64: 64, 512>}, {pipeline_mode = #tpu.pipeline_mode<synchronous>, transform_indices = @transform_6, window_bounds = array<i64: 1, 512>}, {transform_indices = @transform_7, window_bounds = array<i64: 8, 512>}]} {
    %c0 = arith.constant 0 : index
    %c0_0 = arith.constant 0 : index
    %0 = vector.load %arg1[%c0, %c0_0] : memref<8x3136xf32, #tpu.memory_space<vmem>>, vector<8x3136xf32>
    %c0_1 = arith.constant 0 : index
    %c0_2 = arith.constant 0 : index
    %1 = vector.load %arg2[%c0_1, %c0_2] : memref<1x3136xf32, #tpu.memory_space<vmem>>, vector<1x3136xf32>
    %2 = vector.broadcast %1 : vector<1x3136xf32> to vector<8x3136xf32>
    %3 = arith.mulf %0, %2 : vector<8x3136xf32>
    %c0_3 = arith.constant 0 : index
    %c0_4 = arith.constant 0 : index
    %4 = vector.load %arg3[%c0_3, %c0_4] : memref<1x3136xf32, #tpu.memory_space<vmem>>, vector<1x3136xf32>
    %5 = vector.broadcast %4 : vector<1x3136xf32> to vector<8x3136xf32>
    %6 = arith.addf %3, %5 : vector<8x3136xf32>
    %cst = arith.constant 0.000000e+00 : f32
    %7 = vector.broadcast %cst : f32 to vector<8x3136xf32>
    %8 = arith.maximumf %6, %7 : vector<8x3136xf32>
    %c0_5 = arith.constant 0 : index
    %c0_6 = arith.constant 0 : index
    %9 = vector.load %arg4[%c0_5, %c0_6] : memref<3136x64xf32, #tpu.memory_space<vmem>>, vector<3136x64xf32>
    %cst_7 = arith.constant dense<0.000000e+00> : vector<8x64xf32>
    %10 = tpu.matmul %8, %9, %cst_7 {dimension_numbers = #tpu.dot_dimension_numbers<[1], [0], [0], [1], [0, 0, 1, 1], [], []>} : vector<8x3136xf32>, vector<3136x64xf32>, vector<8x64xf32> -> vector<8x64xf32>
    %c0_8 = arith.constant 0 : index
    %c0_9 = arith.constant 0 : index
    %11 = vector.load %arg5[%c0_8, %c0_9] : memref<1x64xf32, #tpu.memory_space<vmem>>, vector<1x64xf32>
    %12 = vector.broadcast %11 : vector<1x64xf32> to vector<8x64xf32>
    %13 = arith.addf %10, %12 : vector<8x64xf32>
    %c0_10 = arith.constant 0 : index
    %c0_11 = arith.constant 0 : index
    %14 = vector.load %arg6[%c0_10, %c0_11] : memref<64x512xf32, #tpu.memory_space<vmem>>, vector<64x512xf32>
    %cst_12 = arith.constant dense<0.000000e+00> : vector<8x512xf32>
    %15 = tpu.matmul %13, %14, %cst_12 {dimension_numbers = #tpu.dot_dimension_numbers<[1], [0], [0], [1], [0, 0, 1, 1], [], []>} : vector<8x64xf32>, vector<64x512xf32>, vector<8x512xf32> -> vector<8x512xf32>
    %c0_13 = arith.constant 0 : index
    %c0_14 = arith.constant 0 : index
    %16 = vector.load %arg7[%c0_13, %c0_14] : memref<1x512xf32, #tpu.memory_space<vmem>>, vector<1x512xf32>
    %17 = vector.broadcast %16 : vector<1x512xf32> to vector<8x512xf32>
    %18 = arith.addf %15, %17 : vector<8x512xf32>
    %c0_15 = arith.constant 0 : index
    %c0_16 = arith.constant 0 : index
    %19 = vector.load %arg8[%c0_15, %c0_16] : memref<8x512xf32, #tpu.memory_space<vmem>>, vector<8x512xf32>
    tpu.vector_store %arg8[%c0_15, %c0_16], %18 {strides = array<i32>} : memref<8x512xf32, #tpu.memory_space<vmem>>, vector<8x512xf32>,
    return
  }
  func.func @transform_0(%arg0: i32) -> (i32, i32) {
    %c0_i32 = arith.constant 0 : i32
    %c0_i32_0 = arith.constant 0 : i32
    return %arg0, %c0_i32 : i32, i32
  }
  func.func @transform_1(%arg0: i32) -> (i32, i32) {
    %c0_i32 = arith.constant 0 : i32
    %c0_i32_0 = arith.constant 0 : i32
    %c0_i32_1 = arith.constant 0 : i32
    return %c0_i32, %c0_i32_0 : i32, i32
  }
  func.func @transform_2(%arg0: i32) -> (i32, i32) {
    %c0_i32 = arith.constant 0 : i32
    %c0_i32_0 = arith.constant 0 : i32
    %c0_i32_1 = arith.constant 0 : i32
    return %c0_i32, %c0_i32_0 : i32, i32
  }
  func.func @transform_3(%arg0: i32) -> (i32, i32) {
    %c0_i32 = arith.constant 0 : i32
    %c0_i32_0 = arith.constant 0 : i32
    %c0_i32_1 = arith.constant 0 : i32
    return %c0_i32, %c0_i32_0 : i32, i32
  }
  func.func @transform_4(%arg0: i32) -> (i32, i32) {
    %c0_i32 = arith.constant 0 : i32
    %c0_i32_0 = arith.constant 0 : i32
    %c0_i32_1 = arith.constant 0 : i32
    return %c0_i32, %c0_i32_0 : i32, i32
  }
  func.func @transform_5(%arg0: i32) -> (i32, i32) {
    %c0_i32 = arith.constant 0 : i32
    %c0_i32_0 = arith.constant 0 : i32
    %c0_i32_1 = arith.constant 0 : i32
    return %c0_i32, %c0_i32_0 : i32, i32
  }
  func.func @transform_6(%arg0: i32) -> (i32, i32) {
    %c0_i32 = arith.constant 0 : i32
    %c0_i32_0 = arith.constant 0 : i32
    %c0_i32_1 = arith.constant 0 : i32
    return %c0_i32, %c0_i32_0 : i32, i32
  }
  func.func @transform_7(%arg0: i32) -> (i32, i32) {
    %c0_i32 = arith.constant 0 : i32
    %c0_i32_0 = arith.constant 0 : i32
    return %arg0, %c0_i32 : i32, i32
  }
}

module attributes {stable_mosaic.version = 11 : i64} {
  func.func @_lstm_step_kernel(%arg0: i32, %arg1: memref<1x2x512xf32, #tpu.memory_space<vmem>>, %arg2: memref<128x512xf32, #tpu.memory_space<vmem>>, %arg3: memref<1x2x128xf32, #tpu.memory_space<vmem>>, %arg4: memref<2x128xf32, #tpu.memory_space<vmem>>, %arg5: memref<2x128xf32, #tpu.memory_space<vmem>>) attributes {dimension_semantics = [#tpu.dimension_semantics<arbitrary>], iteration_bounds = array<i64: 2>, scalar_prefetch = 0 : i64, scratch_operands = 2 : i64, tpu.core_type = #tpu.core_type<tc>, window_params = [{transform_indices = @transform_0, window_bounds = array<i64: 1, 2, 512>}, {pipeline_mode = #tpu.pipeline_mode<synchronous>, transform_indices = @transform_1, window_bounds = array<i64: 128, 512>}, {transform_indices = @transform_2, window_bounds = array<i64: 1, 2, 128>}]} {
    %c0_i32 = arith.constant 0 : i32
    %0 = arith.cmpi eq, %arg0, %c0_i32 : i32
    %1 = arith.extui %0 : i1 to i32
    %c0_i32_0 = arith.constant 0 : i32
    %2 = arith.cmpi ne, %1, %c0_i32_0 : i32
    scf.if %2 {
      %cst_19 = arith.constant 0.000000e+00 : f32
      %40 = vector.broadcast %cst_19 : f32 to vector<2x128xf32>
      %c0_20 = arith.constant 0 : index
      %c0_21 = arith.constant 0 : index
      %41 = vector.load %arg4[%c0_20, %c0_21] : memref<2x128xf32, #tpu.memory_space<vmem>>, vector<2x128xf32>
      tpu.vector_store %arg4[%c0_20, %c0_21], %40 {strides = array<i32>} : memref<2x128xf32, #tpu.memory_space<vmem>>, vector<2x128xf32>,
      %cst_22 = arith.constant 0.000000e+00 : f32
      %42 = vector.broadcast %cst_22 : f32 to vector<2x128xf32>
      %c0_23 = arith.constant 0 : index
      %c0_24 = arith.constant 0 : index
      %43 = vector.load %arg5[%c0_23, %c0_24] : memref<2x128xf32, #tpu.memory_space<vmem>>, vector<2x128xf32>
      tpu.vector_store %arg5[%c0_23, %c0_24], %42 {strides = array<i32>} : memref<2x128xf32, #tpu.memory_space<vmem>>, vector<2x128xf32>,
    } else {
    }
    %c0 = arith.constant 0 : index
    %c0_1 = arith.constant 0 : index
    %c0_2 = arith.constant 0 : index
    %3 = vector.load %arg1[%c0, %c0_1, %c0_2] : memref<1x2x512xf32, #tpu.memory_space<vmem>>, vector<1x2x512xf32>
    %4 = vector.shape_cast %3 : vector<1x2x512xf32> to vector<2x512xf32>
    %c0_3 = arith.constant 0 : index
    %c0_4 = arith.constant 0 : index
    %5 = vector.load %arg4[%c0_3, %c0_4] : memref<2x128xf32, #tpu.memory_space<vmem>>, vector<2x128xf32>
    %c0_5 = arith.constant 0 : index
    %c0_6 = arith.constant 0 : index
    %6 = vector.load %arg2[%c0_5, %c0_6] : memref<128x512xf32, #tpu.memory_space<vmem>>, vector<128x512xf32>
    %cst = arith.constant dense<0.000000e+00> : vector<2x512xf32>
    %7 = tpu.matmul %5, %6, %cst {dimension_numbers = #tpu.dot_dimension_numbers<[1], [0], [0], [1], [0, 0, 1, 1], [], []>} : vector<2x128xf32>, vector<128x512xf32>, vector<2x512xf32> -> vector<2x512xf32>
    %8 = arith.addf %4, %7 : vector<2x512xf32>
    %9 = vector.extract_strided_slice %8 {offsets = [0, 0], sizes = [2, 128], strides = [1, 1]} : vector<2x512xf32> to vector<2x128xf32>
    %10 = arith.negf %9 : vector<2x128xf32>
    %11 = math.exp %10 : vector<2x128xf32>
    %cst_7 = arith.constant 1.000000e+00 : f32
    %12 = vector.broadcast %cst_7 : f32 to vector<2x128xf32>
    %13 = arith.addf %12, %11 : vector<2x128xf32>
    %14 = arith.divf %12, %13 : vector<2x128xf32>
    %15 = vector.extract_strided_slice %8 {offsets = [0, 128], sizes = [2, 128], strides = [1, 1]} : vector<2x512xf32> to vector<2x128xf32>
    %16 = arith.negf %15 : vector<2x128xf32>
    %17 = math.exp %16 : vector<2x128xf32>
    %cst_8 = arith.constant 1.000000e+00 : f32
    %18 = vector.broadcast %cst_8 : f32 to vector<2x128xf32>
    %19 = arith.addf %18, %17 : vector<2x128xf32>
    %20 = arith.divf %18, %19 : vector<2x128xf32>
    %21 = vector.extract_strided_slice %8 {offsets = [0, 256], sizes = [2, 128], strides = [1, 1]} : vector<2x512xf32> to vector<2x128xf32>
    %22 = math.tanh %21 : vector<2x128xf32>
    %23 = vector.extract_strided_slice %8 {offsets = [0, 384], sizes = [2, 128], strides = [1, 1]} : vector<2x512xf32> to vector<2x128xf32>
    %24 = arith.negf %23 : vector<2x128xf32>
    %25 = math.exp %24 : vector<2x128xf32>
    %cst_9 = arith.constant 1.000000e+00 : f32
    %26 = vector.broadcast %cst_9 : f32 to vector<2x128xf32>
    %27 = arith.addf %26, %25 : vector<2x128xf32>
    %28 = arith.divf %26, %27 : vector<2x128xf32>
    %c0_10 = arith.constant 0 : index
    %c0_11 = arith.constant 0 : index
    %29 = vector.load %arg5[%c0_10, %c0_11] : memref<2x128xf32, #tpu.memory_space<vmem>>, vector<2x128xf32>
    %30 = arith.mulf %20, %29 : vector<2x128xf32>
    %31 = arith.mulf %14, %22 : vector<2x128xf32>
    %32 = arith.addf %30, %31 : vector<2x128xf32>
    %33 = math.tanh %32 : vector<2x128xf32>
    %34 = arith.mulf %28, %33 : vector<2x128xf32>
    %c0_12 = arith.constant 0 : index
    %c0_13 = arith.constant 0 : index
    %35 = vector.load %arg5[%c0_12, %c0_13] : memref<2x128xf32, #tpu.memory_space<vmem>>, vector<2x128xf32>
    tpu.vector_store %arg5[%c0_12, %c0_13], %32 {strides = array<i32>} : memref<2x128xf32, #tpu.memory_space<vmem>>, vector<2x128xf32>,
    %c0_14 = arith.constant 0 : index
    %c0_15 = arith.constant 0 : index
    %36 = vector.load %arg4[%c0_14, %c0_15] : memref<2x128xf32, #tpu.memory_space<vmem>>, vector<2x128xf32>
    tpu.vector_store %arg4[%c0_14, %c0_15], %34 {strides = array<i32>} : memref<2x128xf32, #tpu.memory_space<vmem>>, vector<2x128xf32>,
    %c0_16 = arith.constant 0 : index
    %c0_17 = arith.constant 0 : index
    %c0_18 = arith.constant 0 : index
    %37 = vector.load %arg3[%c0_16, %c0_17, %c0_18] : memref<1x2x128xf32, #tpu.memory_space<vmem>>, vector<1x2x128xf32>
    %38 = vector.shape_cast %37 : vector<1x2x128xf32> to vector<2x128xf32>
    %39 = vector.shape_cast %34 : vector<2x128xf32> to vector<1x2x128xf32>
    tpu.vector_store %arg3[%c0_16, %c0_17, %c0_18], %39 {strides = array<i32>} : memref<1x2x128xf32, #tpu.memory_space<vmem>>, vector<1x2x128xf32>,
    return
  }
  func.func @transform_0(%arg0: i32) -> (i32, i32, i32) {
    %c0_i32 = arith.constant 0 : i32
    %c0_i32_0 = arith.constant 0 : i32
    %c0_i32_1 = arith.constant 0 : i32
    return %arg0, %c0_i32, %c0_i32_0 : i32, i32, i32
  }
  func.func @transform_1(%arg0: i32) -> (i32, i32) {
    %c0_i32 = arith.constant 0 : i32
    %c0_i32_0 = arith.constant 0 : i32
    %c0_i32_1 = arith.constant 0 : i32
    return %c0_i32, %c0_i32_0 : i32, i32
  }
  func.func @transform_2(%arg0: i32) -> (i32, i32, i32) {
    %c0_i32 = arith.constant 0 : i32
    %c0_i32_0 = arith.constant 0 : i32
    %c0_i32_1 = arith.constant 0 : i32
    return %arg0, %c0_i32, %c0_i32_0 : i32, i32, i32
  }
}

</mosaic_0001>

<llo_original>
// kernel: tile.10
$region0: #{tile.10}
  #allocation0 [shape = 's32[1]{0}', space=sflag, size = 0x4, scoped, tag = 'scoped memory for tile.10']
  %s0 = inlined_call_operand.vmem [shape: f32[64], index: 0, kind: input, shape index: {}]
  %s1 = inlined_call_operand.vmem [shape: f32[49,64], index: 1, kind: output, shape index: {}]
  // Predicated region
  $region2: #{tile.10} parent=0 // pred_check
    _
  $region3: #{tile.10} parent=0 // pred_check_branch
    %3 = sbr.rel (0) target = $region5
  $region4: #{tile.10} parent=0 // pred_region
    _
  $region5: #{tile.10} parent=0 // pred_fallthru
    _
  %v4 = vld [vmem:[%s0] ss:$0 sm:$0xff]
  %5 = vst [vmem:[%s1] sm:$0xff] %v4
  %s6 = scalar_lea.vmem %s1, 8
  %7 = vst [vmem:[%s6] sm:$0xff] %v4
  %s8 = scalar_lea.vmem %s1, 16
  %9 = vst [vmem:[%s8] sm:$0xff] %v4
  %s10 = scalar_lea.vmem %s1, 24
  %11 = vst [vmem:[%s10] sm:$0xff] %v4
  %s12 = scalar_lea.vmem %s1, 32
  %13 = vst [vmem:[%s12] sm:$0xff] %v4
  %s14 = scalar_lea.vmem %s1, 40
  %15 = vst [vmem:[%s14] sm:$0xff] %v4
  %s16 = scalar_lea.vmem %s1, 48
  %17 = vst [vmem:[%s16] sm:$0xff] %v4

// kernel: tile.11
$region0: #{tile.11}
  %s0 = inlined_call_operand.vmem [shape: f32[49,64], index: 0, kind: input, shape index: {}]
  %s1 = inlined_call_operand.vmem [shape: f32[1,3136], index: 1, kind: output, shape index: {}]
  $region1: #{tile.11} parent=0
    #allocation0 [shape = 'u8[102400]{0}', space=vmem, size = 0x19000, scoped, tag = 'scoped mem for output reshape']
    %v2 = vld [vmem:[%s0] ss:$2 sm:$0xff]
    %vm3 = vcmask 523264
    %4 = vst.msk [vmem:[#allocation0] ss:$8 sm:$0xf] %vm3, %v2
    %5 = vst.msk [vmem:[#allocation0] ss:$8 sm:$0xf0] %vm3, %v2
    %s6 = scalar_lea.vmem %s0, 16
    %v7 = vld [vmem:[%s6] ss:$2 sm:$0xff]
    %vm8 = vcmask 523264
    %s9 = scalar_lea.vmem [#allocation0], 64
    %10 = vst.msk [vmem:[%s9] ss:$8 sm:$0xf] %vm8, %v7
    %s11 = scalar_lea.vmem [#allocation0], 64
    %12 = vst.msk [vmem:[%s11] ss:$8 sm:$0xf0] %vm8, %v7
    %s13 = scalar_lea.vmem %s0, 32
    %v14 = vld [vmem:[%s13] ss:$2 sm:$0xff]
    %vm15 = vcmask 523264
    %s16 = scalar_lea.vmem [#allocation0], 128
    %17 = vst.msk [vmem:[%s16] ss:$8 sm:$0xf] %vm15, %v14
    %s18 = scalar_lea.vmem [#allocation0], 128
    %19 = vst.msk [vmem:[%s18] ss:$8 sm:$0xf0] %vm15, %v14
    %s20 = scalar_lea.vmem %s0, 48
    %v21 = vld [vmem:[%s20] sm:$0x1]
    %vm22 = vcmask 523264
    %s23 = scalar_lea.vmem [#allocation0], 192
    %24 = vst.msk [vmem:[%s23] sm:$0x1] %vm22, %v21
    %s25 = scalar_lea.vmem %s0, 1
    %v26 = vld [vmem:[%s25] ss:$2 sm:$0xff]
    %27 = vrot.lane.b32.xlu0 %v26, 64
    %v28 = vpop.permute.xlu0 %27
    %vm29 = vcmask 1048064
    %30 = vst.msk [vmem:[#allocation0] ss:$8 sm:$0xf] %vm29, %v28
    %31 = vst.msk [vmem:[#allocation0] ss:$8 sm:$0xf0] %vm29, %v28
    %s32 = scalar_lea.vmem %s0, 17
    %v33 = vld [vmem:[%s32] ss:$2 sm:$0xff]
    %34 = vrot.lane.b32.xlu0 %v33, 64
    %v35 = vpop.permute.xlu0 %34
    %vm36 = vcmask 1048064
    %s37 = scalar_lea.vmem [#allocation0], 64
    %38 = vst.msk [vmem:[%s37] ss:$8 sm:$0xf] %vm36, %v35
    %s39 = scalar_lea.vmem [#allocation0], 64
    %40 = vst.msk [vmem:[%s39] ss:$8 sm:$0xf0] %vm36, %v35
    %s41 = scalar_lea.vmem %s0, 33
    %v42 = vld [vmem:[%s41] ss:$2 sm:$0xff]
    %43 = vrot.lane.b32.xlu0 %v42, 64
    %v44 = vpop.permute.xlu0 %43
    %vm45 = vcmask 1048064
    %s46 = scalar_lea.vmem [#allocation0], 128
    %47 = vst.msk [vmem:[%s46] ss:$8 sm:$0xf] %vm45, %v44
    %s48 = scalar_lea.vmem [#allocation0], 128
    %49 = vst.msk [vmem:[%s48] ss:$8 sm:$0xf0] %vm45, %v44
    %s51 = sshllo.u32 0, 1
    %v53 = vld [vmem:[#allocation0] sm:%s51]
    %s54 = sshllo.u32 0, 1
    %55 = vst [vmem:[%s1] sm:%s54] %v53
    %s56 = scalar_lea.vmem [#allocation0], 8
    %v57 = vld [vmem:[%s56] sm:%s51]
    %s58 = sshllo.u32 0, 1
    %s59 = scalar_lea.vmem %s1, 1
    %60 = vst [vmem:[%s59] sm:%s58] %v57
    %s61 = scalar_lea.vmem [#allocation0], 16
    %v62 = vld [vmem:[%s61] sm:%s51]
    %s63 = sshllo.u32 0, 1
    %s64 = smul.addr 1, 2
    %s65 = scalar_lea.vmem %s1, %s64
    %66 = vst [vmem:[%s65] sm:%s63] %v62
    %s67 = scalar_lea.vmem [#allocation0], 24
    %v68 = vld [vmem:[%s67] sm:%s51]
    %s69 = sshllo.u32 0, 1
    %s70 = smul.addr 1, 3
    %s71 = scalar_lea.vmem %s1, %s70
    %72 = vst [vmem:[%s71] sm:%s69] %v68
    %s73 = scalar_lea.vmem [#allocation0], 32
    %v74 = vld [vmem:[%s73] sm:%s51]
    %s75 = sshllo.u32 0, 1
    %s76 = smul.addr 1, 4
    %s77 = scalar_lea.vmem %s1, %s76
    %78 = vst [vmem:[%s77] sm:%s75] %v74
    %s79 = scalar_lea.vmem [#allocation0], 40
    %v80 = vld [vmem:[%s79] sm:%s51]
    %s81 = sshllo.u32 0, 1
    %s82 = smul.addr 1, 5
    %s83 = scalar_lea.vmem %s1, %s82
    %84 = vst [vmem:[%s83] sm:%s81] %v80
    %s85 = scalar_lea.vmem [#allocation0], 48
    %v86 = vld [vmem:[%s85] sm:%s51]
    %s87 = sshllo.u32 0, 1
    %s88 = smul.addr 1, 6
    %s89 = scalar_lea.vmem %s1, %s88
    %90 = vst [vmem:[%s89] sm:%s87] %v86
    %s91 = scalar_lea.vmem [#allocation0], 56
    %v92 = vld [vmem:[%s91] sm:%s51]
    %s93 = sshllo.u32 0, 1
    %s94 = smul.addr 1, 7
    %s95 = scalar_lea.vmem %s1, %s94
    %96 = vst [vmem:[%s95] sm:%s93] %v92
    %s97 = scalar_lea.vmem [#allocation0], 64
    %v98 = vld [vmem:[%s97] sm:%s51]
    %s99 = sshllo.u32 0, 1
    %s100 = smul.addr 1, 8
    %s101 = scalar_lea.vmem %s1, %s100
    %102 = vst [vmem:[%s101] sm:%s99] %v98
    %s103 = scalar_lea.vmem [#allocation0], 72
    %v104 = vld [vmem:[%s103] sm:%s51]
    %s105 = sshllo.u32 0, 1
    %s106 = smul.addr 1, 9
    %s107 = scalar_lea.vmem %s1, %s106
    %108 = vst [vmem:[%s107] sm:%s105] %v104
    %s109 = scalar_lea.vmem [#allocation0], 80
    %v110 = vld [vmem:[%s109] sm:%s51]
    %s111 = sshllo.u32 0, 1
    %s112 = smul.addr 1, 10
    %s113 = scalar_lea.vmem %s1, %s112
    %114 = vst [vmem:[%s113] sm:%s111] %v110
    %s115 = scalar_lea.vmem [#allocation0], 88
    %v116 = vld [vmem:[%s115] sm:%s51]
    %s117 = sshllo.u32 0, 1
    %s118 = smul.addr 1, 11
    %s119 = scalar_lea.vmem %s1, %s118
    %120 = vst [vmem:[%s119] sm:%s117] %v116
    %s121 = scalar_lea.vmem [#allocation0], 96
    %v122 = vld [vmem:[%s121] sm:%s51]
    %s123 = sshllo.u32 0, 1
    %s124 = smul.addr 1, 12
    %s125 = scalar_lea.vmem %s1, %s124
    %126 = vst [vmem:[%s125] sm:%s123] %v122
    %s127 = scalar_lea.vmem [#allocation0], 104
    %v128 = vld [vmem:[%s127] sm:%s51]
    %s129 = sshllo.u32 0, 1
    %s130 = smul.addr 1, 13
    %s131 = scalar_lea.vmem %s1, %s130
    %132 = vst [vmem:[%s131] sm:%s129] %v128
    %s133 = scalar_lea.vmem [#allocation0], 112
    %v134 = vld [vmem:[%s133] sm:%s51]
    %s135 = sshllo.u32 0, 1
    %s136 = smul.addr 1, 14
    %s137 = scalar_lea.vmem %s1, %s136
    %138 = vst [vmem:[%s137] sm:%s135] %v134
    %s139 = scalar_lea.vmem [#allocation0], 120
    %v140 = vld [vmem:[%s139] sm:%s51]
    %s141 = sshllo.u32 0, 1
    %s142 = smul.addr 1, 15
    %s143 = scalar_lea.vmem %s1, %s142
    %144 = vst [vmem:[%s143] sm:%s141] %v140
    %s145 = scalar_lea.vmem [#allocation0], 128
    %v146 = vld [vmem:[%s145] sm:%s51]
    %s147 = sshllo.u32 0, 1
    %s148 = smul.addr 1, 16
    %s149 = scalar_lea.vmem %s1, %s148
    %150 = vst [vmem:[%s149] sm:%s147] %v146
    %s151 = scalar_lea.vmem [#allocation0], 136
    %v152 = vld [vmem:[%s151] sm:%s51]
    %s153 = sshllo.u32 0, 1
    %s154 = smul.addr 1, 17
    %s155 = scalar_lea.vmem %s1, %s154
    %156 = vst [vmem:[%s155] sm:%s153] %v152
    %s157 = scalar_lea.vmem [#allocation0], 144
    %v158 = vld [vmem:[%s157] sm:%s51]
    %s159 = sshllo.u32 0, 1
    %s160 = smul.addr 1, 18
    %s161 = scalar_lea.vmem %s1, %s160
    %162 = vst [vmem:[%s161] sm:%s159] %v158
    %s163 = scalar_lea.vmem [#allocation0], 152
    %v164 = vld [vmem:[%s163] sm:%s51]
    %s165 = sshllo.u32 0, 1
    %s166 = smul.addr 1, 19
    %s167 = scalar_lea.vmem %s1, %s166
    %168 = vst [vmem:[%s167] sm:%s165] %v164
    %s169 = scalar_lea.vmem [#allocation0], 160
    %v170 = vld [vmem:[%s169] sm:%s51]
    %s171 = sshllo.u32 0, 1
    %s172 = smul.addr 1, 20
    %s173 = scalar_lea.vmem %s1, %s172
    %174 = vst [vmem:[%s173] sm:%s171] %v170
    %s175 = scalar_lea.vmem [#allocation0], 168
    %v176 = vld [vmem:[%s175] sm:%s51]
    %s177 = sshllo.u32 0, 1
    %s178 = smul.addr 1, 21
    %s179 = scalar_lea.vmem %s1, %s178
    %180 = vst [vmem:[%s179] sm:%s177] %v176
    %s181 = scalar_lea.vmem [#allocation0], 176
    %v182 = vld [vmem:[%s181] sm:%s51]
    %s183 = sshllo.u32 0, 1
    %s184 = smul.addr 1, 22
    %s185 = scalar_lea.vmem %s1, %s184
    %186 = vst [vmem:[%s185] sm:%s183] %v182
    %s187 = scalar_lea.vmem [#allocation0], 184
    %v188 = vld [vmem:[%s187] sm:%s51]
    %s189 = sshllo.u32 0, 1
    %s190 = smul.addr 1, 23
    %s191 = scalar_lea.vmem %s1, %s190
    %192 = vst [vmem:[%s191] sm:%s189] %v188
    %s193 = scalar_lea.vmem [#allocation0], 192
    %v194 = vld [vmem:[%s193] sm:%s51]
    %s195 = sshllo.u32 0, 1
    %s196 = smul.addr 1, 24
    %s197 = scalar_lea.vmem %s1, %s196
    %198 = vst [vmem:[%s197] sm:%s195] %v194

// kernel: forward.5
$region0: #{forward.5}
  #allocation0 [shape = 'u32[]', space=smem, size = 0x4, offset = 0x4, fixed_abs, tag = 'smem constant byte address 0x4 - core index']
  #allocation1 [shape = 'u32[144,128]{1,0:T(1,128)}', space=vmem, size = 0x12000, scoped, tag = 'internal scratch']
  %s0 = inlined_call_operand.vmem [shape: f32[200,256], index: 0, kind: input, shape index: {}]
  %s1 = inlined_call_operand.vmem [shape: f32[1,256], index: 1, kind: input, shape index: {}]
  %s2 = inlined_call_operand.vmem [shape: f32[1,256], index: 2, kind: input, shape index: {}]
  %s3 = inlined_call_operand.vmem [shape: f32[256,64], index: 3, kind: input, shape index: {}]
  %s4 = inlined_call_operand.vmem [shape: f32[1,64], index: 4, kind: input, shape index: {}]
  %s5 = inlined_call_operand.vmem [shape: f32[200,64], index: 5, kind: output, shape index: {0}]
  %s6 = inlined_call_operand.vmem [shape: f32[1,1,64], index: 6, kind: output, shape index: {1}]
  %s7 = inlined_call_operand.vmem [shape: f32[1,1,64], index: 7, kind: output, shape index: {2}]
  %8 = xla_tuple %s5, %s6, %s7
  %s9 = sld [smem:[#allocation0]]
  $region46: #{forward.5} parent=0
    _
  %s11 = ssub.s32 1, %s9
  %s12 = scalar_select 0, %s11, %s9
  // Predicated region
  $region2: #{forward.5} parent=0 // pred_check
    _
  $region3: #{forward.5} parent=0 // pred_check_branch
    %14 = sbr.rel (0) target = $region5
  $region4: #{forward.5} parent=0 // pred_region
    _
  $region5: #{forward.5} parent=0 // pred_fallthru
    _
  // Predicated region
  $region6: #{forward.5} parent=0 // pred_check
    _
  $region7: #{forward.5} parent=0 // pred_check_branch
    %16 = sbr.rel (0) target = $region9
  $region8: #{forward.5} parent=0 // pred_region
    _
  $region9: #{forward.5} parent=0 // pred_fallthru
    _
  // Predicated region
  $region10: #{forward.5} parent=0 // pred_check
    _
  $region11: #{forward.5} parent=0 // pred_check_branch
    %18 = sbr.rel (0) target = $region13
  $region12: #{forward.5} parent=0 // pred_region
    _
  $region13: #{forward.5} parent=0 // pred_fallthru
    _
  // Predicated region
  $region14: #{forward.5} parent=0 // pred_check
    _
  $region15: #{forward.5} parent=0 // pred_check_branch
    %20 = sbr.rel (0) target = $region17
  $region16: #{forward.5} parent=0 // pred_region
    _
  $region17: #{forward.5} parent=0 // pred_fallthru
    _
  // Predicated region
  $region18: #{forward.5} parent=0 // pred_check
    _
  $region19: #{forward.5} parent=0 // pred_check_branch
    %22 = sbr.rel (0) target = $region21
  $region20: #{forward.5} parent=0 // pred_region
    _
  $region21: #{forward.5} parent=0 // pred_fallthru
    _
  %v23 = vld [vmem:[%s0] sm:$0xff]
  %v24 = vld [vmem:[%s0 + $0x8] sm:$0xff]
  %v25 = vld [vmem:[%s0 + $0x10] sm:$0xff]
  %v26 = vld [vmem:[%s0 + $0x18] sm:$0xff]
  %v27 = vld [vmem:[%s0 + $0x20] sm:$0xff]
  %v28 = vld [vmem:[%s0 + $0x28] sm:$0xff]
  %v29 = vld [vmem:[%s0 + $0x30] sm:$0xff]
  %v30 = vld [vmem:[%s0 + $0x38] sm:$0xff]
  %v31 = vld [vmem:[%s0 + $0x40] sm:$0xff]
  %v32 = vld [vmem:[%s0 + $0x48] sm:$0xff]
  %v33 = vld [vmem:[%s0 + $0x50] sm:$0xff]
  %v34 = vld [vmem:[%s0 + $0x58] sm:$0xff]
  %v35 = vld [vmem:[%s0 + $0x60] sm:$0xff]
  %v36 = vld [vmem:[%s0 + $0x68] sm:$0xff]
  %v37 = vld [vmem:[%s0 + $0x70] sm:$0xff]
  %v38 = vld [vmem:[%s0 + $0x78] sm:$0xff]
  %v39 = vld [vmem:[%s0 + $0x80] sm:$0xff]
  %v40 = vld [vmem:[%s0 + $0x88] sm:$0xff]
  %v41 = vld [vmem:[%s0 + $0x90] sm:$0xff]
  %v42 = vld [vmem:[%s0 + $0x98] sm:$0xff]
  %v43 = vld [vmem:[%s0 + $0xa0] sm:$0xff]
  %v44 = vld [vmem:[%s0 + $0xa8] sm:$0xff]
  %v45 = vld [vmem:[%s0 + $0xb0] sm:$0xff]
  %v46 = vld [vmem:[%s0 + $0xb8] sm:$0xff]
  %v47 = vld [vmem:[%s0 + $0xc0] sm:$0xff]
  %v48 = vld [vmem:[%s0 + $0xc8] sm:$0xff]
  %v49 = vld [vmem:[%s0 + $0xd0] sm:$0xff]
  %v50 = vld [vmem:[%s0 + $0xd8] sm:$0xff]
  %v51 = vld [vmem:[%s0 + $0xe0] sm:$0xff]
  %v52 = vld [vmem:[%s0 + $0xe8] sm:$0xff]
  %v53 = vld [vmem:[%s0 + $0xf0] sm:$0xff]
  %v54 = vld [vmem:[%s0 + $0xf8] sm:$0xff]
  %v55 = vld [vmem:[%s0 + $0x100] sm:$0xff]
  %v56 = vld [vmem:[%s0 + $0x108] sm:$0xff]
  %v57 = vld [vmem:[%s0 + $0x110] sm:$0xff]
  %v58 = vld [vmem:[%s0 + $0x118] sm:$0xff]
  %v59 = vld [vmem:[%s0 + $0x120] sm:$0xff]
  %v60 = vld [vmem:[%s0 + $0x128] sm:$0xff]
  %v61 = vld [vmem:[%s0 + $0x130] sm:$0xff]
  %v62 = vld [vmem:[%s0 + $0x138] sm:$0xff]
  %v63 = vld [vmem:[%s0 + $0x140] sm:$0xff]
  %v64 = vld [vmem:[%s0 + $0x148] sm:$0xff]
  %v65 = vld [vmem:[%s0 + $0x150] sm:$0xff]
  %v66 = vld [vmem:[%s0 + $0x158] sm:$0xff]
  %v67 = vld [vmem:[%s0 + $0x160] sm:$0xff]
  %v68 = vld [vmem:[%s0 + $0x168] sm:$0xff]
  %v69 = vld [vmem:[%s0 + $0x170] sm:$0xff]
  %v70 = vld [vmem:[%s0 + $0x178] sm:$0xff]
  %v71 = vld [vmem:[%s0 + $0x180] sm:$0xff]
  %v72 = vld [vmem:[%s0 + $0x188] sm:$0xff]
  %v73 = vld [vmem:[%s1] sm:$0x3]
  %v75 = vlaneseq
  %v76 = vshrl.u32 %v75, 7
  %v77 = vsub.s32 0, %v76
  %v78 = vrot.slane %v73, %v77
  %v79 = vlaneseq
  %v80 = vshrl.u32 %v79, 7
  %v81 = vsub.s32 1, %v80
  %v82 = vrot.slane %v73, %v81
  %v85 = vmul.f32 %v23, %v78
  %v86 = vmul.f32 %v24, %v82
  %v87 = vmul.f32 %v25, %v78
  %v88 = vmul.f32 %v26, %v82
  %v89 = vmul.f32 %v27, %v78
  %v90 = vmul.f32 %v28, %v82
  %v91 = vmul.f32 %v29, %v78
  %v92 = vmul.f32 %v30, %v82
  %v93 = vmul.f32 %v31, %v78
  %v94 = vmul.f32 %v32, %v82
  %v95 = vmul.f32 %v33, %v78
  %v96 = vmul.f32 %v34, %v82
  %v97 = vmul.f32 %v35, %v78
  %v98 = vmul.f32 %v36, %v82
  %v99 = vmul.f32 %v37, %v78
  %v100 = vmul.f32 %v38, %v82
  %v101 = vmul.f32 %v39, %v78
  %v102 = vmul.f32 %v40, %v82
  %v103 = vmul.f32 %v41, %v78
  %v104 = vmul.f32 %v42, %v82
  %v105 = vmul.f32 %v43, %v78
  %v106 = vmul.f32 %v44, %v82
  %v107 = vmul.f32 %v45, %v78
  %v108 = vmul.f32 %v46, %v82
  %v109 = vmul.f32 %v47, %v78
  %v110 = vmul.f32 %v48, %v82
  %v111 = vmul.f32 %v49, %v78
  %v112 = vmul.f32 %v50, %v82
  %v113 = vmul.f32 %v51, %v78
  %v114 = vmul.f32 %v52, %v82
  %v115 = vmul.f32 %v53, %v78
  %v116 = vmul.f32 %v54, %v82
  %v117 = vmul.f32 %v55, %v78
  %v118 = vmul.f32 %v56, %v82
  %v119 = vmul.f32 %v57, %v78
  %v120 = vmul.f32 %v58, %v82
  %v121 = vmul.f32 %v59, %v78
  %v122 = vmul.f32 %v60, %v82
  %v123 = vmul.f32 %v61, %v78
  %v124 = vmul.f32 %v62, %v82
  %v125 = vmul.f32 %v63, %v78
  %v126 = vmul.f32 %v64, %v82
  %v127 = vmul.f32 %v65, %v78
  %v128 = vmul.f32 %v66, %v82
  %v129 = vmul.f32 %v67, %v78
  %v130 = vmul.f32 %v68, %v82
  %v131 = vmul.f32 %v69, %v78
  %v132 = vmul.f32 %v70, %v82
  %v133 = vmul.f32 %v71, %v78
  %v134 = vmul.f32 %v72, %v82
  %v135 = vld [vmem:[%s2] sm:$0x3]
  %v137 = vlaneseq
  %v138 = vshrl.u32 %v137, 7
  %v139 = vsub.s32 0, %v138
  %v140 = vrot.slane %v135, %v139
  %v141 = vlaneseq
  %v142 = vshrl.u32 %v141, 7
  %v143 = vsub.s32 1, %v142
  %v144 = vrot.slane %v135, %v143
  %v147 = vadd.f32 %v85, %v140
  %v148 = vadd.f32 %v86, %v144
  %v149 = vadd.f32 %v87, %v140
  %v150 = vadd.f32 %v88, %v144
  %v151 = vadd.f32 %v89, %v140
  %v152 = vadd.f32 %v90, %v144
  %v153 = vadd.f32 %v91, %v140
  %v154 = vadd.f32 %v92, %v144
  %v155 = vadd.f32 %v93, %v140
  %v156 = vadd.f32 %v94, %v144
  %v157 = vadd.f32 %v95, %v140
  %v158 = vadd.f32 %v96, %v144
  %v159 = vadd.f32 %v97, %v140
  %v160 = vadd.f32 %v98, %v144
  %v161 = vadd.f32 %v99, %v140
  %v162 = vadd.f32 %v100, %v144
  %v163 = vadd.f32 %v101, %v140
  %v164 = vadd.f32 %v102, %v144
  %v165 = vadd.f32 %v103, %v140
  %v166 = vadd.f32 %v104, %v144
  %v167 = vadd.f32 %v105, %v140
  %v168 = vadd.f32 %v106, %v144
  %v169 = vadd.f32 %v107, %v140
  %v170 = vadd.f32 %v108, %v144
  %v171 = vadd.f32 %v109, %v140
  %v172 = vadd.f32 %v110, %v144
  %v173 = vadd.f32 %v111, %v140
  %v174 = vadd.f32 %v112, %v144
  %v175 = vadd.f32 %v113, %v140
  %v176 = vadd.f32 %v114, %v144
  %v177 = vadd.f32 %v115, %v140
  %v178 = vadd.f32 %v116, %v144
  %v179 = vadd.f32 %v117, %v140
  %v180 = vadd.f32 %v118, %v144
  %v181 = vadd.f32 %v119, %v140
  %v182 = vadd.f32 %v120, %v144
  %v183 = vadd.f32 %v121, %v140
  %v184 = vadd.f32 %v122, %v144
  %v185 = vadd.f32 %v123, %v140
  %v186 = vadd.f32 %v124, %v144
  %v187 = vadd.f32 %v125, %v140
  %v188 = vadd.f32 %v126, %v144
  %v189 = vadd.f32 %v127, %v140
  %v190 = vadd.f32 %v128, %v144
  %v191 = vadd.f32 %v129, %v140
  %v192 = vadd.f32 %v130, %v144
  %v193 = vadd.f32 %v131, %v140
  %v194 = vadd.f32 %v132, %v144
  %v195 = vadd.f32 %v133, %v140
  %v196 = vadd.f32 %v134, %v144
  %v197 = vmax.f32 %v147, 0.0
  %v198 = vmax.f32 %v148, 0.0
  %v199 = vmax.f32 %v149, 0.0
  %v200 = vmax.f32 %v150, 0.0
  %v201 = vmax.f32 %v151, 0.0
  %v202 = vmax.f32 %v152, 0.0
  %v203 = vmax.f32 %v153, 0.0
  %v204 = vmax.f32 %v154, 0.0
  %v205 = vmax.f32 %v155, 0.0
  %v206 = vmax.f32 %v156, 0.0
  %v207 = vmax.f32 %v157, 0.0
  %v208 = vmax.f32 %v158, 0.0
  %v209 = vmax.f32 %v159, 0.0
  %v210 = vmax.f32 %v160, 0.0
  %v211 = vmax.f32 %v161, 0.0
  %v212 = vmax.f32 %v162, 0.0
  %v213 = vmax.f32 %v163, 0.0
  %v214 = vmax.f32 %v164, 0.0
  %v215 = vmax.f32 %v165, 0.0
  %v216 = vmax.f32 %v166, 0.0
  %v217 = vmax.f32 %v167, 0.0
  %v218 = vmax.f32 %v168, 0.0
  %v219 = vmax.f32 %v169, 0.0
  %v220 = vmax.f32 %v170, 0.0
  %v221 = vmax.f32 %v171, 0.0
  %v222 = vmax.f32 %v172, 0.0
  %v223 = vmax.f32 %v173, 0.0
  %v224 = vmax.f32 %v174, 0.0
  %v225 = vmax.f32 %v175, 0.0
  %v226 = vmax.f32 %v176, 0.0
  %v227 = vmax.f32 %v177, 0.0
  %v228 = vmax.f32 %v178, 0.0
  %v229 = vmax.f32 %v179, 0.0
  %v230 = vmax.f32 %v180, 0.0
  %v231 = vmax.f32 %v181, 0.0
  %v232 = vmax.f32 %v182, 0.0
  %v233 = vmax.f32 %v183, 0.0
  %v234 = vmax.f32 %v184, 0.0
  %v235 = vmax.f32 %v185, 0.0
  %v236 = vmax.f32 %v186, 0.0
  %v237 = vmax.f32 %v187, 0.0
  %v238 = vmax.f32 %v188, 0.0
  %v239 = vmax.f32 %v189, 0.0
  %v240 = vmax.f32 %v190, 0.0
  %v241 = vmax.f32 %v191, 0.0
  %v242 = vmax.f32 %v192, 0.0
  %v243 = vmax.f32 %v193, 0.0
  %v244 = vmax.f32 %v194, 0.0
  %v245 = vmax.f32 %v195, 0.0
  %v246 = vmax.f32 %v196, 0.0
  %v247 = vld [vmem:[%s3] sm:$0xff]
  %v248 = vld [vmem:[%s3 + $0x8] sm:$0xff]
  %v249 = vld [vmem:[%s3 + $0x10] sm:$0xff]
  %v250 = vld [vmem:[%s3 + $0x18] sm:$0xff]
  %v251 = vld [vmem:[%s3 + $0x20] sm:$0xff]
  %v252 = vld [vmem:[%s3 + $0x28] sm:$0xff]
  %v253 = vld [vmem:[%s3 + $0x30] sm:$0xff]
  %v254 = vld [vmem:[%s3 + $0x38] sm:$0xff]
  %v255 = vld [vmem:[%s3 + $0x40] sm:$0xff]
  %v256 = vld [vmem:[%s3 + $0x48] sm:$0xff]
  %v257 = vld [vmem:[%s3 + $0x50] sm:$0xff]
  %v258 = vld [vmem:[%s3 + $0x58] sm:$0xff]
  %v259 = vld [vmem:[%s3 + $0x60] sm:$0xff]
  %v260 = vld [vmem:[%s3 + $0x68] sm:$0xff]
  %v261 = vld [vmem:[%s3 + $0x70] sm:$0xff]
  %v262 = vld [vmem:[%s3 + $0x78] sm:$0xff]
  %v263 = vld [vmem:[%s3 + $0x80] sm:$0xff]
  %v264 = vld [vmem:[%s3 + $0x88] sm:$0xff]
  %v265 = vld [vmem:[%s3 + $0x90] sm:$0xff]
  %v266 = vld [vmem:[%s3 + $0x98] sm:$0xff]
  %v267 = vld [vmem:[%s3 + $0xa0] sm:$0xff]
  %v268 = vld [vmem:[%s3 + $0xa8] sm:$0xff]
  %v269 = vld [vmem:[%s3 + $0xb0] sm:$0xff]
  %v270 = vld [vmem:[%s3 + $0xb8] sm:$0xff]
  %v271 = vld [vmem:[%s3 + $0xc0] sm:$0xff]
  %v272 = vld [vmem:[%s3 + $0xc8] sm:$0xff]
  %v273 = vld [vmem:[%s3 + $0xd0] sm:$0xff]
  %v274 = vld [vmem:[%s3 + $0xd8] sm:$0xff]
  %v275 = vld [vmem:[%s3 + $0xe0] sm:$0xff]
  %v276 = vld [vmem:[%s3 + $0xe8] sm:$0xff]
  %v277 = vld [vmem:[%s3 + $0xf0] sm:$0xff]
  %v278 = vld [vmem:[%s3 + $0xf8] sm:$0xff]
  %v279 = vld [vmem:[%s4] sm:$0x1]
  %v281 = vlaneseq
  %v282 = vshrl.u32 %v281, 7
  %v283 = vsub.s32 0, %v282
  %v284 = vrot.slane %v279, %v283
  %286 = vmatprep.subr.mxu0 0.0
  %287 = vmatpush1.msra.mxu0 %v247
  %288 = vmatprep.subr.mxu0 0.0
  %289 = vmatpush1.msra.mxu0 %v248
  %290 = vmatprep.subr.mxu0 0.0
  %291 = vmatpush1.msra.mxu0 %v249
  %292 = vmatprep.subr.mxu0 0.0
  %293 = vmatpush1.msra.mxu0 %v250
  %294 = vmatprep.subr.mxu0 0.0
  %295 = vmatpush1.msra.mxu0 %v251
  %296 = vmatprep.subr.mxu0 0.0
  %297 = vmatpush1.msra.mxu0 %v252
  %298 = vmatprep.subr.mxu0 0.0
  %299 = vmatpush1.msra.mxu0 %v253
  %300 = vmatprep.subr.mxu0 0.0
  %301 = vmatpush1.msra.mxu0 %v254
  %302 = vmatprep.subr.mxu0 0.0
  %303 = vmatpush1.msra.mxu0 %v255
  %304 = vmatprep.subr.mxu0 0.0
  %305 = vmatpush1.msra.mxu0 %v256
  %306 = vmatprep.subr.mxu0 0.0
  %307 = vmatpush1.msra.mxu0 %v257
  %308 = vmatprep.subr.mxu0 0.0
  %309 = vmatpush1.msra.mxu0 %v258
  %310 = vmatprep.subr.mxu0 0.0
  %311 = vmatpush1.msra.mxu0 %v259
  %312 = vmatprep.subr.mxu0 0.0
  %313 = vmatpush1.msra.mxu0 %v260
  %314 = vmatprep.subr.mxu0 0.0
  %315 = vmatpush1.msra.mxu0 %v261
  %316 = vmatprep.subr.mxu0 0.0
  %317 = vmatpush1.msra.mxu0 %v262
  %318 = vmatprep.subr.mxu0 0.0
  %319 = vmatpush1.msra.mxu0 %v263
  %320 = vmatprep.subr.mxu0 0.0
  %321 = vmatpush1.msra.mxu0 %v264
  %322 = vmatprep.subr.mxu0 0.0
  %323 = vmatpush1.msra.mxu0 %v265
  %324 = vmatprep.subr.mxu0 0.0
  %325 = vmatpush1.msra.mxu0 %v266
  %326 = vmatprep.subr.mxu0 0.0
  %327 = vmatpush1.msra.mxu0 %v267
  %328 = vmatprep.subr.mxu0 0.0
  %329 = vmatpush1.msra.mxu0 %v268
  %330 = vmatprep.subr.mxu0 0.0
  %331 = vmatpush1.msra.mxu0 %v269
  %332 = vmatprep.subr.mxu0 0.0
  %333 = vmatpush1.msra.mxu0 %v270
  %334 = vmatprep.subr.mxu0 0.0
  %335 = vmatpush1.msra.mxu0 %v271
  %336 = vmatprep.subr.mxu0 0.0
  %337 = vmatpush1.msra.mxu0 %v272
  %338 = vmatprep.subr.mxu0 0.0
  %339 = vmatpush1.msra.mxu0 %v273
  %340 = vmatprep.subr.mxu0 0.0
  %341 = vmatpush1.msra.mxu0 %v274
  %342 = vmatprep.subr.mxu0 0.0
  %343 = vmatpush1.msra.mxu0 %v275
  %344 = vmatprep.subr.mxu0 0.0
  %345 = vmatpush1.msra.mxu0 %v276
  %346 = vmatprep.subr.mxu0 0.0
  %347 = vmatpush1.msra.mxu0 %v277
  %348 = vmatprep.subr.mxu0 0.0
  %349 = vmatpush1.msra.mxu0 %v278
  %350 = vmatprep.mubr.f32.mxu0 %v198
  %351 = vmatmul.mubr.f32.gmra.mrb[0].mxu0 %v197
  %v352 = vpop.f32.mrb[0].mxu0
  %v353 = vadd.f32 %v284, %v352
  %v354 = vpop.f32.mrb[0].mxu0
  %355 = vmatprep.mubr.f32.mxu0 %v200
  %356 = vmatmul.mubr.f32.gmra.mrb[0].mxu0 %v199
  %v357 = vpop.f32.mrb[0].mxu0
  %v358 = vadd.f32 %v284, %v357
  %v359 = vpop.f32.mrb[0].mxu0
  %360 = vmatprep.mubr.f32.mxu0 %v202
  %361 = vmatmul.mubr.f32.gmra.mrb[0].mxu0 %v201
  %v362 = vpop.f32.mrb[0].mxu0
  %v363 = vadd.f32 %v284, %v362
  %v364 = vpop.f32.mrb[0].mxu0
  %365 = vmatprep.mubr.f32.mxu0 %v204
  %366 = vmatmul.mubr.f32.gmra.mrb[0].mxu0 %v203
  %v367 = vpop.f32.mrb[0].mxu0
  %v368 = vadd.f32 %v284, %v367
  %v369 = vpop.f32.mrb[0].mxu0
  %370 = vmatprep.mubr.f32.mxu0 %v206
  %371 = vmatmul.mubr.f32.gmra.mrb[0].mxu0 %v205
  %v372 = vpop.f32.mrb[0].mxu0
  %v373 = vadd.f32 %v284, %v372
  %v374 = vpop.f32.mrb[0].mxu0
  %375 = vmatprep.mubr.f32.mxu0 %v208
  %376 = vmatmul.mubr.f32.gmra.mrb[0].mxu0 %v207
  %v377 = vpop.f32.mrb[0].mxu0
  %v378 = vadd.f32 %v284, %v377
  %v379 = vpop.f32.mrb[0].mxu0
  %380 = vmatprep.mubr.f32.mxu0 %v210
  %381 = vmatmul.mubr.f32.gmra.mrb[0].mxu0 %v209
  %v382 = vpop.f32.mrb[0].mxu0
  %v383 = vadd.f32 %v284, %v382
  %v384 = vpop.f32.mrb[0].mxu0
  %385 = vmatprep.mubr.f32.mxu0 %v212
  %386 = vmatmul.mubr.f32.gmra.mrb[0].mxu0 %v211
  %v387 = vpop.f32.mrb[0].mxu0
  %v388 = vadd.f32 %v284, %v387
  %v389 = vpop.f32.mrb[0].mxu0
  %390 = vmatprep.mubr.f32.mxu0 %v214
  %391 = vmatmul.mubr.f32.gmra.mrb[0].mxu0 %v213
  %v392 = vpop.f32.mrb[0].mxu0
  %v393 = vadd.f32 %v284, %v392
  %v394 = vpop.f32.mrb[0].mxu0
  %395 = vmatprep.mubr.f32.mxu0 %v216
  %396 = vmatmul.mubr.f32.gmra.mrb[0].mxu0 %v215
  %v397 = vpop.f32.mrb[0].mxu0
  %v398 = vadd.f32 %v284, %v397
  %v399 = vpop.f32.mrb[0].mxu0
  %400 = vmatprep.mubr.f32.mxu0 %v218
  %401 = vmatmul.mubr.f32.gmra.mrb[0].mxu0 %v217
  %v402 = vpop.f32.mrb[0].mxu0
  %v403 = vadd.f32 %v284, %v402
  %v404 = vpop.f32.mrb[0].mxu0
  %405 = vmatprep.mubr.f32.mxu0 %v220
  %406 = vmatmul.mubr.f32.gmra.mrb[0].mxu0 %v219
  %v407 = vpop.f32.mrb[0].mxu0
  %v408 = vadd.f32 %v284, %v407
  %v409 = vpop.f32.mrb[0].mxu0
  %410 = vmatprep.mubr.f32.mxu0 %v222
  %411 = vmatmul.mubr.f32.gmra.mrb[0].mxu0 %v221
  %v412 = vpop.f32.mrb[0].mxu0
  %v413 = vadd.f32 %v284, %v412
  %v414 = vpop.f32.mrb[0].mxu0
  %415 = vmatprep.mubr.f32.mxu0 %v224
  %416 = vmatmul.mubr.f32.gmra.mrb[0].mxu0 %v223
  %v417 = vpop.f32.mrb[0].mxu0
  %v418 = vadd.f32 %v284, %v417
  %v419 = vpop.f32.mrb[0].mxu0
  %420 = vmatprep.mubr.f32.mxu0 %v226
  %421 = vmatmul.mubr.f32.gmra.mrb[0].mxu0 %v225
  %v422 = vpop.f32.mrb[0].mxu0
  %v423 = vadd.f32 %v284, %v422
  %v424 = vpop.f32.mrb[0].mxu0
  %425 = vmatprep.mubr.f32.mxu0 %v228
  %426 = vmatmul.mubr.f32.gmra.mrb[0].mxu0 %v227
  %v427 = vpop.f32.mrb[0].mxu0
  %v428 = vadd.f32 %v284, %v427
  %v429 = vpop.f32.mrb[0].mxu0
  %430 = vmatprep.mubr.f32.mxu0 %v230
  %431 = vmatmul.mubr.f32.gmra.mrb[0].mxu0 %v229
  %v432 = vpop.f32.mrb[0].mxu0
  %v433 = vadd.f32 %v284, %v432
  %v434 = vpop.f32.mrb[0].mxu0
  %435 = vmatprep.mubr.f32.mxu0 %v232
  %436 = vmatmul.mubr.f32.gmra.mrb[0].mxu0 %v231
  %v437 = vpop.f32.mrb[0].mxu0
  %v438 = vadd.f32 %v284, %v437
  %v439 = vpop.f32.mrb[0].mxu0
  %440 = vmatprep.mubr.f32.mxu0 %v234
  %441 = vmatmul.mubr.f32.gmra.mrb[0].mxu0 %v233
  %v442 = vpop.f32.mrb[0].mxu0
  %v443 = vadd.f32 %v284, %v442
  %v444 = vpop.f32.mrb[0].mxu0
  %445 = vmatprep.mubr.f32.mxu0 %v236
  %446 = vmatmul.mubr.f32.gmra.mrb[0].mxu0 %v235
  %v447 = vpop.f32.mrb[0].mxu0
  %v448 = vadd.f32 %v284, %v447
  %v449 = vpop.f32.mrb[0].mxu0
  %450 = vmatprep.mubr.f32.mxu0 %v238
  %451 = vmatmul.mubr.f32.gmra.mrb[0].mxu0 %v237
  %v452 = vpop.f32.mrb[0].mxu0
  %v453 = vadd.f32 %v284, %v452
  %v454 = vpop.f32.mrb[0].mxu0
  %455 = vmatprep.mubr.f32.mxu0 %v240
  %456 = vmatmul.mubr.f32.gmra.mrb[0].mxu0 %v239
  %v457 = vpop.f32.mrb[0].mxu0
  %v458 = vadd.f32 %v284, %v457
  %v459 = vpop.f32.mrb[0].mxu0
  %460 = vmatprep.mubr.f32.mxu0 %v242
  %461 = vmatmul.mubr.f32.gmra.mrb[0].mxu0 %v241
  %v462 = vpop.f32.mrb[0].mxu0
  %v463 = vadd.f32 %v284, %v462
  %v464 = vpop.f32.mrb[0].mxu0
  %465 = vmatprep.mubr.f32.mxu0 %v244
  %466 = vmatmul.mubr.f32.gmra.mrb[0].mxu0 %v243
  %v467 = vpop.f32.mrb[0].mxu0
  %v468 = vadd.f32 %v284, %v467
  %v469 = vpop.f32.mrb[0].mxu0
  %470 = vmatprep.mubr.f32.mxu0 %v246
  %471 = vmatmul.mubr.f32.gmra.mrb[0].mxu0 %v245
  %v472 = vpop.f32.mrb[0].mxu0
  %v473 = vadd.f32 %v284, %v472
  %v474 = vpop.f32.mrb[0].mxu0
  %475 = vdwg.mxu0
  %vm476 = vcmask 523264
  %477 = vst.msk [vmem:[%s5] sm:$0xff] %vm476, %v353
  %478 = vst.msk [vmem:[%s5 + $0x8] sm:$0xff] %vm476, %v358
  %479 = vst.msk [vmem:[%s5 + $0x10] sm:$0xff] %vm476, %v363
  %480 = vst.msk [vmem:[%s5 + $0x18] sm:$0xff] %vm476, %v368
  %481 = vst.msk [vmem:[%s5 + $0x20] sm:$0xff] %vm476, %v373
  %482 = vst.msk [vmem:[%s5 + $0x28] sm:$0xff] %vm476, %v378
  %483 = vst.msk [vmem:[%s5 + $0x30] sm:$0xff] %vm476, %v383
  %484 = vst.msk [vmem:[%s5 + $0x38] sm:$0xff] %vm476, %v388
  %485 = vst.msk [vmem:[%s5 + $0x40] sm:$0xff] %vm476, %v393
  %486 = vst.msk [vmem:[%s5 + $0x48] sm:$0xff] %vm476, %v398
  %487 = vst.msk [vmem:[%s5 + $0x50] sm:$0xff] %vm476, %v403
  %488 = vst.msk [vmem:[%s5 + $0x58] sm:$0xff] %vm476, %v408
  %489 = vst.msk [vmem:[%s5 + $0x60] sm:$0xff] %vm476, %v413
  %490 = vst.msk [vmem:[%s5 + $0x68] sm:$0xff] %vm476, %v418
  %491 = vst.msk [vmem:[%s5 + $0x70] sm:$0xff] %vm476, %v423
  %492 = vst.msk [vmem:[%s5 + $0x78] sm:$0xff] %vm476, %v428
  %493 = vst.msk [vmem:[%s5 + $0x80] sm:$0xff] %vm476, %v433
  %494 = vst.msk [vmem:[%s5 + $0x88] sm:$0xff] %vm476, %v438
  %495 = vst.msk [vmem:[%s5 + $0x90] sm:$0xff] %vm476, %v443
  %496 = vst.msk [vmem:[%s5 + $0x98] sm:$0xff] %vm476, %v448
  %497 = vst.msk [vmem:[%s5 + $0xa0] sm:$0xff] %vm476, %v453
  %498 = vst.msk [vmem:[%s5 + $0xa8] sm:$0xff] %vm476, %v458
  %499 = vst.msk [vmem:[%s5 + $0xb0] sm:$0xff] %vm476, %v463
  %500 = vst.msk [vmem:[%s5 + $0xb8] sm:$0xff] %vm476, %v468
  %501 = vst.msk [vmem:[%s5 + $0xc0] sm:$0xff] %vm476, %v473
  %s502 = smul.u32 0, 200
  %v503 = vlaneseq
  %v504 = vshrl.u32 %v503, 7
  %v505 = vadd.s32 %v504, 8
  %v506 = vadd.s32 %v504, 16
  %v507 = vadd.s32 %v504, 24
  %v508 = vadd.s32 %v504, 32
  %v509 = vadd.s32 %v504, 40
  %v510 = vadd.s32 %v504, 48
  %v511 = vadd.s32 %v504, 56
  %v512 = vadd.s32 %v504, 64
  %v513 = vadd.s32 %v504, 72
  %v514 = vadd.s32 %v504, 80
  %v515 = vadd.s32 %v504, 88
  %v516 = vadd.s32 %v504, 96
  %v517 = vadd.s32 %v504, 104
  %v518 = vadd.s32 %v504, 112
  %v519 = vadd.s32 %v504, 120
  %v520 = vadd.s32 %v504, 128
  %v521 = vadd.s32 %v504, 136
  %v522 = vadd.s32 %v504, 144
  %v523 = vadd.s32 %v504, 152
  %v524 = vadd.s32 %v504, 160
  %v525 = vadd.s32 %v504, 168
  %v526 = vadd.s32 %v504, 176
  %v527 = vadd.s32 %v504, 184
  %v528 = vadd.s32 %v504, 192
  %v529 = vstv %s502
  %v530 = vadd.s32 %v529, %v504
  %v531 = vadd.s32 %v529, %v505
  %v532 = vadd.s32 %v529, %v506
  %v533 = vadd.s32 %v529, %v507
  %v534 = vadd.s32 %v529, %v508
  %v535 = vadd.s32 %v529, %v509
  %v536 = vadd.s32 %v529, %v510
  %v537 = vadd.s32 %v529, %v511
  %v538 = vadd.s32 %v529, %v512
  %v539 = vadd.s32 %v529, %v513
  %v540 = vadd.s32 %v529, %v514
  %v541 = vadd.s32 %v529, %v515
  %v542 = vadd.s32 %v529, %v516
  %v543 = vadd.s32 %v529, %v517
  %v544 = vadd.s32 %v529, %v518
  %v545 = vadd.s32 %v529, %v519
  %v546 = vadd.s32 %v529, %v520
  %v547 = vadd.s32 %v529, %v521
  %v548 = vadd.s32 %v529, %v522
  %v549 = vadd.s32 %v529, %v523
  %v550 = vadd.s32 %v529, %v524
  %v551 = vadd.s32 %v529, %v525
  %v552 = vadd.s32 %v529, %v526
  %v553 = vadd.s32 %v529, %v527
  %v554 = vadd.s32 %v529, %v528
  %vm555 = vcmp.lt.s32.totalorder %v530, 196
  %vm556 = vcmp.lt.s32.totalorder %v531, 196
  %vm557 = vcmp.lt.s32.totalorder %v532, 196
  %vm558 = vcmp.lt.s32.totalorder %v533, 196
  %vm559 = vcmp.lt.s32.totalorder %v534, 196
  %vm560 = vcmp.lt.s32.totalorder %v535, 196
  %vm561 = vcmp.lt.s32.totalorder %v536, 196
  %vm562 = vcmp.lt.s32.totalorder %v537, 196
  %vm563 = vcmp.lt.s32.totalorder %v538, 196
  %vm564 = vcmp.lt.s32.totalorder %v539, 196
  %vm565 = vcmp.lt.s32.totalorder %v540, 196
  %vm566 = vcmp.lt.s32.totalorder %v541, 196
  %vm567 = vcmp.lt.s32.totalorder %v542, 196
  %vm568 = vcmp.lt.s32.totalorder %v543, 196
  %vm569 = vcmp.lt.s32.totalorder %v544, 196
  %vm570 = vcmp.lt.s32.totalorder %v545, 196
  %vm571 = vcmp.lt.s32.totalorder %v546, 196
  %vm572 = vcmp.lt.s32.totalorder %v547, 196
  %vm573 = vcmp.lt.s32.totalorder %v548, 196
  %vm574 = vcmp.lt.s32.totalorder %v549, 196
  %vm575 = vcmp.lt.s32.totalorder %v550, 196
  %vm576 = vcmp.lt.s32.totalorder %v551, 196
  %vm577 = vcmp.lt.s32.totalorder %v552, 196
  %vm578 = vcmp.lt.s32.totalorder %v553, 196
  %vm579 = vcmp.lt.s32.totalorder %v554, 196
  %v580 = vsel %vm555, 1, 0
  %v581 = vsel %vm556, 1, 0
  %v582 = vsel %vm557, 1, 0
  %v583 = vsel %vm558, 1, 0
  %v584 = vsel %vm559, 1, 0
  %v585 = vsel %vm560, 1, 0
  %v586 = vsel %vm561, 1, 0
  %v587 = vsel %vm562, 1, 0
  %v588 = vsel %vm563, 1, 0
  %v589 = vsel %vm564, 1, 0
  %v590 = vsel %vm565, 1, 0
  %v591 = vsel %vm566, 1, 0
  %v592 = vsel %vm567, 1, 0
  %v593 = vsel %vm568, 1, 0
  %v594 = vsel %vm569, 1, 0
  %v595 = vsel %vm570, 1, 0
  %v596 = vsel %vm571, 1, 0
  %v597 = vsel %vm572, 1, 0
  %v598 = vsel %vm573, 1, 0
  %v599 = vsel %vm574, 1, 0
  %v600 = vsel %vm575, 1, 0
  %v601 = vsel %vm576, 1, 0
  %v602 = vsel %vm577, 1, 0
  %v603 = vsel %vm578, 1, 0
  %v604 = vsel %vm579, 1, 0
  %vm605 = vcmp.eq.s32.totalorder %v580, 1
  %vm606 = vcmp.eq.s32.totalorder %v581, 1
  %vm607 = vcmp.eq.s32.totalorder %v582, 1
  %vm608 = vcmp.eq.s32.totalorder %v583, 1
  %vm609 = vcmp.eq.s32.totalorder %v584, 1
  %vm610 = vcmp.eq.s32.totalorder %v585, 1
  %vm611 = vcmp.eq.s32.totalorder %v586, 1
  %vm612 = vcmp.eq.s32.totalorder %v587, 1
  %vm613 = vcmp.eq.s32.totalorder %v588, 1
  %vm614 = vcmp.eq.s32.totalorder %v589, 1
  %vm615 = vcmp.eq.s32.totalorder %v590, 1
  %vm616 = vcmp.eq.s32.totalorder %v591, 1
  %vm617 = vcmp.eq.s32.totalorder %v592, 1
  %vm618 = vcmp.eq.s32.totalorder %v593, 1
  %vm619 = vcmp.eq.s32.totalorder %v594, 1
  %vm620 = vcmp.eq.s32.totalorder %v595, 1
  %vm621 = vcmp.eq.s32.totalorder %v596, 1
  %vm622 = vcmp.eq.s32.totalorder %v597, 1
  %vm623 = vcmp.eq.s32.totalorder %v598, 1
  %vm624 = vcmp.eq.s32.totalorder %v599, 1
  %vm625 = vcmp.eq.s32.totalorder %v600, 1
  %vm626 = vcmp.eq.s32.totalorder %v601, 1
  %vm627 = vcmp.eq.s32.totalorder %v602, 1
  %vm628 = vcmp.eq.s32.totalorder %v603, 1
  %vm629 = vcmp.eq.s32.totalorder %v604, 1
  %v630 = vsel %vm605, %v353, 0.0
  %v631 = vsel %vm606, %v358, 0.0
  %v632 = vsel %vm607, %v363, 0.0
  %v633 = vsel %vm608, %v368, 0.0
  %v634 = vsel %vm609, %v373, 0.0
  %v635 = vsel %vm610, %v378, 0.0
  %v636 = vsel %vm611, %v383, 0.0
  %v637 = vsel %vm612, %v388, 0.0
  %v638 = vsel %vm613, %v393, 0.0
  %v639 = vsel %vm614, %v398, 0.0
  %v640 = vsel %vm615, %v403, 0.0
  %v641 = vsel %vm616, %v408, 0.0
  %v642 = vsel %vm617, %v413, 0.0
  %v643 = vsel %vm618, %v418, 0.0
  %v644 = vsel %vm619, %v423, 0.0
  %v645 = vsel %vm620, %v428, 0.0
  %v646 = vsel %vm621, %v433, 0.0
  %v647 = vsel %vm622, %v438, 0.0
  %v648 = vsel %vm623, %v443, 0.0
  %v649 = vsel %vm624, %v448, 0.0
  %v650 = vsel %vm625, %v453, 0.0
  %v651 = vsel %vm626, %v458, 0.0
  %v652 = vsel %vm627, %v463, 0.0
  %v653 = vsel %vm628, %v468, 0.0
  %v654 = vsel %vm629, %v473, 0.0
  %v655 = vsel %vm476, %v630, 0.0
  %v656 = vsel %vm476, %v631, 0.0
  %v657 = vadd.f32 %v655, %v656
  %v658 = vsel %vm476, %v632, 0.0
  %v659 = vadd.f32 %v657, %v658
  %v660 = vsel %vm476, %v633, 0.0
  %v661 = vadd.f32 %v659, %v660
  %v662 = vsel %vm476, %v634, 0.0
  %v663 = vadd.f32 %v661, %v662
  %v664 = vsel %vm476, %v635, 0.0
  %v665 = vadd.f32 %v663, %v664
  %v666 = vsel %vm476, %v636, 0.0
  %v667 = vadd.f32 %v665, %v666
  %v668 = vsel %vm476, %v637, 0.0
  %v669 = vadd.f32 %v667, %v668
  %v670 = vsel %vm476, %v638, 0.0
  %v671 = vadd.f32 %v669, %v670
  %v672 = vsel %vm476, %v639, 0.0
  %v673 = vadd.f32 %v671, %v672
  %v674 = vsel %vm476, %v640, 0.0
  %v675 = vadd.f32 %v673, %v674
  %v676 = vsel %vm476, %v641, 0.0
  %v677 = vadd.f32 %v675, %v676
  %v678 = vsel %vm476, %v642, 0.0
  %v679 = vadd.f32 %v677, %v678
  %v680 = vsel %vm476, %v643, 0.0
  %v681 = vadd.f32 %v679, %v680
  %v682 = vsel %vm476, %v644, 0.0
  %v683 = vadd.f32 %v681, %v682
  %v684 = vsel %vm476, %v645, 0.0
  %v685 = vadd.f32 %v683, %v684
  %v686 = vsel %vm476, %v646, 0.0
  %v687 = vadd.f32 %v685, %v686
  %v688 = vsel %vm476, %v647, 0.0
  %v689 = vadd.f32 %v687, %v688
  %v690 = vsel %vm476, %v648, 0.0
  %v691 = vadd.f32 %v689, %v690
  %v692 = vsel %vm476, %v649, 0.0
  %v693 = vadd.f32 %v691, %v692
  %v694 = vsel %vm476, %v650, 0.0
  %v695 = vadd.f32 %v693, %v694
  %v696 = vsel %vm476, %v651, 0.0
  %v697 = vadd.f32 %v695, %v696
  %v698 = vsel %vm476, %v652, 0.0
  %v699 = vadd.f32 %v697, %v698
  %v700 = vsel %vm476, %v653, 0.0
  %v701 = vadd.f32 %v699, %v700
  %v702 = vsel %vm476, %v654, 0.0
  %v703 = vadd.f32 %v701, %v702
  %v704 = vrot.slane %v703, 4
  %v705 = vadd.f32 %v703, %v704
  %v706 = vrot.slane %v705, 2
  %v707 = vadd.f32 %v705, %v706
  %v708 = vrot.slane %v707, 1
  %v709 = vadd.f32 %v707, %v708
  %vm710 = vcmask 516096
  %711 = vst.msk [vmem:[%s6] sm:$0x1] %vm710, %v709
  %v712 = vmul.f32 %v630, %v630
  %v713 = vmul.f32 %v631, %v631
  %v714 = vmul.f32 %v632, %v632
  %v715 = vmul.f32 %v633, %v633
  %v716 = vmul.f32 %v634, %v634
  %v717 = vmul.f32 %v635, %v635
  %v718 = vmul.f32 %v636, %v636
  %v719 = vmul.f32 %v637, %v637
  %v720 = vmul.f32 %v638, %v638
  %v721 = vmul.f32 %v639, %v639
  %v722 = vmul.f32 %v640, %v640
  %v723 = vmul.f32 %v641, %v641
  %v724 = vmul.f32 %v642, %v642
  %v725 = vmul.f32 %v643, %v643
  %v726 = vmul.f32 %v644, %v644
  %v727 = vmul.f32 %v645, %v645
  %v728 = vmul.f32 %v646, %v646
  %v729 = vmul.f32 %v647, %v647
  %v730 = vmul.f32 %v648, %v648
  %v731 = vmul.f32 %v649, %v649
  %v732 = vmul.f32 %v650, %v650
  %v733 = vmul.f32 %v651, %v651
  %v734 = vmul.f32 %v652, %v652
  %v735 = vmul.f32 %v653, %v653
  %v736 = vmul.f32 %v654, %v654
  %v737 = vsel %vm476, %v712, 0.0
  %v738 = vsel %vm476, %v713, 0.0
  %v739 = vadd.f32 %v737, %v738
  %v740 = vsel %vm476, %v714, 0.0
  %v741 = vadd.f32 %v739, %v740
  %v742 = vsel %vm476, %v715, 0.0
  %v743 = vadd.f32 %v741, %v742
  %v744 = vsel %vm476, %v716, 0.0
  %v745 = vadd.f32 %v743, %v744
  %v746 = vsel %vm476, %v717, 0.0
  %v747 = vadd.f32 %v745, %v746
  %v748 = vsel %vm476, %v718, 0.0
  %v749 = vadd.f32 %v747, %v748
  %v750 = vsel %vm476, %v719, 0.0
  %v751 = vadd.f32 %v749, %v750
  %v752 = vsel %vm476, %v720, 0.0
  %v753 = vadd.f32 %v751, %v752
  %v754 = vsel %vm476, %v721, 0.0
  %v755 = vadd.f32 %v753, %v754
  %v756 = vsel %vm476, %v722, 0.0
  %v757 = vadd.f32 %v755, %v756
  %v758 = vsel %vm476, %v723, 0.0
  %v759 = vadd.f32 %v757, %v758
  %v760 = vsel %vm476, %v724, 0.0
  %v761 = vadd.f32 %v759, %v760
  %v762 = vsel %vm476, %v725, 0.0
  %v763 = vadd.f32 %v761, %v762
  %v764 = vsel %vm476, %v726, 0.0
  %v765 = vadd.f32 %v763, %v764
  %v766 = vsel %vm476, %v727, 0.0
  %v767 = vadd.f32 %v765, %v766
  %v768 = vsel %vm476, %v728, 0.0
  %v769 = vadd.f32 %v767, %v768
  %v770 = vsel %vm476, %v729, 0.0
  %v771 = vadd.f32 %v769, %v770
  %v772 = vsel %vm476, %v730, 0.0
  %v773 = vadd.f32 %v771, %v772
  %v774 = vsel %vm476, %v731, 0.0
  %v775 = vadd.f32 %v773, %v774
  %v776 = vsel %vm476, %v732, 0.0
  %v777 = vadd.f32 %v775, %v776
  %v778 = vsel %vm476, %v733, 0.0
  %v779 = vadd.f32 %v777, %v778
  %v780 = vsel %vm476, %v734, 0.0
  %v781 = vadd.f32 %v779, %v780
  %v782 = vsel %vm476, %v735, 0.0
  %v783 = vadd.f32 %v781, %v782
  %v784 = vsel %vm476, %v736, 0.0
  %v785 = vadd.f32 %v783, %v784
  %v786 = vrot.slane %v785, 4
  %v787 = vadd.f32 %v785, %v786
  %v788 = vrot.slane %v787, 2
  %v789 = vadd.f32 %v787, %v788
  %v790 = vrot.slane %v789, 1
  %v791 = vadd.f32 %v789, %v790
  %792 = vst.msk [vmem:[%s7] sm:$0x1] %vm710, %v791
  // Predicated region
  $region22: #{forward.5} parent=0 // pred_check
    _
  $region23: #{forward.5} parent=0 // pred_check_branch
    %794 = sbr.rel (0) target = $region25
  $region24: #{forward.5} parent=0 // pred_region
    _
  $region25: #{forward.5} parent=0 // pred_fallthru
    _
  // Predicated region
  $region26: #{forward.5} parent=0 // pred_check
    _
  $region27: #{forward.5} parent=0 // pred_check_branch
    %796 = sbr.rel (0) target = $region29
  $region28: #{forward.5} parent=0 // pred_region
    _
  $region29: #{forward.5} parent=0 // pred_fallthru
    _
  // Predicated region
  $region30: #{forward.5} parent=0 // pred_check
    _
  $region31: #{forward.5} parent=0 // pred_check_branch
    %798 = sbr.rel (0) target = $region33
  $region32: #{forward.5} parent=0 // pred_region
    _
  $region33: #{forward.5} parent=0 // pred_fallthru
    _
  // Predicated region
  $region34: #{forward.5} parent=0 // pred_check
    _
  $region35: #{forward.5} parent=0 // pred_check_branch
    %800 = sbr.rel (0) target = $region37
  $region36: #{forward.5} parent=0 // pred_region
    _
  $region37: #{forward.5} parent=0 // pred_fallthru
    _
  // Predicated region
  $region38: #{forward.5} parent=0 // pred_check
    _
  $region39: #{forward.5} parent=0 // pred_check_branch
    %802 = sbr.rel (0) target = $region41
  $region40: #{forward.5} parent=0 // pred_region
    _
  $region41: #{forward.5} parent=0 // pred_fallthru
    _
  // Predicated region
  $region42: #{forward.5} parent=0 // pred_check
    _
  $region43: #{forward.5} parent=0 // pred_check_branch
    %804 = sbr.rel (0) target = $region45
  $region44: #{forward.5} parent=0 // pred_region
    _
  $region45: #{forward.5} parent=0 // pred_fallthru
    _

// kernel: forward.4
$region0: #{forward.4}
  #allocation0 [shape = 'u32[]', space=smem, size = 0x4, offset = 0x4, fixed_abs, tag = 'smem constant byte address 0x4 - core index']
  #allocation1 [shape = 'u32[144,128]{1,0:T(1,128)}', space=vmem, size = 0x12000, scoped, tag = 'internal scratch']
  %s0 = inlined_call_operand.vmem [shape: f32[200,512], index: 0, kind: input, shape index: {}]
  %s1 = inlined_call_operand.vmem [shape: f32[512,256], index: 1, kind: input, shape index: {}]
  %s2 = inlined_call_operand.vmem [shape: f32[1,256], index: 2, kind: input, shape index: {}]
  %s3 = inlined_call_operand.vmem [shape: f32[200,256], index: 3, kind: output, shape index: {0}]
  %s4 = inlined_call_operand.vmem [shape: f32[1,1,256], index: 4, kind: output, shape index: {1}]
  %s5 = inlined_call_operand.vmem [shape: f32[1,1,256], index: 5, kind: output, shape index: {2}]
  %6 = xla_tuple %s3, %s4, %s5
  %s7 = sld [smem:[#allocation0]]
  $region38: #{forward.4} parent=0
    _
  %s9 = ssub.s32 1, %s7
  %s10 = scalar_select 0, %s9, %s7
  // Predicated region
  $region2: #{forward.4} parent=0 // pred_check
    _
  $region3: #{forward.4} parent=0 // pred_check_branch
    %12 = sbr.rel (0) target = $region5
  $region4: #{forward.4} parent=0 // pred_region
    _
  $region5: #{forward.4} parent=0 // pred_fallthru
    _
  // Predicated region
  $region6: #{forward.4} parent=0 // pred_check
    _
  $region7: #{forward.4} parent=0 // pred_check_branch
    %14 = sbr.rel (0) target = $region9
  $region8: #{forward.4} parent=0 // pred_region
    _
  $region9: #{forward.4} parent=0 // pred_fallthru
    _
  // Predicated region
  $region10: #{forward.4} parent=0 // pred_check
    _
  $region11: #{forward.4} parent=0 // pred_check_branch
    %16 = sbr.rel (0) target = $region13
  $region12: #{forward.4} parent=0 // pred_region
    _
  $region13: #{forward.4} parent=0 // pred_fallthru
    _
  %v17 = vld [vmem:[%s0] sm:$0xff]
  %v18 = vld [vmem:[%s0 + $0x8] sm:$0xff]
  %v19 = vld [vmem:[%s0 + $0x10] sm:$0xff]
  %v20 = vld [vmem:[%s0 + $0x18] sm:$0xff]
  %v21 = vld [vmem:[%s0 + $0x20] sm:$0xff]
  %v22 = vld [vmem:[%s0 + $0x28] sm:$0xff]
  %v23 = vld [vmem:[%s0 + $0x30] sm:$0xff]
  %v24 = vld [vmem:[%s0 + $0x38] sm:$0xff]
  %v25 = vld [vmem:[%s0 + $0x40] sm:$0xff]
  %v26 = vld [vmem:[%s0 + $0x48] sm:$0xff]
  %v27 = vld [vmem:[%s0 + $0x50] sm:$0xff]
  %v28 = vld [vmem:[%s0 + $0x58] sm:$0xff]
  %v29 = vld [vmem:[%s0 + $0x60] sm:$0xff]
  %v30 = vld [vmem:[%s0 + $0x68] sm:$0xff]
  %v31 = vld [vmem:[%s0 + $0x70] sm:$0xff]
  %v32 = vld [vmem:[%s0 + $0x78] sm:$0xff]
  %v33 = vld [vmem:[%s0 + $0x80] sm:$0xff]
  %v34 = vld [vmem:[%s0 + $0x88] sm:$0xff]
  %v35 = vld [vmem:[%s0 + $0x90] sm:$0xff]
  %v36 = vld [vmem:[%s0 + $0x98] sm:$0xff]
  %v37 = vld [vmem:[%s0 + $0xa0] sm:$0xff]
  %v38 = vld [vmem:[%s0 + $0xa8] sm:$0xff]
  %v39 = vld [vmem:[%s0 + $0xb0] sm:$0xff]
  %v40 = vld [vmem:[%s0 + $0xb8] sm:$0xff]
  %v41 = vld [vmem:[%s0 + $0xc0] sm:$0xff]
  %v42 = vld [vmem:[%s0 + $0xc8] sm:$0xff]
  %v43 = vld [vmem:[%s0 + $0xd0] sm:$0xff]
  %v44 = vld [vmem:[%s0 + $0xd8] sm:$0xff]
  %v45 = vld [vmem:[%s0 + $0xe0] sm:$0xff]
  %v46 = vld [vmem:[%s0 + $0xe8] sm:$0xff]
  %v47 = vld [vmem:[%s0 + $0xf0] sm:$0xff]
  %v48 = vld [vmem:[%s0 + $0xf8] sm:$0xff]
  %v49 = vld [vmem:[%s0 + $0x100] sm:$0xff]
  %v50 = vld [vmem:[%s0 + $0x108] sm:$0xff]
  %v51 = vld [vmem:[%s0 + $0x110] sm:$0xff]
  %v52 = vld [vmem:[%s0 + $0x118] sm:$0xff]
  %v53 = vld [vmem:[%s0 + $0x120] sm:$0xff]
  %v54 = vld [vmem:[%s0 + $0x128] sm:$0xff]
  %v55 = vld [vmem:[%s0 + $0x130] sm:$0xff]
  %v56 = vld [vmem:[%s0 + $0x138] sm:$0xff]
  %v57 = vld [vmem:[%s0 + $0x140] sm:$0xff]
  %v58 = vld [vmem:[%s0 + $0x148] sm:$0xff]
  %v59 = vld [vmem:[%s0 + $0x150] sm:$0xff]
  %v60 = vld [vmem:[%s0 + $0x158] sm:$0xff]
  %v61 = vld [vmem:[%s0 + $0x160] sm:$0xff]
  %v62 = vld [vmem:[%s0 + $0x168] sm:$0xff]
  %v63 = vld [vmem:[%s0 + $0x170] sm:$0xff]
  %v64 = vld [vmem:[%s0 + $0x178] sm:$0xff]
  %v65 = vld [vmem:[%s0 + $0x180] sm:$0xff]
  %v66 = vld [vmem:[%s0 + $0x188] sm:$0xff]
  %v67 = vld [vmem:[%s0 + $0x190] sm:$0xff]
  %v68 = vld [vmem:[%s0 + $0x198] sm:$0xff]
  %v69 = vld [vmem:[%s0 + $0x1a0] sm:$0xff]
  %v70 = vld [vmem:[%s0 + $0x1a8] sm:$0xff]
  %v71 = vld [vmem:[%s0 + $0x1b0] sm:$0xff]
  %v72 = vld [vmem:[%s0 + $0x1b8] sm:$0xff]
  %v73 = vld [vmem:[%s0 + $0x1c0] sm:$0xff]
  %v74 = vld [vmem:[%s0 + $0x1c8] sm:$0xff]
  %v75 = vld [vmem:[%s0 + $0x1d0] sm:$0xff]
  %v76 = vld [vmem:[%s0 + $0x1d8] sm:$0xff]
  %v77 = vld [vmem:[%s0 + $0x1e0] sm:$0xff]
  %v78 = vld [vmem:[%s0 + $0x1e8] sm:$0xff]
  %v79 = vld [vmem:[%s0 + $0x1f0] sm:$0xff]
  %v80 = vld [vmem:[%s0 + $0x1f8] sm:$0xff]
  %v81 = vld [vmem:[%s0 + $0x200] sm:$0xff]
  %v82 = vld [vmem:[%s0 + $0x208] sm:$0xff]
  %v83 = vld [vmem:[%s0 + $0x210] sm:$0xff]
  %v84 = vld [vmem:[%s0 + $0x218] sm:$0xff]
  %v85 = vld [vmem:[%s0 + $0x220] sm:$0xff]
  %v86 = vld [vmem:[%s0 + $0x228] sm:$0xff]
  %v87 = vld [vmem:[%s0 + $0x230] sm:$0xff]
  %v88 = vld [vmem:[%s0 + $0x238] sm:$0xff]
  %v89 = vld [vmem:[%s0 + $0x240] sm:$0xff]
  %v90 = vld [vmem:[%s0 + $0x248] sm:$0xff]
  %v91 = vld [vmem:[%s0 + $0x250] sm:$0xff]
  %v92 = vld [vmem:[%s0 + $0x258] sm:$0xff]
  %v93 = vld [vmem:[%s0 + $0x260] sm:$0xff]
  %v94 = vld [vmem:[%s0 + $0x268] sm:$0xff]
  %v95 = vld [vmem:[%s0 + $0x270] sm:$0xff]
  %v96 = vld [vmem:[%s0 + $0x278] sm:$0xff]
  %v97 = vld [vmem:[%s0 + $0x280] sm:$0xff]
  %v98 = vld [vmem:[%s0 + $0x288] sm:$0xff]
  %v99 = vld [vmem:[%s0 + $0x290] sm:$0xff]
  %v100 = vld [vmem:[%s0 + $0x298] sm:$0xff]
  %v101 = vld [vmem:[%s0 + $0x2a0] sm:$0xff]
  %v102 = vld [vmem:[%s0 + $0x2a8] sm:$0xff]
  %v103 = vld [vmem:[%s0 + $0x2b0] sm:$0xff]
  %v104 = vld [vmem:[%s0 + $0x2b8] sm:$0xff]
  %v105 = vld [vmem:[%s0 + $0x2c0] sm:$0xff]
  %v106 = vld [vmem:[%s0 + $0x2c8] sm:$0xff]
  %v107 = vld [vmem:[%s0 + $0x2d0] sm:$0xff]
  %v108 = vld [vmem:[%s0 + $0x2d8] sm:$0xff]
  %v109 = vld [vmem:[%s0 + $0x2e0] sm:$0xff]
  %v110 = vld [vmem:[%s0 + $0x2e8] sm:$0xff]
  %v111 = vld [vmem:[%s0 + $0x2f0] sm:$0xff]
  %v112 = vld [vmem:[%s0 + $0x2f8] sm:$0xff]
  %v113 = vld [vmem:[%s0 + $0x300] sm:$0xff]
  %v114 = vld [vmem:[%s0 + $0x308] sm:$0xff]
  %v115 = vld [vmem:[%s0 + $0x310] sm:$0xff]
  %v116 = vld [vmem:[%s0 + $0x318] sm:$0xff]
  %v117 = vld [vmem:[%s1] sm:$0xff]
  %v118 = vld [vmem:[%s1 + $0x8] sm:$0xff]
  %v119 = vld [vmem:[%s1 + $0x10] sm:$0xff]
  %v120 = vld [vmem:[%s1 + $0x18] sm:$0xff]
  %v121 = vld [vmem:[%s1 + $0x20] sm:$0xff]
  %v122 = vld [vmem:[%s1 + $0x28] sm:$0xff]
  %v123 = vld [vmem:[%s1 + $0x30] sm:$0xff]
  %v124 = vld [vmem:[%s1 + $0x38] sm:$0xff]
  %v125 = vld [vmem:[%s1 + $0x40] sm:$0xff]
  %v126 = vld [vmem:[%s1 + $0x48] sm:$0xff]
  %v127 = vld [vmem:[%s1 + $0x50] sm:$0xff]
  %v128 = vld [vmem:[%s1 + $0x58] sm:$0xff]
  %v129 = vld [vmem:[%s1 + $0x60] sm:$0xff]
  %v130 = vld [vmem:[%s1 + $0x68] sm:$0xff]
  %v131 = vld [vmem:[%s1 + $0x70] sm:$0xff]
  %v132 = vld [vmem:[%s1 + $0x78] sm:$0xff]
  %v133 = vld [vmem:[%s1 + $0x80] sm:$0xff]
  %v134 = vld [vmem:[%s1 + $0x88] sm:$0xff]
  %v135 = vld [vmem:[%s1 + $0x90] sm:$0xff]
  %v136 = vld [vmem:[%s1 + $0x98] sm:$0xff]
  %v137 = vld [vmem:[%s1 + $0xa0] sm:$0xff]
  %v138 = vld [vmem:[%s1 + $0xa8] sm:$0xff]
  %v139 = vld [vmem:[%s1 + $0xb0] sm:$0xff]
  %v140 = vld [vmem:[%s1 + $0xb8] sm:$0xff]
  %v141 = vld [vmem:[%s1 + $0xc0] sm:$0xff]
  %v142 = vld [vmem:[%s1 + $0xc8] sm:$0xff]
  %v143 = vld [vmem:[%s1 + $0xd0] sm:$0xff]
  %v144 = vld [vmem:[%s1 + $0xd8] sm:$0xff]
  %v145 = vld [vmem:[%s1 + $0xe0] sm:$0xff]
  %v146 = vld [vmem:[%s1 + $0xe8] sm:$0xff]
  %v147 = vld [vmem:[%s1 + $0xf0] sm:$0xff]
  %v148 = vld [vmem:[%s1 + $0xf8] sm:$0xff]
  %v149 = vld [vmem:[%s1 + $0x100] sm:$0xff]
  %v150 = vld [vmem:[%s1 + $0x108] sm:$0xff]
  %v151 = vld [vmem:[%s1 + $0x110] sm:$0xff]
  %v152 = vld [vmem:[%s1 + $0x118] sm:$0xff]
  %v153 = vld [vmem:[%s1 + $0x120] sm:$0xff]
  %v154 = vld [vmem:[%s1 + $0x128] sm:$0xff]
  %v155 = vld [vmem:[%s1 + $0x130] sm:$0xff]
  %v156 = vld [vmem:[%s1 + $0x138] sm:$0xff]
  %v157 = vld [vmem:[%s1 + $0x140] sm:$0xff]
  %v158 = vld [vmem:[%s1 + $0x148] sm:$0xff]
  %v159 = vld [vmem:[%s1 + $0x150] sm:$0xff]
  %v160 = vld [vmem:[%s1 + $0x158] sm:$0xff]
  %v161 = vld [vmem:[%s1 + $0x160] sm:$0xff]
  %v162 = vld [vmem:[%s1 + $0x168] sm:$0xff]
  %v163 = vld [vmem:[%s1 + $0x170] sm:$0xff]
  %v164 = vld [vmem:[%s1 + $0x178] sm:$0xff]
  %v165 = vld [vmem:[%s1 + $0x180] sm:$0xff]
  %v166 = vld [vmem:[%s1 + $0x188] sm:$0xff]
  %v167 = vld [vmem:[%s1 + $0x190] sm:$0xff]
  %v168 = vld [vmem:[%s1 + $0x198] sm:$0xff]
  %v169 = vld [vmem:[%s1 + $0x1a0] sm:$0xff]
  %v170 = vld [vmem:[%s1 + $0x1a8] sm:$0xff]
  %v171 = vld [vmem:[%s1 + $0x1b0] sm:$0xff]
  %v172 = vld [vmem:[%s1 + $0x1b8] sm:$0xff]
  %v173 = vld [vmem:[%s1 + $0x1c0] sm:$0xff]
  %v174 = vld [vmem:[%s1 + $0x1c8] sm:$0xff]
  %v175 = vld [vmem:[%s1 + $0x1d0] sm:$0xff]
  %v176 = vld [vmem:[%s1 + $0x1d8] sm:$0xff]
  %v177 = vld [vmem:[%s1 + $0x1e0] sm:$0xff]
  %v178 = vld [vmem:[%s1 + $0x1e8] sm:$0xff]
  %v179 = vld [vmem:[%s1 + $0x1f0] sm:$0xff]
  %v180 = vld [vmem:[%s1 + $0x1f8] sm:$0xff]
  %v181 = vld [vmem:[%s1 + $0x200] sm:$0xff]
  %v182 = vld [vmem:[%s1 + $0x208] sm:$0xff]
  %v183 = vld [vmem:[%s1 + $0x210] sm:$0xff]
  %v184 = vld [vmem:[%s1 + $0x218] sm:$0xff]
  %v185 = vld [vmem:[%s1 + $0x220] sm:$0xff]
  %v186 = vld [vmem:[%s1 + $0x228] sm:$0xff]
  %v187 = vld [vmem:[%s1 + $0x230] sm:$0xff]
  %v188 = vld [vmem:[%s1 + $0x238] sm:$0xff]
  %v189 = vld [vmem:[%s1 + $0x240] sm:$0xff]
  %v190 = vld [vmem:[%s1 + $0x248] sm:$0xff]
  %v191 = vld [vmem:[%s1 + $0x250] sm:$0xff]
  %v192 = vld [vmem:[%s1 + $0x258] sm:$0xff]
  %v193 = vld [vmem:[%s1 + $0x260] sm:$0xff]
  %v194 = vld [vmem:[%s1 + $0x268] sm:$0xff]
  %v195 = vld [vmem:[%s1 + $0x270] sm:$0xff]
  %v196 = vld [vmem:[%s1 + $0x278] sm:$0xff]
  %v197 = vld [vmem:[%s1 + $0x280] sm:$0xff]
  %v198 = vld [vmem:[%s1 + $0x288] sm:$0xff]
  %v199 = vld [vmem:[%s1 + $0x290] sm:$0xff]
  %v200 = vld [vmem:[%s1 + $0x298] sm:$0xff]
  %v201 = vld [vmem:[%s1 + $0x2a0] sm:$0xff]
  %v202 = vld [vmem:[%s1 + $0x2a8] sm:$0xff]
  %v203 = vld [vmem:[%s1 + $0x2b0] sm:$0xff]
  %v204 = vld [vmem:[%s1 + $0x2b8] sm:$0xff]
  %v205 = vld [vmem:[%s1 + $0x2c0] sm:$0xff]
  %v206 = vld [vmem:[%s1 + $0x2c8] sm:$0xff]
  %v207 = vld [vmem:[%s1 + $0x2d0] sm:$0xff]
  %v208 = vld [vmem:[%s1 + $0x2d8] sm:$0xff]
  %v209 = vld [vmem:[%s1 + $0x2e0] sm:$0xff]
  %v210 = vld [vmem:[%s1 + $0x2e8] sm:$0xff]
  %v211 = vld [vmem:[%s1 + $0x2f0] sm:$0xff]
  %v212 = vld [vmem:[%s1 + $0x2f8] sm:$0xff]
  %v213 = vld [vmem:[%s1 + $0x300] sm:$0xff]
  %v214 = vld [vmem:[%s1 + $0x308] sm:$0xff]
  %v215 = vld [vmem:[%s1 + $0x310] sm:$0xff]
  %v216 = vld [vmem:[%s1 + $0x318] sm:$0xff]
  %v217 = vld [vmem:[%s1 + $0x320] sm:$0xff]
  %v218 = vld [vmem:[%s1 + $0x328] sm:$0xff]
  %v219 = vld [vmem:[%s1 + $0x330] sm:$0xff]
  %v220 = vld [vmem:[%s1 + $0x338] sm:$0xff]
  %v221 = vld [vmem:[%s1 + $0x340] sm:$0xff]
  %v222 = vld [vmem:[%s1 + $0x348] sm:$0xff]
  %v223 = vld [vmem:[%s1 + $0x350] sm:$0xff]
  %v224 = vld [vmem:[%s1 + $0x358] sm:$0xff]
  %v225 = vld [vmem:[%s1 + $0x360] sm:$0xff]
  %v226 = vld [vmem:[%s1 + $0x368] sm:$0xff]
  %v227 = vld [vmem:[%s1 + $0x370] sm:$0xff]
  %v228 = vld [vmem:[%s1 + $0x378] sm:$0xff]
  %v229 = vld [vmem:[%s1 + $0x380] sm:$0xff]
  %v230 = vld [vmem:[%s1 + $0x388] sm:$0xff]
  %v231 = vld [vmem:[%s1 + $0x390] sm:$0xff]
  %v232 = vld [vmem:[%s1 + $0x398] sm:$0xff]
  %v233 = vld [vmem:[%s1 + $0x3a0] sm:$0xff]
  %v234 = vld [vmem:[%s1 + $0x3a8] sm:$0xff]
  %v235 = vld [vmem:[%s1 + $0x3b0] sm:$0xff]
  %v236 = vld [vmem:[%s1 + $0x3b8] sm:$0xff]
  %v237 = vld [vmem:[%s1 + $0x3c0] sm:$0xff]
  %v238 = vld [vmem:[%s1 + $0x3c8] sm:$0xff]
  %v239 = vld [vmem:[%s1 + $0x3d0] sm:$0xff]
  %v240 = vld [vmem:[%s1 + $0x3d8] sm:$0xff]
  %v241 = vld [vmem:[%s1 + $0x3e0] sm:$0xff]
  %v242 = vld [vmem:[%s1 + $0x3e8] sm:$0xff]
  %v243 = vld [vmem:[%s1 + $0x3f0] sm:$0xff]
  %v244 = vld [vmem:[%s1 + $0x3f8] sm:$0xff]
  %v245 = vld [vmem:[%s2] sm:$0x3]
  %v247 = vlaneseq
  %v248 = vshrl.u32 %v247, 7
  %v249 = vsub.s32 0, %v248
  %v250 = vrot.slane %v245, %v249
  %v251 = vlaneseq
  %v252 = vshrl.u32 %v251, 7
  %v253 = vsub.s32 1, %v252
  %v254 = vrot.slane %v245, %v253
  %257 = vmatprep.subr.mxu0 %v118
  %258 = vmatpush1.msra.mxu0 %v117
  %259 = vmatprep.subr.mxu0 %v120
  %260 = vmatpush1.msra.mxu0 %v119
  %261 = vmatprep.subr.mxu0 %v122
  %262 = vmatpush1.msra.mxu0 %v121
  %263 = vmatprep.subr.mxu0 %v124
  %264 = vmatpush1.msra.mxu0 %v123
  %265 = vmatprep.subr.mxu0 %v126
  %266 = vmatpush1.msra.mxu0 %v125
  %267 = vmatprep.subr.mxu0 %v128
  %268 = vmatpush1.msra.mxu0 %v127
  %269 = vmatprep.subr.mxu0 %v130
  %270 = vmatpush1.msra.mxu0 %v129
  %271 = vmatprep.subr.mxu0 %v132
  %272 = vmatpush1.msra.mxu0 %v131
  %273 = vmatprep.subr.mxu0 %v134
  %274 = vmatpush1.msra.mxu0 %v133
  %275 = vmatprep.subr.mxu0 %v136
  %276 = vmatpush1.msra.mxu0 %v135
  %277 = vmatprep.subr.mxu0 %v138
  %278 = vmatpush1.msra.mxu0 %v137
  %279 = vmatprep.subr.mxu0 %v140
  %280 = vmatpush1.msra.mxu0 %v139
  %281 = vmatprep.subr.mxu0 %v142
  %282 = vmatpush1.msra.mxu0 %v141
  %283 = vmatprep.subr.mxu0 %v144
  %284 = vmatpush1.msra.mxu0 %v143
  %285 = vmatprep.subr.mxu0 %v146
  %286 = vmatpush1.msra.mxu0 %v145
  %287 = vmatprep.subr.mxu0 %v148
  %288 = vmatpush1.msra.mxu0 %v147
  %289 = vmatprep.subr.mxu0 %v150
  %290 = vmatpush1.msra.mxu0 %v149
  %291 = vmatprep.subr.mxu0 %v152
  %292 = vmatpush1.msra.mxu0 %v151
  %293 = vmatprep.subr.mxu0 %v154
  %294 = vmatpush1.msra.mxu0 %v153
  %295 = vmatprep.subr.mxu0 %v156
  %296 = vmatpush1.msra.mxu0 %v155
  %297 = vmatprep.subr.mxu0 %v158
  %298 = vmatpush1.msra.mxu0 %v157
  %299 = vmatprep.subr.mxu0 %v160
  %300 = vmatpush1.msra.mxu0 %v159
  %301 = vmatprep.subr.mxu0 %v162
  %302 = vmatpush1.msra.mxu0 %v161
  %303 = vmatprep.subr.mxu0 %v164
  %304 = vmatpush1.msra.mxu0 %v163
  %305 = vmatprep.subr.mxu0 %v166
  %306 = vmatpush1.msra.mxu0 %v165
  %307 = vmatprep.subr.mxu0 %v168
  %308 = vmatpush1.msra.mxu0 %v167
  %309 = vmatprep.subr.mxu0 %v170
  %310 = vmatpush1.msra.mxu0 %v169
  %311 = vmatprep.subr.mxu0 %v172
  %312 = vmatpush1.msra.mxu0 %v171
  %313 = vmatprep.subr.mxu0 %v174
  %314 = vmatpush1.msra.mxu0 %v173
  %315 = vmatprep.subr.mxu0 %v176
  %316 = vmatpush1.msra.mxu0 %v175
  %317 = vmatprep.subr.mxu0 %v178
  %318 = vmatpush1.msra.mxu0 %v177
  %319 = vmatprep.subr.mxu0 %v180
  %320 = vmatpush1.msra.mxu0 %v179
  %321 = vmatprep.mubr.f32.mxu0 %v18
  %322 = vmatmul.mubr.f32.gmra.mrb[0].mxu0 %v17
  %v323 = vpop.f32.mrb[0].mxu0
  %v324 = vadd.f32 %v250, %v323
  %v325 = vpop.f32.mrb[0].mxu0
  %v326 = vadd.f32 %v254, %v325
  %327 = vmatprep.mubr.f32.mxu0 %v22
  %328 = vmatmul.mubr.f32.gmra.mrb[0].mxu0 %v21
  %v329 = vpop.f32.mrb[0].mxu0
  %v330 = vadd.f32 %v250, %v329
  %v331 = vpop.f32.mrb[0].mxu0
  %v332 = vadd.f32 %v254, %v331
  %333 = vmatprep.mubr.f32.mxu0 %v26
  %334 = vmatmul.mubr.f32.gmra.mrb[0].mxu0 %v25
  %v335 = vpop.f32.mrb[0].mxu0
  %v336 = vadd.f32 %v250, %v335
  %v337 = vpop.f32.mrb[0].mxu0
  %v338 = vadd.f32 %v254, %v337
  %339 = vmatprep.mubr.f32.mxu0 %v30
  %340 = vmatmul.mubr.f32.gmra.mrb[0].mxu0 %v29
  %v341 = vpop.f32.mrb[0].mxu0
  %v342 = vadd.f32 %v250, %v341
  %v343 = vpop.f32.mrb[0].mxu0
  %v344 = vadd.f32 %v254, %v343
  %345 = vmatprep.mubr.f32.mxu0 %v34
  %346 = vmatmul.mubr.f32.gmra.mrb[0].mxu0 %v33
  %v347 = vpop.f32.mrb[0].mxu0
  %v348 = vadd.f32 %v250, %v347
  %v349 = vpop.f32.mrb[0].mxu0
  %v350 = vadd.f32 %v254, %v349
  %351 = vmatprep.mubr.f32.mxu0 %v38
  %352 = vmatmul.mubr.f32.gmra.mrb[0].mxu0 %v37
  %v353 = vpop.f32.mrb[0].mxu0
  %v354 = vadd.f32 %v250, %v353
  %v355 = vpop.f32.mrb[0].mxu0
  %v356 = vadd.f32 %v254, %v355
  %357 = vmatprep.mubr.f32.mxu0 %v42
  %358 = vmatmul.mubr.f32.gmra.mrb[0].mxu0 %v41
  %v359 = vpop.f32.mrb[0].mxu0
  %v360 = vadd.f32 %v250, %v359
  %v361 = vpop.f32.mrb[0].mxu0
  %v362 = vadd.f32 %v254, %v361
  %363 = vmatprep.mubr.f32.mxu0 %v46
  %364 = vmatmul.mubr.f32.gmra.mrb[0].mxu0 %v45
  %v365 = vpop.f32.mrb[0].mxu0
  %v366 = vadd.f32 %v250, %v365
  %v367 = vpop.f32.mrb[0].mxu0
  %v368 = vadd.f32 %v254, %v367
  %369 = vmatprep.mubr.f32.mxu0 %v50
  %370 = vmatmul.mubr.f32.gmra.mrb[0].mxu0 %v49
  %v371 = vpop.f32.mrb[0].mxu0
  %v372 = vadd.f32 %v250, %v371
  %v373 = vpop.f32.mrb[0].mxu0
  %v374 = vadd.f32 %v254, %v373
  %375 = vmatprep.mubr.f32.mxu0 %v54
  %376 = vmatmul.mubr.f32.gmra.mrb[0].mxu0 %v53
  %v377 = vpop.f32.mrb[0].mxu0
  %v378 = vadd.f32 %v250, %v377
  %v379 = vpop.f32.mrb[0].mxu0
  %v380 = vadd.f32 %v254, %v379
  %381 = vmatprep.mubr.f32.mxu0 %v58
  %382 = vmatmul.mubr.f32.gmra.mrb[0].mxu0 %v57
  %v383 = vpop.f32.mrb[0].mxu0
  %v384 = vadd.f32 %v250, %v383
  %v385 = vpop.f32.mrb[0].mxu0
  %v386 = vadd.f32 %v254, %v385
  %387 = vmatprep.mubr.f32.mxu0 %v62
  %388 = vmatmul.mubr.f32.gmra.mrb[0].mxu0 %v61
  %v389 = vpop.f32.mrb[0].mxu0
  %v390 = vadd.f32 %v250, %v389
  %v391 = vpop.f32.mrb[0].mxu0
  %v392 = vadd.f32 %v254, %v391
  %393 = vmatprep.mubr.f32.mxu0 %v66
  %394 = vmatmul.mubr.f32.gmra.mrb[0].mxu0 %v65
  %v395 = vpop.f32.mrb[0].mxu0
  %v396 = vadd.f32 %v250, %v395
  %v397 = vpop.f32.mrb[0].mxu0
  %v398 = vadd.f32 %v254, %v397
  %399 = vmatprep.mubr.f32.mxu0 %v70
  %400 = vmatmul.mubr.f32.gmra.mrb[0].mxu0 %v69
  %v401 = vpop.f32.mrb[0].mxu0
  %v402 = vadd.f32 %v250, %v401
  %v403 = vpop.f32.mrb[0].mxu0
  %v404 = vadd.f32 %v254, %v403
  %405 = vmatprep.mubr.f32.mxu0 %v74
  %406 = vmatmul.mubr.f32.gmra.mrb[0].mxu0 %v73
  %v407 = vpop.f32.mrb[0].mxu0
  %v408 = vadd.f32 %v250, %v407
  %v409 = vpop.f32.mrb[0].mxu0
  %v410 = vadd.f32 %v254, %v409
  %411 = vmatprep.mubr.f32.mxu0 %v78
  %412 = vmatmul.mubr.f32.gmra.mrb[0].mxu0 %v77
  %v413 = vpop.f32.mrb[0].mxu0
  %v414 = vadd.f32 %v250, %v413
  %v415 = vpop.f32.mrb[0].mxu0
  %v416 = vadd.f32 %v254, %v415
  %417 = vmatprep.mubr.f32.mxu0 %v82
  %418 = vmatmul.mubr.f32.gmra.mrb[0].mxu0 %v81
  %v419 = vpop.f32.mrb[0].mxu0
  %v420 = vadd.f32 %v250, %v419
  %v421 = vpop.f32.mrb[0].mxu0
  %v422 = vadd.f32 %v254, %v421
  %423 = vmatprep.mubr.f32.mxu0 %v86
  %424 = vmatmul.mubr.f32.gmra.mrb[0].mxu0 %v85
  %v425 = vpop.f32.mrb[0].mxu0
  %v426 = vadd.f32 %v250, %v425
  %v427 = vpop.f32.mrb[0].mxu0
  %v428 = vadd.f32 %v254, %v427
  %429 = vmatprep.mubr.f32.mxu0 %v90
  %430 = vmatmul.mubr.f32.gmra.mrb[0].mxu0 %v89
  %v431 = vpop.f32.mrb[0].mxu0
  %v432 = vadd.f32 %v250, %v431
  %v433 = vpop.f32.mrb[0].mxu0
  %v434 = vadd.f32 %v254, %v433
  %435 = vmatprep.mubr.f32.mxu0 %v94
  %436 = vmatmul.mubr.f32.gmra.mrb[0].mxu0 %v93
  %v437 = vpop.f32.mrb[0].mxu0
  %v438 = vadd.f32 %v250, %v437
  %v439 = vpop.f32.mrb[0].mxu0
  %v440 = vadd.f32 %v254, %v439
  %441 = vmatprep.mubr.f32.mxu0 %v98
  %442 = vmatmul.mubr.f32.gmra.mrb[0].mxu0 %v97
  %v443 = vpop.f32.mrb[0].mxu0
  %v444 = vadd.f32 %v250, %v443
  %v445 = vpop.f32.mrb[0].mxu0
  %v446 = vadd.f32 %v254, %v445
  %447 = vmatprep.mubr.f32.mxu0 %v102
  %448 = vmatmul.mubr.f32.gmra.mrb[0].mxu0 %v101
  %v449 = vpop.f32.mrb[0].mxu0
  %v450 = vadd.f32 %v250, %v449
  %v451 = vpop.f32.mrb[0].mxu0
  %v452 = vadd.f32 %v254, %v451
  %453 = vmatprep.mubr.f32.mxu0 %v106
  %454 = vmatmul.mubr.f32.gmra.mrb[0].mxu0 %v105
  %v455 = vpop.f32.mrb[0].mxu0
  %v456 = vadd.f32 %v250, %v455
  %v457 = vpop.f32.mrb[0].mxu0
  %v458 = vadd.f32 %v254, %v457
  %459 = vmatprep.mubr.f32.mxu0 %v110
  %460 = vmatmul.mubr.f32.gmra.mrb[0].mxu0 %v109
  %v461 = vpop.f32.mrb[0].mxu0
  %v462 = vadd.f32 %v250, %v461
  %v463 = vpop.f32.mrb[0].mxu0
  %v464 = vadd.f32 %v254, %v463
  %465 = vmatprep.mubr.f32.mxu0 %v114
  %466 = vmatmul.mubr.f32.gmra.mrb[0].mxu0 %v113
  %v467 = vpop.f32.mrb[0].mxu0
  %v468 = vadd.f32 %v250, %v467
  %v469 = vpop.f32.mrb[0].mxu0
  %v470 = vadd.f32 %v254, %v469
  %471 = vdwg.mxu0
  %472 = vmatprep.subr.mxu0 %v182
  %473 = vmatpush1.msra.mxu0 %v181
  %474 = vmatprep.subr.mxu0 %v184
  %475 = vmatpush1.msra.mxu0 %v183
  %476 = vmatprep.subr.mxu0 %v186
  %477 = vmatpush1.msra.mxu0 %v185
  %478 = vmatprep.subr.mxu0 %v188
  %479 = vmatpush1.msra.mxu0 %v187
  %480 = vmatprep.subr.mxu0 %v190
  %481 = vmatpush1.msra.mxu0 %v189
  %482 = vmatprep.subr.mxu0 %v192
  %483 = vmatpush1.msra.mxu0 %v191
  %484 = vmatprep.subr.mxu0 %v194
  %485 = vmatpush1.msra.mxu0 %v193
  %486 = vmatprep.subr.mxu0 %v196
  %487 = vmatpush1.msra.mxu0 %v195
  %488 = vmatprep.subr.mxu0 %v198
  %489 = vmatpush1.msra.mxu0 %v197
  %490 = vmatprep.subr.mxu0 %v200
  %491 = vmatpush1.msra.mxu0 %v199
  %492 = vmatprep.subr.mxu0 %v202
  %493 = vmatpush1.msra.mxu0 %v201
  %494 = vmatprep.subr.mxu0 %v204
  %495 = vmatpush1.msra.mxu0 %v203
  %496 = vmatprep.subr.mxu0 %v206
  %497 = vmatpush1.msra.mxu0 %v205
  %498 = vmatprep.subr.mxu0 %v208
  %499 = vmatpush1.msra.mxu0 %v207
  %500 = vmatprep.subr.mxu0 %v210
  %501 = vmatpush1.msra.mxu0 %v209
  %502 = vmatprep.subr.mxu0 %v212
  %503 = vmatpush1.msra.mxu0 %v211
  %504 = vmatprep.subr.mxu0 %v214
  %505 = vmatpush1.msra.mxu0 %v213
  %506 = vmatprep.subr.mxu0 %v216
  %507 = vmatpush1.msra.mxu0 %v215
  %508 = vmatprep.subr.mxu0 %v218
  %509 = vmatpush1.msra.mxu0 %v217
  %510 = vmatprep.subr.mxu0 %v220
  %511 = vmatpush1.msra.mxu0 %v219
  %512 = vmatprep.subr.mxu0 %v222
  %513 = vmatpush1.msra.mxu0 %v221
  %514 = vmatprep.subr.mxu0 %v224
  %515 = vmatpush1.msra.mxu0 %v223
  %516 = vmatprep.subr.mxu0 %v226
  %517 = vmatpush1.msra.mxu0 %v225
  %518 = vmatprep.subr.mxu0 %v228
  %519 = vmatpush1.msra.mxu0 %v227
  %520 = vmatprep.subr.mxu0 %v230
  %521 = vmatpush1.msra.mxu0 %v229
  %522 = vmatprep.subr.mxu0 %v232
  %523 = vmatpush1.msra.mxu0 %v231
  %524 = vmatprep.subr.mxu0 %v234
  %525 = vmatpush1.msra.mxu0 %v233
  %526 = vmatprep.subr.mxu0 %v236
  %527 = vmatpush1.msra.mxu0 %v235
  %528 = vmatprep.subr.mxu0 %v238
  %529 = vmatpush1.msra.mxu0 %v237
  %530 = vmatprep.subr.mxu0 %v240
  %531 = vmatpush1.msra.mxu0 %v239
  %532 = vmatprep.subr.mxu0 %v242
  %533 = vmatpush1.msra.mxu0 %v241
  %534 = vmatprep.subr.mxu0 %v244
  %535 = vmatpush1.msra.mxu0 %v243
  %536 = vmatprep.mubr.f32.mxu0 %v20
  %537 = vmatmul.mubr.f32.gmra.mrb[0].mxu0 %v19
  %v538 = vpop.f32.mrb[0].mxu0
  %v539 = vadd.f32 %v324, %v538
  %v540 = vpop.f32.mrb[0].mxu0
  %v541 = vadd.f32 %v326, %v540
  %542 = vmatprep.mubr.f32.mxu0 %v24
  %543 = vmatmul.mubr.f32.gmra.mrb[0].mxu0 %v23
  %v544 = vpop.f32.mrb[0].mxu0
  %v545 = vadd.f32 %v330, %v544
  %v546 = vpop.f32.mrb[0].mxu0
  %v547 = vadd.f32 %v332, %v546
  %548 = vmatprep.mubr.f32.mxu0 %v28
  %549 = vmatmul.mubr.f32.gmra.mrb[0].mxu0 %v27
  %v550 = vpop.f32.mrb[0].mxu0
  %v551 = vadd.f32 %v336, %v550
  %v552 = vpop.f32.mrb[0].mxu0
  %v553 = vadd.f32 %v338, %v552
  %554 = vmatprep.mubr.f32.mxu0 %v32
  %555 = vmatmul.mubr.f32.gmra.mrb[0].mxu0 %v31
  %v556 = vpop.f32.mrb[0].mxu0
  %v557 = vadd.f32 %v342, %v556
  %v558 = vpop.f32.mrb[0].mxu0
  %v559 = vadd.f32 %v344, %v558
  %560 = vmatprep.mubr.f32.mxu0 %v36
  %561 = vmatmul.mubr.f32.gmra.mrb[0].mxu0 %v35
  %v562 = vpop.f32.mrb[0].mxu0
  %v563 = vadd.f32 %v348, %v562
  %v564 = vpop.f32.mrb[0].mxu0
  %v565 = vadd.f32 %v350, %v564
  %566 = vmatprep.mubr.f32.mxu0 %v40
  %567 = vmatmul.mubr.f32.gmra.mrb[0].mxu0 %v39
  %v568 = vpop.f32.mrb[0].mxu0
  %v569 = vadd.f32 %v354, %v568
  %v570 = vpop.f32.mrb[0].mxu0
  %v571 = vadd.f32 %v356, %v570
  %572 = vmatprep.mubr.f32.mxu0 %v44
  %573 = vmatmul.mubr.f32.gmra.mrb[0].mxu0 %v43
  %v574 = vpop.f32.mrb[0].mxu0
  %v575 = vadd.f32 %v360, %v574
  %v576 = vpop.f32.mrb[0].mxu0
  %v577 = vadd.f32 %v362, %v576
  %578 = vmatprep.mubr.f32.mxu0 %v48
  %579 = vmatmul.mubr.f32.gmra.mrb[0].mxu0 %v47
  %v580 = vpop.f32.mrb[0].mxu0
  %v581 = vadd.f32 %v366, %v580
  %v582 = vpop.f32.mrb[0].mxu0
  %v583 = vadd.f32 %v368, %v582
  %584 = vmatprep.mubr.f32.mxu0 %v52
  %585 = vmatmul.mubr.f32.gmra.mrb[0].mxu0 %v51
  %v586 = vpop.f32.mrb[0].mxu0
  %v587 = vadd.f32 %v372, %v586
  %v588 = vpop.f32.mrb[0].mxu0
  %v589 = vadd.f32 %v374, %v588
  %590 = vmatprep.mubr.f32.mxu0 %v56
  %591 = vmatmul.mubr.f32.gmra.mrb[0].mxu0 %v55
  %v592 = vpop.f32.mrb[0].mxu0
  %v593 = vadd.f32 %v378, %v592
  %v594 = vpop.f32.mrb[0].mxu0
  %v595 = vadd.f32 %v380, %v594
  %596 = vmatprep.mubr.f32.mxu0 %v60
  %597 = vmatmul.mubr.f32.gmra.mrb[0].mxu0 %v59
  %v598 = vpop.f32.mrb[0].mxu0
  %v599 = vadd.f32 %v384, %v598
  %v600 = vpop.f32.mrb[0].mxu0
  %v601 = vadd.f32 %v386, %v600
  %602 = vmatprep.mubr.f32.mxu0 %v64
  %603 = vmatmul.mubr.f32.gmra.mrb[0].mxu0 %v63
  %v604 = vpop.f32.mrb[0].mxu0
  %v605 = vadd.f32 %v390, %v604
  %v606 = vpop.f32.mrb[0].mxu0
  %v607 = vadd.f32 %v392, %v606
  %608 = vmatprep.mubr.f32.mxu0 %v68
  %609 = vmatmul.mubr.f32.gmra.mrb[0].mxu0 %v67
  %v610 = vpop.f32.mrb[0].mxu0
  %v611 = vadd.f32 %v396, %v610
  %v612 = vpop.f32.mrb[0].mxu0
  %v613 = vadd.f32 %v398, %v612
  %614 = vmatprep.mubr.f32.mxu0 %v72
  %615 = vmatmul.mubr.f32.gmra.mrb[0].mxu0 %v71
  %v616 = vpop.f32.mrb[0].mxu0
  %v617 = vadd.f32 %v402, %v616
  %v618 = vpop.f32.mrb[0].mxu0
  %v619 = vadd.f32 %v404, %v618
  %620 = vmatprep.mubr.f32.mxu0 %v76
  %621 = vmatmul.mubr.f32.gmra.mrb[0].mxu0 %v75
  %v622 = vpop.f32.mrb[0].mxu0
  %v623 = vadd.f32 %v408, %v622
  %v624 = vpop.f32.mrb[0].mxu0
  %v625 = vadd.f32 %v410, %v624
  %626 = vmatprep.mubr.f32.mxu0 %v80
  %627 = vmatmul.mubr.f32.gmra.mrb[0].mxu0 %v79
  %v628 = vpop.f32.mrb[0].mxu0
  %v629 = vadd.f32 %v414, %v628
  %v630 = vpop.f32.mrb[0].mxu0
  %v631 = vadd.f32 %v416, %v630
  %632 = vmatprep.mubr.f32.mxu0 %v84
  %633 = vmatmul.mubr.f32.gmra.mrb[0].mxu0 %v83
  %v634 = vpop.f32.mrb[0].mxu0
  %v635 = vadd.f32 %v420, %v634
  %v636 = vpop.f32.mrb[0].mxu0
  %v637 = vadd.f32 %v422, %v636
  %638 = vmatprep.mubr.f32.mxu0 %v88
  %639 = vmatmul.mubr.f32.gmra.mrb[0].mxu0 %v87
  %v640 = vpop.f32.mrb[0].mxu0
  %v641 = vadd.f32 %v426, %v640
  %v642 = vpop.f32.mrb[0].mxu0
  %v643 = vadd.f32 %v428, %v642
  %644 = vmatprep.mubr.f32.mxu0 %v92
  %645 = vmatmul.mubr.f32.gmra.mrb[0].mxu0 %v91
  %v646 = vpop.f32.mrb[0].mxu0
  %v647 = vadd.f32 %v432, %v646
  %v648 = vpop.f32.mrb[0].mxu0
  %v649 = vadd.f32 %v434, %v648
  %650 = vmatprep.mubr.f32.mxu0 %v96
  %651 = vmatmul.mubr.f32.gmra.mrb[0].mxu0 %v95
  %v652 = vpop.f32.mrb[0].mxu0
  %v653 = vadd.f32 %v438, %v652
  %v654 = vpop.f32.mrb[0].mxu0
  %v655 = vadd.f32 %v440, %v654
  %656 = vmatprep.mubr.f32.mxu0 %v100
  %657 = vmatmul.mubr.f32.gmra.mrb[0].mxu0 %v99
  %v658 = vpop.f32.mrb[0].mxu0
  %v659 = vadd.f32 %v444, %v658
  %v660 = vpop.f32.mrb[0].mxu0
  %v661 = vadd.f32 %v446, %v660
  %662 = vmatprep.mubr.f32.mxu0 %v104
  %663 = vmatmul.mubr.f32.gmra.mrb[0].mxu0 %v103
  %v664 = vpop.f32.mrb[0].mxu0
  %v665 = vadd.f32 %v450, %v664
  %v666 = vpop.f32.mrb[0].mxu0
  %v667 = vadd.f32 %v452, %v666
  %668 = vmatprep.mubr.f32.mxu0 %v108
  %669 = vmatmul.mubr.f32.gmra.mrb[0].mxu0 %v107
  %v670 = vpop.f32.mrb[0].mxu0
  %v671 = vadd.f32 %v456, %v670
  %v672 = vpop.f32.mrb[0].mxu0
  %v673 = vadd.f32 %v458, %v672
  %674 = vmatprep.mubr.f32.mxu0 %v112
  %675 = vmatmul.mubr.f32.gmra.mrb[0].mxu0 %v111
  %v676 = vpop.f32.mrb[0].mxu0
  %v677 = vadd.f32 %v462, %v676
  %v678 = vpop.f32.mrb[0].mxu0
  %v679 = vadd.f32 %v464, %v678
  %680 = vmatprep.mubr.f32.mxu0 %v116
  %681 = vmatmul.mubr.f32.gmra.mrb[0].mxu0 %v115
  %v682 = vpop.f32.mrb[0].mxu0
  %v683 = vadd.f32 %v468, %v682
  %v684 = vpop.f32.mrb[0].mxu0
  %v685 = vadd.f32 %v470, %v684
  %686 = vdwg.mxu0
  %687 = vst [vmem:[%s3] sm:$0xff] %v539
  %688 = vst [vmem:[%s3 + $0x8] sm:$0xff] %v541
  %689 = vst [vmem:[%s3 + $0x10] sm:$0xff] %v545
  %690 = vst [vmem:[%s3 + $0x18] sm:$0xff] %v547
  %691 = vst [vmem:[%s3 + $0x20] sm:$0xff] %v551
  %692 = vst [vmem:[%s3 + $0x28] sm:$0xff] %v553
  %693 = vst [vmem:[%s3 + $0x30] sm:$0xff] %v557
  %694 = vst [vmem:[%s3 + $0x38] sm:$0xff] %v559
  %695 = vst [vmem:[%s3 + $0x40] sm:$0xff] %v563
  %696 = vst [vmem:[%s3 + $0x48] sm:$0xff] %v565
  %697 = vst [vmem:[%s3 + $0x50] sm:$0xff] %v569
  %698 = vst [vmem:[%s3 + $0x58] sm:$0xff] %v571
  %699 = vst [vmem:[%s3 + $0x60] sm:$0xff] %v575
  %700 = vst [vmem:[%s3 + $0x68] sm:$0xff] %v577
  %701 = vst [vmem:[%s3 + $0x70] sm:$0xff] %v581
  %702 = vst [vmem:[%s3 + $0x78] sm:$0xff] %v583
  %703 = vst [vmem:[%s3 + $0x80] sm:$0xff] %v587
  %704 = vst [vmem:[%s3 + $0x88] sm:$0xff] %v589
  %705 = vst [vmem:[%s3 + $0x90] sm:$0xff] %v593
  %706 = vst [vmem:[%s3 + $0x98] sm:$0xff] %v595
  %707 = vst [vmem:[%s3 + $0xa0] sm:$0xff] %v599
  %708 = vst [vmem:[%s3 + $0xa8] sm:$0xff] %v601
  %709 = vst [vmem:[%s3 + $0xb0] sm:$0xff] %v605
  %710 = vst [vmem:[%s3 + $0xb8] sm:$0xff] %v607
  %711 = vst [vmem:[%s3 + $0xc0] sm:$0xff] %v611
  %712 = vst [vmem:[%s3 + $0xc8] sm:$0xff] %v613
  %713 = vst [vmem:[%s3 + $0xd0] sm:$0xff] %v617
  %714 = vst [vmem:[%s3 + $0xd8] sm:$0xff] %v619
  %715 = vst [vmem:[%s3 + $0xe0] sm:$0xff] %v623
  %716 = vst [vmem:[%s3 + $0xe8] sm:$0xff] %v625
  %717 = vst [vmem:[%s3 + $0xf0] sm:$0xff] %v629
  %718 = vst [vmem:[%s3 + $0xf8] sm:$0xff] %v631
  %719 = vst [vmem:[%s3 + $0x100] sm:$0xff] %v635
  %720 = vst [vmem:[%s3 + $0x108] sm:$0xff] %v637
  %721 = vst [vmem:[%s3 + $0x110] sm:$0xff] %v641
  %722 = vst [vmem:[%s3 + $0x118] sm:$0xff] %v643
  %723 = vst [vmem:[%s3 + $0x120] sm:$0xff] %v647
  %724 = vst [vmem:[%s3 + $0x128] sm:$0xff] %v649
  %725 = vst [vmem:[%s3 + $0x130] sm:$0xff] %v653
  %726 = vst [vmem:[%s3 + $0x138] sm:$0xff] %v655
  %727 = vst [vmem:[%s3 + $0x140] sm:$0xff] %v659
  %728 = vst [vmem:[%s3 + $0x148] sm:$0xff] %v661
  %729 = vst [vmem:[%s3 + $0x150] sm:$0xff] %v665
  %730 = vst [vmem:[%s3 + $0x158] sm:$0xff] %v667
  %731 = vst [vmem:[%s3 + $0x160] sm:$0xff] %v671
  %732 = vst [vmem:[%s3 + $0x168] sm:$0xff] %v673
  %733 = vst [vmem:[%s3 + $0x170] sm:$0xff] %v677
  %734 = vst [vmem:[%s3 + $0x178] sm:$0xff] %v679
  %735 = vst [vmem:[%s3 + $0x180] sm:$0xff] %v683
  %736 = vst [vmem:[%s3 + $0x188] sm:$0xff] %v685
  %s737 = smul.u32 0, 200
  %v738 = vlaneseq
  %v739 = vshrl.u32 %v738, 7
  %v740 = vadd.s32 %v739, 8
  %v741 = vadd.s32 %v739, 16
  %v742 = vadd.s32 %v739, 24
  %v743 = vadd.s32 %v739, 32
  %v744 = vadd.s32 %v739, 40
  %v745 = vadd.s32 %v739, 48
  %v746 = vadd.s32 %v739, 56
  %v747 = vadd.s32 %v739, 64
  %v748 = vadd.s32 %v739, 72
  %v749 = vadd.s32 %v739, 80
  %v750 = vadd.s32 %v739, 88
  %v751 = vadd.s32 %v739, 96
  %v752 = vadd.s32 %v739, 104
  %v753 = vadd.s32 %v739, 112
  %v754 = vadd.s32 %v739, 120
  %v755 = vadd.s32 %v739, 128
  %v756 = vadd.s32 %v739, 136
  %v757 = vadd.s32 %v739, 144
  %v758 = vadd.s32 %v739, 152
  %v759 = vadd.s32 %v739, 160
  %v760 = vadd.s32 %v739, 168
  %v761 = vadd.s32 %v739, 176
  %v762 = vadd.s32 %v739, 184
  %v763 = vadd.s32 %v739, 192
  %v764 = vstv %s737
  %v765 = vadd.s32 %v764, %v739
  %v766 = vadd.s32 %v764, %v740
  %v767 = vadd.s32 %v764, %v741
  %v768 = vadd.s32 %v764, %v742
  %v769 = vadd.s32 %v764, %v743
  %v770 = vadd.s32 %v764, %v744
  %v771 = vadd.s32 %v764, %v745
  %v772 = vadd.s32 %v764, %v746
  %v773 = vadd.s32 %v764, %v747
  %v774 = vadd.s32 %v764, %v748
  %v775 = vadd.s32 %v764, %v749
  %v776 = vadd.s32 %v764, %v750
  %v777 = vadd.s32 %v764, %v751
  %v778 = vadd.s32 %v764, %v752
  %v779 = vadd.s32 %v764, %v753
  %v780 = vadd.s32 %v764, %v754
  %v781 = vadd.s32 %v764, %v755
  %v782 = vadd.s32 %v764, %v756
  %v783 = vadd.s32 %v764, %v757
  %v784 = vadd.s32 %v764, %v758
  %v785 = vadd.s32 %v764, %v759
  %v786 = vadd.s32 %v764, %v760
  %v787 = vadd.s32 %v764, %v761
  %v788 = vadd.s32 %v764, %v762
  %v789 = vadd.s32 %v764, %v763
  %vm790 = vcmp.lt.s32.totalorder %v765, 196
  %vm791 = vcmp.lt.s32.totalorder %v766, 196
  %vm792 = vcmp.lt.s32.totalorder %v767, 196
  %vm793 = vcmp.lt.s32.totalorder %v768, 196
  %vm794 = vcmp.lt.s32.totalorder %v769, 196
  %vm795 = vcmp.lt.s32.totalorder %v770, 196
  %vm796 = vcmp.lt.s32.totalorder %v771, 196
  %vm797 = vcmp.lt.s32.totalorder %v772, 196
  %vm798 = vcmp.lt.s32.totalorder %v773, 196
  %vm799 = vcmp.lt.s32.totalorder %v774, 196
  %vm800 = vcmp.lt.s32.totalorder %v775, 196
  %vm801 = vcmp.lt.s32.totalorder %v776, 196
  %vm802 = vcmp.lt.s32.totalorder %v777, 196
  %vm803 = vcmp.lt.s32.totalorder %v778, 196
  %vm804 = vcmp.lt.s32.totalorder %v779, 196
  %vm805 = vcmp.lt.s32.totalorder %v780, 196
  %vm806 = vcmp.lt.s32.totalorder %v781, 196
  %vm807 = vcmp.lt.s32.totalorder %v782, 196
  %vm808 = vcmp.lt.s32.totalorder %v783, 196
  %vm809 = vcmp.lt.s32.totalorder %v784, 196
  %vm810 = vcmp.lt.s32.totalorder %v785, 196
  %vm811 = vcmp.lt.s32.totalorder %v786, 196
  %vm812 = vcmp.lt.s32.totalorder %v787, 196
  %vm813 = vcmp.lt.s32.totalorder %v788, 196
  %vm814 = vcmp.lt.s32.totalorder %v789, 196
  %v815 = vsel %vm790, 1, 0
  %v816 = vsel %vm791, 1, 0
  %v817 = vsel %vm792, 1, 0
  %v818 = vsel %vm793, 1, 0
  %v819 = vsel %vm794, 1, 0
  %v820 = vsel %vm795, 1, 0
  %v821 = vsel %vm796, 1, 0
  %v822 = vsel %vm797, 1, 0
  %v823 = vsel %vm798, 1, 0
  %v824 = vsel %vm799, 1, 0
  %v825 = vsel %vm800, 1, 0
  %v826 = vsel %vm801, 1, 0
  %v827 = vsel %vm802, 1, 0
  %v828 = vsel %vm803, 1, 0
  %v829 = vsel %vm804, 1, 0
  %v830 = vsel %vm805, 1, 0
  %v831 = vsel %vm806, 1, 0
  %v832 = vsel %vm807, 1, 0
  %v833 = vsel %vm808, 1, 0
  %v834 = vsel %vm809, 1, 0
  %v835 = vsel %vm810, 1, 0
  %v836 = vsel %vm811, 1, 0
  %v837 = vsel %vm812, 1, 0
  %v838 = vsel %vm813, 1, 0
  %v839 = vsel %vm814, 1, 0
  %vm840 = vcmp.eq.s32.totalorder %v815, 1
  %vm841 = vcmp.eq.s32.totalorder %v816, 1
  %vm842 = vcmp.eq.s32.totalorder %v817, 1
  %vm843 = vcmp.eq.s32.totalorder %v818, 1
  %vm844 = vcmp.eq.s32.totalorder %v819, 1
  %vm845 = vcmp.eq.s32.totalorder %v820, 1
  %vm846 = vcmp.eq.s32.totalorder %v821, 1
  %vm847 = vcmp.eq.s32.totalorder %v822, 1
  %vm848 = vcmp.eq.s32.totalorder %v823, 1
  %vm849 = vcmp.eq.s32.totalorder %v824, 1
  %vm850 = vcmp.eq.s32.totalorder %v825, 1
  %vm851 = vcmp.eq.s32.totalorder %v826, 1
  %vm852 = vcmp.eq.s32.totalorder %v827, 1
  %vm853 = vcmp.eq.s32.totalorder %v828, 1
  %vm854 = vcmp.eq.s32.totalorder %v829, 1
  %vm855 = vcmp.eq.s32.totalorder %v830, 1
  %vm856 = vcmp.eq.s32.totalorder %v831, 1
  %vm857 = vcmp.eq.s32.totalorder %v832, 1
  %vm858 = vcmp.eq.s32.totalorder %v833, 1
  %vm859 = vcmp.eq.s32.totalorder %v834, 1
  %vm860 = vcmp.eq.s32.totalorder %v835, 1
  %vm861 = vcmp.eq.s32.totalorder %v836, 1
  %vm862 = vcmp.eq.s32.totalorder %v837, 1
  %vm863 = vcmp.eq.s32.totalorder %v838, 1
  %vm864 = vcmp.eq.s32.totalorder %v839, 1
  %v865 = vsel %vm840, %v539, 0.0
  %v866 = vsel %vm840, %v541, 0.0
  %v867 = vsel %vm841, %v545, 0.0
  %v868 = vsel %vm841, %v547, 0.0
  %v869 = vsel %vm842, %v551, 0.0
  %v870 = vsel %vm842, %v553, 0.0
  %v871 = vsel %vm843, %v557, 0.0
  %v872 = vsel %vm843, %v559, 0.0
  %v873 = vsel %vm844, %v563, 0.0
  %v874 = vsel %vm844, %v565, 0.0
  %v875 = vsel %vm845, %v569, 0.0
  %v876 = vsel %vm845, %v571, 0.0
  %v877 = vsel %vm846, %v575, 0.0
  %v878 = vsel %vm846, %v577, 0.0
  %v879 = vsel %vm847, %v581, 0.0
  %v880 = vsel %vm847, %v583, 0.0
  %v881 = vsel %vm848, %v587, 0.0
  %v882 = vsel %vm848, %v589, 0.0
  %v883 = vsel %vm849, %v593, 0.0
  %v884 = vsel %vm849, %v595, 0.0
  %v885 = vsel %vm850, %v599, 0.0
  %v886 = vsel %vm850, %v601, 0.0
  %v887 = vsel %vm851, %v605, 0.0
  %v888 = vsel %vm851, %v607, 0.0
  %v889 = vsel %vm852, %v611, 0.0
  %v890 = vsel %vm852, %v613, 0.0
  %v891 = vsel %vm853, %v617, 0.0
  %v892 = vsel %vm853, %v619, 0.0
  %v893 = vsel %vm854, %v623, 0.0
  %v894 = vsel %vm854, %v625, 0.0
  %v895 = vsel %vm855, %v629, 0.0
  %v896 = vsel %vm855, %v631, 0.0
  %v897 = vsel %vm856, %v635, 0.0
  %v898 = vsel %vm856, %v637, 0.0
  %v899 = vsel %vm857, %v641, 0.0
  %v900 = vsel %vm857, %v643, 0.0
  %v901 = vsel %vm858, %v647, 0.0
  %v902 = vsel %vm858, %v649, 0.0
  %v903 = vsel %vm859, %v653, 0.0
  %v904 = vsel %vm859, %v655, 0.0
  %v905 = vsel %vm860, %v659, 0.0
  %v906 = vsel %vm860, %v661, 0.0
  %v907 = vsel %vm861, %v665, 0.0
  %v908 = vsel %vm861, %v667, 0.0
  %v909 = vsel %vm862, %v671, 0.0
  %v910 = vsel %vm862, %v673, 0.0
  %v911 = vsel %vm863, %v677, 0.0
  %v912 = vsel %vm863, %v679, 0.0
  %v913 = vsel %vm864, %v683, 0.0
  %v914 = vsel %vm864, %v685, 0.0
  %v915 = vadd.f32 %v865, %v867
  %v916 = vadd.f32 %v915, %v869
  %v917 = vadd.f32 %v916, %v871
  %v918 = vadd.f32 %v917, %v873
  %v919 = vadd.f32 %v918, %v875
  %v920 = vadd.f32 %v919, %v877
  %v921 = vadd.f32 %v920, %v879
  %v922 = vadd.f32 %v921, %v881
  %v923 = vadd.f32 %v922, %v883
  %v924 = vadd.f32 %v923, %v885
  %v925 = vadd.f32 %v924, %v887
  %v926 = vadd.f32 %v925, %v889
  %v927 = vadd.f32 %v926, %v891
  %v928 = vadd.f32 %v927, %v893
  %v929 = vadd.f32 %v928, %v895
  %v930 = vadd.f32 %v929, %v897
  %v931 = vadd.f32 %v930, %v899
  %v932 = vadd.f32 %v931, %v901
  %v933 = vadd.f32 %v932, %v903
  %v934 = vadd.f32 %v933, %v905
  %v935 = vadd.f32 %v934, %v907
  %v936 = vadd.f32 %v935, %v909
  %v937 = vadd.f32 %v936, %v911
  %v938 = vadd.f32 %v937, %v913
  %v939 = vrot.slane %v938, 4
  %v940 = vadd.f32 %v938, %v939
  %v941 = vrot.slane %v940, 2
  %v942 = vadd.f32 %v940, %v941
  %v943 = vrot.slane %v942, 1
  %v944 = vadd.f32 %v942, %v943
  %v945 = vadd.f32 %v866, %v868
  %v946 = vadd.f32 %v945, %v870
  %v947 = vadd.f32 %v946, %v872
  %v948 = vadd.f32 %v947, %v874
  %v949 = vadd.f32 %v948, %v876
  %v950 = vadd.f32 %v949, %v878
  %v951 = vadd.f32 %v950, %v880
  %v952 = vadd.f32 %v951, %v882
  %v953 = vadd.f32 %v952, %v884
  %v954 = vadd.f32 %v953, %v886
  %v955 = vadd.f32 %v954, %v888
  %v956 = vadd.f32 %v955, %v890
  %v957 = vadd.f32 %v956, %v892
  %v958 = vadd.f32 %v957, %v894
  %v959 = vadd.f32 %v958, %v896
  %v960 = vadd.f32 %v959, %v898
  %v961 = vadd.f32 %v960, %v900
  %v962 = vadd.f32 %v961, %v902
  %v963 = vadd.f32 %v962, %v904
  %v964 = vadd.f32 %v963, %v906
  %v965 = vadd.f32 %v964, %v908
  %v966 = vadd.f32 %v965, %v910
  %v967 = vadd.f32 %v966, %v912
  %v968 = vadd.f32 %v967, %v914
  %v969 = vrot.slane %v968, 4
  %v970 = vadd.f32 %v968, %v969
  %v971 = vrot.slane %v970, 2
  %v972 = vadd.f32 %v970, %v971
  %v973 = vrot.slane %v972, 1
  %v974 = vadd.f32 %v972, %v973
  %v975 = vmul.f32 %v865, %v865
  %v976 = vmul.f32 %v866, %v866
  %v977 = vmul.f32 %v867, %v867
  %v978 = vmul.f32 %v868, %v868
  %v979 = vmul.f32 %v869, %v869
  %v980 = vmul.f32 %v870, %v870
  %v981 = vmul.f32 %v871, %v871
  %v982 = vmul.f32 %v872, %v872
  %v983 = vmul.f32 %v873, %v873
  %v984 = vmul.f32 %v874, %v874
  %v985 = vmul.f32 %v875, %v875
  %v986 = vmul.f32 %v876, %v876
  %v987 = vmul.f32 %v877, %v877
  %v988 = vmul.f32 %v878, %v878
  %v989 = vmul.f32 %v879, %v879
  %v990 = vmul.f32 %v880, %v880
  %v991 = vmul.f32 %v881, %v881
  %v992 = vmul.f32 %v882, %v882
  %v993 = vmul.f32 %v883, %v883
  %v994 = vmul.f32 %v884, %v884
  %v995 = vmul.f32 %v885, %v885
  %v996 = vmul.f32 %v886, %v886
  %v997 = vmul.f32 %v887, %v887
  %v998 = vmul.f32 %v888, %v888
  %v999 = vmul.f32 %v889, %v889
  %v1000 = vmul.f32 %v890, %v890
  %v1001 = vmul.f32 %v891, %v891
  %v1002 = vmul.f32 %v892, %v892
  %v1003 = vmul.f32 %v893, %v893
  %v1004 = vmul.f32 %v894, %v894
  %v1005 = vmul.f32 %v895, %v895
  %v1006 = vmul.f32 %v896, %v896
  %v1007 = vmul.f32 %v897, %v897
  %v1008 = vmul.f32 %v898, %v898
  %v1009 = vmul.f32 %v899, %v899
  %v1010 = vmul.f32 %v900, %v900
  %v1011 = vmul.f32 %v901, %v901
  %v1012 = vmul.f32 %v902, %v902
  %v1013 = vmul.f32 %v903, %v903
  %v1014 = vmul.f32 %v904, %v904
  %v1015 = vmul.f32 %v905, %v905
  %v1016 = vmul.f32 %v906, %v906
  %v1017 = vmul.f32 %v907, %v907
  %v1018 = vmul.f32 %v908, %v908
  %v1019 = vmul.f32 %v909, %v909
  %v1020 = vmul.f32 %v910, %v910
  %v1021 = vmul.f32 %v911, %v911
  %v1022 = vmul.f32 %v912, %v912
  %v1023 = vmul.f32 %v913, %v913
  %v1024 = vmul.f32 %v914, %v914
  %v1025 = vadd.f32 %v975, %v977
  %v1026 = vadd.f32 %v1025, %v979
  %v1027 = vadd.f32 %v1026, %v981
  %v1028 = vadd.f32 %v1027, %v983
  %v1029 = vadd.f32 %v1028, %v985
  %v1030 = vadd.f32 %v1029, %v987
  %v1031 = vadd.f32 %v1030, %v989
  %v1032 = vadd.f32 %v1031, %v991
  %v1033 = vadd.f32 %v1032, %v993
  %v1034 = vadd.f32 %v1033, %v995
  %v1035 = vadd.f32 %v1034, %v997
  %v1036 = vadd.f32 %v1035, %v999
  %v1037 = vadd.f32 %v1036, %v1001
  %v1038 = vadd.f32 %v1037, %v1003
  %v1039 = vadd.f32 %v1038, %v1005
  %v1040 = vadd.f32 %v1039, %v1007
  %v1041 = vadd.f32 %v1040, %v1009
  %v1042 = vadd.f32 %v1041, %v1011
  %v1043 = vadd.f32 %v1042, %v1013
  %v1044 = vadd.f32 %v1043, %v1015
  %v1045 = vadd.f32 %v1044, %v1017
  %v1046 = vadd.f32 %v1045, %v1019
  %v1047 = vadd.f32 %v1046, %v1021
  %v1048 = vadd.f32 %v1047, %v1023
  %v1049 = vrot.slane %v1048, 4
  %v1050 = vadd.f32 %v1048, %v1049
  %v1051 = vrot.slane %v1050, 2
  %v1052 = vadd.f32 %v1050, %v1051
  %v1053 = vrot.slane %v1052, 1
  %v1054 = vadd.f32 %v1052, %v1053
  %v1055 = vadd.f32 %v976, %v978
  %v1056 = vadd.f32 %v1055, %v980
  %v1057 = vadd.f32 %v1056, %v982
  %v1058 = vadd.f32 %v1057, %v984
  %v1059 = vadd.f32 %v1058, %v986
  %v1060 = vadd.f32 %v1059, %v988
  %v1061 = vadd.f32 %v1060, %v990
  %v1062 = vadd.f32 %v1061, %v992
  %v1063 = vadd.f32 %v1062, %v994
  %v1064 = vadd.f32 %v1063, %v996
  %v1065 = vadd.f32 %v1064, %v998
  %v1066 = vadd.f32 %v1065, %v1000
  %v1067 = vadd.f32 %v1066, %v1002
  %v1068 = vadd.f32 %v1067, %v1004
  %v1069 = vadd.f32 %v1068, %v1006
  %v1070 = vadd.f32 %v1069, %v1008
  %v1071 = vadd.f32 %v1070, %v1010
  %v1072 = vadd.f32 %v1071, %v1012
  %v1073 = vadd.f32 %v1072, %v1014
  %v1074 = vadd.f32 %v1073, %v1016
  %v1075 = vadd.f32 %v1074, %v1018
  %v1076 = vadd.f32 %v1075, %v1020
  %v1077 = vadd.f32 %v1076, %v1022
  %v1078 = vadd.f32 %v1077, %v1024
  %v1079 = vrot.slane %v1078, 4
  %v1080 = vadd.f32 %v1078, %v1079
  %v1081 = vrot.slane %v1080, 2
  %v1082 = vadd.f32 %v1080, %v1081
  %v1083 = vrot.slane %v1082, 1
  %v1084 = vadd.f32 %v1082, %v1083
  %v1087 = vcombine.low %v944, %v974
  %v1089 = vunpack.c.l.s4 1966171168
  %v1090 = vunpack.c.0.s8 %v1089
  %v1091 = vlaneseq
  %v1092 = vshrl.u32 %v1091, 7
  %v1093 = vsub.s32 %v1090, %v1092
  %v1094 = vrot.slane %v1087, %v1093
  %v1096 = vunpack.c.l.s4 1966171168
  %v1097 = vunpack.c.0.s8 %v1096
  %v1098 = vlaneseq
  %v1099 = vshrl.u32 %v1098, 7
  %v1100 = vsub.s32 %v1097, %v1099
  %v1101 = vrot.slane %v1094, %v1100
  %v1103 = vlaneseq
  %vm1104 = vcmp.ge.s32.totalorder %v1103, 0
  %vm1105 = vcmp.lt.s32.totalorder %v1103, 256
  %vm1106 = vmand %vm1104, %vm1105
  %1107 = vst.msk [vmem:[%s4] sm:$0x3] %vm1106, %v1101
  %v1110 = vcombine.low %v1054, %v1084
  %v1112 = vunpack.c.l.s4 1966171168
  %v1113 = vunpack.c.0.s8 %v1112
  %v1114 = vlaneseq
  %v1115 = vshrl.u32 %v1114, 7
  %v1116 = vsub.s32 %v1113, %v1115
  %v1117 = vrot.slane %v1110, %v1116
  %v1119 = vunpack.c.l.s4 1966171168
  %v1120 = vunpack.c.0.s8 %v1119
  %v1121 = vlaneseq
  %v1122 = vshrl.u32 %v1121, 7
  %v1123 = vsub.s32 %v1120, %v1122
  %v1124 = vrot.slane %v1117, %v1123
  %1126 = vst.msk [vmem:[%s5] sm:$0x3] %vm1106, %v1124
  // Predicated region
  $region14: #{forward.4} parent=0 // pred_check
    _
  $region15: #{forward.4} parent=0 // pred_check_branch
    %1128 = sbr.rel (0) target = $region17
  $region16: #{forward.4} parent=0 // pred_region
    _
  $region17: #{forward.4} parent=0 // pred_fallthru
    _
  // Predicated region
  $region18: #{forward.4} parent=0 // pred_check
    _
  $region19: #{forward.4} parent=0 // pred_check_branch
    %1130 = sbr.rel (0) target = $region21
  $region20: #{forward.4} parent=0 // pred_region
    _
  $region21: #{forward.4} parent=0 // pred_fallthru
    _
  // Predicated region
  $region22: #{forward.4} parent=0 // pred_check
    _
  $region23: #{forward.4} parent=0 // pred_check_branch
    %1132 = sbr.rel (0) target = $region25
  $region24: #{forward.4} parent=0 // pred_region
    _
  $region25: #{forward.4} parent=0 // pred_fallthru
    _
  // Predicated region
  $region26: #{forward.4} parent=0 // pred_check
    _
  $region27: #{forward.4} parent=0 // pred_check_branch
    %1134 = sbr.rel (0) target = $region29
  $region28: #{forward.4} parent=0 // pred_region
    _
  $region29: #{forward.4} parent=0 // pred_fallthru
    _
  // Predicated region
  $region30: #{forward.4} parent=0 // pred_check
    _
  $region31: #{forward.4} parent=0 // pred_check_branch
    %1136 = sbr.rel (0) target = $region33
  $region32: #{forward.4} parent=0 // pred_region
    _
  $region33: #{forward.4} parent=0 // pred_fallthru
    _
  // Predicated region
  $region34: #{forward.4} parent=0 // pred_check
    _
  $region35: #{forward.4} parent=0 // pred_check_branch
    %1138 = sbr.rel (0) target = $region37
  $region36: #{forward.4} parent=0 // pred_region
    _
  $region37: #{forward.4} parent=0 // pred_fallthru
    _

// kernel: forward.7
$region0: #{forward.7}
  #allocation0 [shape = 'u32[]', space=smem, size = 0x4, offset = 0x4, fixed_abs, tag = 'smem constant byte address 0x4 - core index']
  #allocation1 [shape = 'u32[144,128]{1,0:T(1,128)}', space=vmem, size = 0x12000, scoped, tag = 'internal scratch']
  #allocation2 [shape = 'f32[2,128]{1,0:T(2,128)}', space=vmem, size = 0x400, scoped, tag = 'scratch operand']
  #allocation3 [shape = 'f32[2,128]{1,0:T(2,128)}', space=vmem, size = 0x400, scoped, tag = 'scratch operand']
  %s0 = inlined_call_operand.vmem [shape: f32[2,2,512], index: 0, kind: input, shape index: {}]
  %s1 = inlined_call_operand.vmem [shape: f32[128,512], index: 1, kind: input, shape index: {}]
  %s2 = inlined_call_operand.vmem [shape: f32[2,2,128], index: 2, kind: output, shape index: {}]
  %s3 = sld [smem:[#allocation0]]
  $region45: #{forward.7} parent=0
    _
  %s5 = ssub.s32 1, %s3
  %s6 = scalar_select 0, %s5, %s3
  loop: start=0, step=1, limit=4
  $region2: #{forward.7} parent=0 // loop_pre_header
    _
  $region3: #{forward.7} parent=0 // loop_header
    %s8 = sphi 0, %s12
    %p9 = scmp.ge.s32.totalorder %s8, 4
    %s18 = sphi 0, %s20
    %s21 = sphi 0, %s18
    %s22 = sphi 0, %s21
    %s38 = sphi 0, %s22
    %s42 = sphi 0, %s42
    %s44 = sphi 0, %s42
    %s45 = sphi 0, %s44
    %s59 = sphi 0, %s45
    %s65 = sphi 0, %s67
    %s68 = sphi 0, %s65
    %s69 = sphi 0, %s68
    %s85 = sphi 0, %s69
  $region4: #{forward.7} parent=0 // loop_header_branch
    %11 = sbr.rel (%p9) target = $region8
  $region5: #{forward.7} parent=0 // loop_body
    %s13 = ssub.s32 %s8, 1
    %s14 = ssub.s32 %s8, 2
    %s15 = sadd.s32 %s8, 1
    %s16 = ssub.s32 %s8, %s15
    %p17 = scmp.eq.s32.totalorder %s16, 0
    %s19 = sadd.s32 %s18, 1
    %s20 = scalar_select %p17, %s18, %s19
    %p23 = pneg %p17
    %p24 = scmp.eq.s32.totalorder %s8, 1
    %p25 = por %p23, %p24
    %p26 = scmp.ne.s32.totalorder %s18, %s21
    %p27 = scmp.eq.s32.totalorder %s8, 0
    %p28 = por %p26, %p27
    %p29 = scmp.ne.s32.totalorder %s18, %s21
    %p30 = scmp.eq.s32.totalorder %s13, 1
    %p31 = por %p29, %p30
    %p32 = scmp.ne.s32.totalorder %s21, %s22
    %p33 = scmp.eq.s32.totalorder %s13, 0
    %p34 = por %p32, %p33
    %p35 = scmp.ne.s32.totalorder %s21, %s22
    %p36 = scmp.eq.s32.totalorder %s14, 1
    %p37 = por %p35, %p36
    %p39 = scmp.ne.s32.totalorder %s22, %s38
    %p40 = scmp.eq.s32.totalorder %s14, 0
    %p41 = por %p39, %p40
    %s43 = sadd.s32 %s42, 1
    %p46 = scmp.eq.s32.totalorder %s8, 1
    %p47 = scmp.ne.s32.totalorder %s42, %s44
    %p48 = scmp.eq.s32.totalorder %s8, 0
    %p49 = por %p47, %p48
    %p50 = scmp.ne.s32.totalorder %s42, %s44
    %p51 = scmp.eq.s32.totalorder %s13, 1
    %p52 = por %p50, %p51
    %p53 = scmp.ne.s32.totalorder %s44, %s45
    %p54 = scmp.eq.s32.totalorder %s13, 0
    %p55 = por %p53, %p54
    %p56 = scmp.ne.s32.totalorder %s44, %s45
    %p57 = scmp.eq.s32.totalorder %s14, 1
    %p58 = por %p56, %p57
    %p60 = scmp.ne.s32.totalorder %s45, %s59
    %p61 = scmp.eq.s32.totalorder %s14, 0
    %p62 = por %p60, %p61
    %s63 = ssub.s32 %s8, %s15
    %p64 = scmp.eq.s32.totalorder %s63, 0
    %s66 = sadd.s32 %s65, 1
    %s67 = scalar_select %p64, %s65, %s66
    %p70 = pneg %p64
    %p71 = scmp.eq.s32.totalorder %s8, 1
    %p72 = por %p70, %p71
    %p73 = scmp.ne.s32.totalorder %s65, %s68
    %p74 = scmp.eq.s32.totalorder %s8, 0
    %p75 = por %p73, %p74
    %p76 = scmp.ne.s32.totalorder %s65, %s68
    %p77 = scmp.eq.s32.totalorder %s13, 1
    %p78 = por %p76, %p77
    %p79 = scmp.ne.s32.totalorder %s68, %s69
    %p80 = scmp.eq.s32.totalorder %s13, 0
    %p81 = por %p79, %p80
    %p82 = scmp.ne.s32.totalorder %s68, %s69
    %p83 = scmp.eq.s32.totalorder %s14, 1
    %p84 = por %p82, %p83
    %p86 = scmp.ne.s32.totalorder %s69, %s85
    %p87 = scmp.eq.s32.totalorder %s14, 0
    %p88 = por %p86, %p87
    %p89 = scmp.le.s32.totalorder 1, %s8
    %p90 = scmp.lt.s32.totalorder %s8, 3
    %p91 = pnand %p89, %p90
    %p92 = pneg %p91
    // Predicated region
    $region9: #{forward.7} parent=5 // pred_check
      _
    $region10: #{forward.7} parent=5 // pred_check_branch
      %94 = sbr.rel (%p91) target = $region12
    $region11: #{forward.7} parent=5 // pred_region
      %s95 = ssub.s32 %s8, 1
      // Predicated region
      $region13: #{forward.7} parent=11 // pred_check
        %p96 = pneg %p55
      $region14: #{forward.7} parent=11 // pred_check_branch
        %98 = sbr.rel (%p96) target = $region16
      $region15: #{forward.7} parent=11 // pred_region
        _
      $region16: #{forward.7} parent=11 // pred_fallthru
        _
    $region12: #{forward.7} parent=5 // pred_fallthru
      _
    %p99 = scmp.lt.s32.totalorder %s8, 2
    // Predicated region
    $region17: #{forward.7} parent=5 // pred_check
      %p100 = pneg %p99
    $region18: #{forward.7} parent=5 // pred_check_branch
      %102 = sbr.rel (%p100) target = $region20
    $region19: #{forward.7} parent=5 // pred_region
      // Predicated region
      $region21: #{forward.7} parent=19 // pred_check
        %p103 = pneg %p28
      $region22: #{forward.7} parent=19 // pred_check_branch
        %105 = sbr.rel (%p103) target = $region24
      $region23: #{forward.7} parent=19 // pred_region
        %p106 = scmp.lt.s32.totalorder %s8, 1
        %s107 = scalar_select %p106, %s8, 1
        %s108 = smul.addr %s107, 4
        %s109 = smul.addr %s108, 2
        %s110 = scalar_lea.vmem %s0, %s109
      $region24: #{forward.7} parent=19 // pred_fallthru
        _
    $region20: #{forward.7} parent=5 // pred_fallthru
      _
    %p111 = scmp.le.s32.totalorder 1, %s8
    %p112 = scmp.lt.s32.totalorder %s8, 3
    %p113 = pnand %p111, %p112
    %p114 = pneg %p113
    // Predicated region
    $region25: #{forward.7} parent=5 // pred_check
      _
    $region26: #{forward.7} parent=5 // pred_check_branch
      %116 = sbr.rel (%p113) target = $region28
    $region27: #{forward.7} parent=5 // pred_region
      %s117 = ssub.s32 %s8, 1
      %p118 = scmp.lt.s32.totalorder %s13, 1
      %s119 = scalar_select %p118, %s13, 1
      %s120 = smul.addr %s119, 4
      %s121 = smul.addr %s120, 2
      %s122 = scalar_lea.vmem %s0, %s121
      %p123 = pneg %p34
      %p124 = pneg %p31
      %p125 = pneg %p55
      %p126 = pneg %p52
      %p127 = pneg %p81
      %p128 = pneg %p78
      %p129 = scmp.lt.s32.totalorder %s13, 1
      %s130 = scalar_select %p129, %s13, 1
      %s131 = smul.addr %s130, 2
      %s132 = scalar_lea.vmem %s2, %s131
      %p133 = scmp.lt.s32.totalorder %s13, 1
      %s134 = scalar_select %p133, %s13, 1
      %s135 = smul.addr %s134, 4
      %s136 = smul.addr %s135, 2
      %s137 = scalar_lea.vmem %s0, %s136
      %p138 = scmp.lt.s32.totalorder %s13, 1
      %s139 = scalar_select %p138, %s13, 1
      %s140 = smul.addr %s139, 2
      %s141 = scalar_lea.vmem %s2, %s140
      %p142 = scmp.eq.s32.totalorder %s13, 0
      // Predicated region
      $region29: #{forward.7} parent=27 // pred_check
        %p143 = pneg %p142
      $region30: #{forward.7} parent=27 // pred_check_branch
        %145 = sbr.rel (%p143) target = $region32
      $region31: #{forward.7} parent=27 // pred_region
        %146 = vst [vmem:[#allocation2] sm:$0x3] 0.0
        %147 = vst [vmem:[#allocation3] sm:$0x3] 0.0
      $region32: #{forward.7} parent=27 // pred_fallthru
        _
      %v148 = vld [vmem:[%s137] sm:$0xff]
      %v149 = vld [vmem:[#allocation2] sm:$0x3]
      %v150 = vld [vmem:[%s1] sm:$0xff]
      %v151 = vld [vmem:[%s1 + $0x8] sm:$0xff]
      %v152 = vld [vmem:[%s1 + $0x10] sm:$0xff]
      %v153 = vld [vmem:[%s1 + $0x18] sm:$0xff]
      %v154 = vld [vmem:[%s1 + $0x20] sm:$0xff]
      %v155 = vld [vmem:[%s1 + $0x28] sm:$0xff]
      %v156 = vld [vmem:[%s1 + $0x30] sm:$0xff]
      %v157 = vld [vmem:[%s1 + $0x38] sm:$0xff]
      %v158 = vld [vmem:[%s1 + $0x40] sm:$0xff]
      %v159 = vld [vmem:[%s1 + $0x48] sm:$0xff]
      %v160 = vld [vmem:[%s1 + $0x50] sm:$0xff]
      %v161 = vld [vmem:[%s1 + $0x58] sm:$0xff]
      %v162 = vld [vmem:[%s1 + $0x60] sm:$0xff]
      %v163 = vld [vmem:[%s1 + $0x68] sm:$0xff]
      %v164 = vld [vmem:[%s1 + $0x70] sm:$0xff]
      %v165 = vld [vmem:[%s1 + $0x78] sm:$0xff]
      %v166 = vld [vmem:[%s1 + $0x80] sm:$0xff]
      %v167 = vld [vmem:[%s1 + $0x88] sm:$0xff]
      %v168 = vld [vmem:[%s1 + $0x90] sm:$0xff]
      %v169 = vld [vmem:[%s1 + $0x98] sm:$0xff]
      %v170 = vld [vmem:[%s1 + $0xa0] sm:$0xff]
      %v171 = vld [vmem:[%s1 + $0xa8] sm:$0xff]
      %v172 = vld [vmem:[%s1 + $0xb0] sm:$0xff]
      %v173 = vld [vmem:[%s1 + $0xb8] sm:$0xff]
      %v174 = vld [vmem:[%s1 + $0xc0] sm:$0xff]
      %v175 = vld [vmem:[%s1 + $0xc8] sm:$0xff]
      %v176 = vld [vmem:[%s1 + $0xd0] sm:$0xff]
      %v177 = vld [vmem:[%s1 + $0xd8] sm:$0xff]
      %v178 = vld [vmem:[%s1 + $0xe0] sm:$0xff]
      %v179 = vld [vmem:[%s1 + $0xe8] sm:$0xff]
      %v180 = vld [vmem:[%s1 + $0xf0] sm:$0xff]
      %v181 = vld [vmem:[%s1 + $0xf8] sm:$0xff]
      %v182 = vld [vmem:[%s1 + $0x100] sm:$0xff]
      %v183 = vld [vmem:[%s1 + $0x108] sm:$0xff]
      %v184 = vld [vmem:[%s1 + $0x110] sm:$0xff]
      %v185 = vld [vmem:[%s1 + $0x118] sm:$0xff]
      %v186 = vld [vmem:[%s1 + $0x120] sm:$0xff]
      %v187 = vld [vmem:[%s1 + $0x128] sm:$0xff]
      %v188 = vld [vmem:[%s1 + $0x130] sm:$0xff]
      %v189 = vld [vmem:[%s1 + $0x138] sm:$0xff]
      %v190 = vld [vmem:[%s1 + $0x140] sm:$0xff]
      %v191 = vld [vmem:[%s1 + $0x148] sm:$0xff]
      %v192 = vld [vmem:[%s1 + $0x150] sm:$0xff]
      %v193 = vld [vmem:[%s1 + $0x158] sm:$0xff]
      %v194 = vld [vmem:[%s1 + $0x160] sm:$0xff]
      %v195 = vld [vmem:[%s1 + $0x168] sm:$0xff]
      %v196 = vld [vmem:[%s1 + $0x170] sm:$0xff]
      %v197 = vld [vmem:[%s1 + $0x178] sm:$0xff]
      %v198 = vld [vmem:[%s1 + $0x180] sm:$0xff]
      %v199 = vld [vmem:[%s1 + $0x188] sm:$0xff]
      %v200 = vld [vmem:[%s1 + $0x190] sm:$0xff]
      %v201 = vld [vmem:[%s1 + $0x198] sm:$0xff]
      %v202 = vld [vmem:[%s1 + $0x1a0] sm:$0xff]
      %v203 = vld [vmem:[%s1 + $0x1a8] sm:$0xff]
      %v204 = vld [vmem:[%s1 + $0x1b0] sm:$0xff]
      %v205 = vld [vmem:[%s1 + $0x1b8] sm:$0xff]
      %v206 = vld [vmem:[%s1 + $0x1c0] sm:$0xff]
      %v207 = vld [vmem:[%s1 + $0x1c8] sm:$0xff]
      %v208 = vld [vmem:[%s1 + $0x1d0] sm:$0xff]
      %v209 = vld [vmem:[%s1 + $0x1d8] sm:$0xff]
      %v210 = vld [vmem:[%s1 + $0x1e0] sm:$0xff]
      %v211 = vld [vmem:[%s1 + $0x1e8] sm:$0xff]
      %v212 = vld [vmem:[%s1 + $0x1f0] sm:$0xff]
      %v213 = vld [vmem:[%s1 + $0x1f8] sm:$0xff]
      %214 = vmatprep.subr.mxu0 %v151
      %215 = vmatpush1.msra.mxu0 %v150
      %216 = vmatprep.subr.mxu0 %v155
      %217 = vmatpush1.msra.mxu0 %v154
      %218 = vmatprep.subr.mxu0 %v159
      %219 = vmatpush1.msra.mxu0 %v158
      %220 = vmatprep.subr.mxu0 %v163
      %221 = vmatpush1.msra.mxu0 %v162
      %222 = vmatprep.subr.mxu0 %v167
      %223 = vmatpush1.msra.mxu0 %v166
      %224 = vmatprep.subr.mxu0 %v171
      %225 = vmatpush1.msra.mxu0 %v170
      %226 = vmatprep.subr.mxu0 %v175
      %227 = vmatpush1.msra.mxu0 %v174
      %228 = vmatprep.subr.mxu0 %v179
      %229 = vmatpush1.msra.mxu0 %v178
      %230 = vmatprep.subr.mxu0 %v183
      %231 = vmatpush1.msra.mxu0 %v182
      %232 = vmatprep.subr.mxu0 %v187
      %233 = vmatpush1.msra.mxu0 %v186
      %234 = vmatprep.subr.mxu0 %v191
      %235 = vmatpush1.msra.mxu0 %v190
      %236 = vmatprep.subr.mxu0 %v195
      %237 = vmatpush1.msra.mxu0 %v194
      %238 = vmatprep.subr.mxu0 %v199
      %239 = vmatpush1.msra.mxu0 %v198
      %240 = vmatprep.subr.mxu0 %v203
      %241 = vmatpush1.msra.mxu0 %v202
      %242 = vmatprep.subr.mxu0 %v207
      %243 = vmatpush1.msra.mxu0 %v206
      %244 = vmatprep.subr.mxu0 %v211
      %245 = vmatpush1.msra.mxu0 %v210
      %246 = vmatprep.subr.mxu0 0.0
      %247 = vmatpush1.msra.mxu0 0.0
      %248 = vmatprep.subr.mxu0 0.0
      %249 = vmatpush1.msra.mxu0 0.0
      %250 = vmatprep.subr.mxu0 0.0
      %251 = vmatpush1.msra.mxu0 0.0
      %252 = vmatprep.subr.mxu0 0.0
      %253 = vmatpush1.msra.mxu0 0.0
      %254 = vmatprep.subr.mxu0 0.0
      %255 = vmatpush1.msra.mxu0 0.0
      %256 = vmatprep.subr.mxu0 0.0
      %257 = vmatpush1.msra.mxu0 0.0
      %258 = vmatprep.subr.mxu0 0.0
      %259 = vmatpush1.msra.mxu0 0.0
      %260 = vmatprep.subr.mxu0 0.0
      %261 = vmatpush1.msra.mxu0 0.0
      %262 = vmatprep.subr.mxu0 0.0
      %263 = vmatpush1.msra.mxu0 0.0
      %264 = vmatprep.subr.mxu0 0.0
      %265 = vmatpush1.msra.mxu0 0.0
      %266 = vmatprep.subr.mxu0 0.0
      %267 = vmatpush1.msra.mxu0 0.0
      %268 = vmatprep.subr.mxu0 0.0
      %269 = vmatpush1.msra.mxu0 0.0
      %270 = vmatprep.subr.mxu0 0.0
      %271 = vmatpush1.msra.mxu0 0.0
      %272 = vmatprep.subr.mxu0 0.0
      %273 = vmatpush1.msra.mxu0 0.0
      %274 = vmatprep.subr.mxu0 0.0
      %275 = vmatpush1.msra.mxu0 0.0
      %276 = vmatprep.subr.mxu0 0.0
      %277 = vmatpush1.msra.mxu0 0.0
      %278 = vmatprep.mubr.f32.mxu0 0.0
      %279 = vmatmul.mubr.f32.gmra.mrb[0].mxu0 %v149
      %v280 = vpop.f32.mrb[0].mxu0
      %v281 = vadd.f32 0.0, %v280
      %v282 = vpop.f32.mrb[0].mxu0
      %v283 = vadd.f32 0.0, %v282
      %284 = vdwg.mxu0
      %285 = vmatprep.subr.mxu0 %v153
      %286 = vmatpush1.msra.mxu0 %v152
      %287 = vmatprep.subr.mxu0 %v157
      %288 = vmatpush1.msra.mxu0 %v156
      %289 = vmatprep.subr.mxu0 %v161
      %290 = vmatpush1.msra.mxu0 %v160
      %291 = vmatprep.subr.mxu0 %v165
      %292 = vmatpush1.msra.mxu0 %v164
      %293 = vmatprep.subr.mxu0 %v169
      %294 = vmatpush1.msra.mxu0 %v168
      %295 = vmatprep.subr.mxu0 %v173
      %296 = vmatpush1.msra.mxu0 %v172
      %297 = vmatprep.subr.mxu0 %v177
      %298 = vmatpush1.msra.mxu0 %v176
      %299 = vmatprep.subr.mxu0 %v181
      %300 = vmatpush1.msra.mxu0 %v180
      %301 = vmatprep.subr.mxu0 %v185
      %302 = vmatpush1.msra.mxu0 %v184
      %303 = vmatprep.subr.mxu0 %v189
      %304 = vmatpush1.msra.mxu0 %v188
      %305 = vmatprep.subr.mxu0 %v193
      %306 = vmatpush1.msra.mxu0 %v192
      %307 = vmatprep.subr.mxu0 %v197
      %308 = vmatpush1.msra.mxu0 %v196
      %309 = vmatprep.subr.mxu0 %v201
      %310 = vmatpush1.msra.mxu0 %v200
      %311 = vmatprep.subr.mxu0 %v205
      %312 = vmatpush1.msra.mxu0 %v204
      %313 = vmatprep.subr.mxu0 %v209
      %314 = vmatpush1.msra.mxu0 %v208
      %315 = vmatprep.subr.mxu0 %v213
      %316 = vmatpush1.msra.mxu0 %v212
      %317 = vmatprep.subr.mxu0 0.0
      %318 = vmatpush1.msra.mxu0 0.0
      %319 = vmatprep.subr.mxu0 0.0
      %320 = vmatpush1.msra.mxu0 0.0
      %321 = vmatprep.subr.mxu0 0.0
      %322 = vmatpush1.msra.mxu0 0.0
      %323 = vmatprep.subr.mxu0 0.0
      %324 = vmatpush1.msra.mxu0 0.0
      %325 = vmatprep.subr.mxu0 0.0
      %326 = vmatpush1.msra.mxu0 0.0
      %327 = vmatprep.subr.mxu0 0.0
      %328 = vmatpush1.msra.mxu0 0.0
      %329 = vmatprep.subr.mxu0 0.0
      %330 = vmatpush1.msra.mxu0 0.0
      %331 = vmatprep.subr.mxu0 0.0
      %332 = vmatpush1.msra.mxu0 0.0
      %333 = vmatprep.subr.mxu0 0.0
      %334 = vmatpush1.msra.mxu0 0.0
      %335 = vmatprep.subr.mxu0 0.0
      %336 = vmatpush1.msra.mxu0 0.0
      %337 = vmatprep.subr.mxu0 0.0
      %338 = vmatpush1.msra.mxu0 0.0
      %339 = vmatprep.subr.mxu0 0.0
      %340 = vmatpush1.msra.mxu0 0.0
      %341 = vmatprep.subr.mxu0 0.0
      %342 = vmatpush1.msra.mxu0 0.0
      %343 = vmatprep.subr.mxu0 0.0
      %344 = vmatpush1.msra.mxu0 0.0
      %345 = vmatprep.subr.mxu0 0.0
      %346 = vmatpush1.msra.mxu0 0.0
      %347 = vmatprep.subr.mxu0 0.0
      %348 = vmatpush1.msra.mxu0 0.0
      %349 = vmatprep.mubr.f32.mxu0 0.0
      %350 = vmatmul.mubr.f32.gmra.mrb[0].mxu0 %v149
      %v351 = vpop.f32.mrb[0].mxu0
      %v352 = vadd.f32 0.0, %v351
      %v353 = vpop.f32.mrb[0].mxu0
      %v354 = vadd.f32 0.0, %v353
      %355 = vdwg.mxu0
      %v360 = vcombine.low %v281, %v283
      %v361 = vcombine.low %v352, %v354
      %v363 = vunpack.c.l.s4 1983009808
      %v364 = vunpack.c.0.s8 %v363
      %v365 = vlaneseq
      %v366 = vshrl.u32 %v365, 7
      %v367 = vsub.s32 %v364, %v366
      %v368 = vrot.slane %v360, %v367
      %v370 = vunpack.c.l.s4 1983009808
      %v371 = vunpack.c.0.s8 %v370
      %v372 = vlaneseq
      %v373 = vshrl.u32 %v372, 7
      %v374 = vsub.s32 %v371, %v373
      %v375 = vrot.slane %v361, %v374
      %v376 = vcombine.low %v368, %v375
      %v378 = vadd.f32 %v148, %v376
      %v379 = vxor.u32 %v378, 2147483648
      %v380 = vmul.f32 %v379, 1.442695
      %v381 = vpow.pop %v380
      %v382 = vadd.f32 %v381, 1.0
      %v383 = vrcp.pop %v382
      %v384 = vmul.f32 1.0, %v383
      %v386 = vrot.slane %v378, 2
      %v388 = vxor.u32 %v386, 2147483648
      %v389 = vmul.f32 %v388, 1.442695
      %v390 = vpow.pop %v389
      %v391 = vadd.f32 %v390, 1.0
      %v392 = vrcp.pop %v391
      %v393 = vmul.f32 1.0, %v392
      %v394 = vrot.slane %v378, 4
      %v396 = vtanh.pop %v394
      %v397 = vrot.slane %v378, 6
      %v399 = vxor.u32 %v397, 2147483648
      %v400 = vmul.f32 %v399, 1.442695
      %v401 = vpow.pop %v400
      %v402 = vadd.f32 %v401, 1.0
      %v403 = vrcp.pop %v402
      %v404 = vmul.f32 1.0, %v403
      %v405 = vld [vmem:[#allocation3] sm:$0x3]
      %v406 = vmul.f32 %v393, %v405
      %v407 = vmul.f32 %v384, %v396
      %v408 = vadd.f32 %v406, %v407
      %v409 = vtanh.pop %v408
      %v410 = vmul.f32 %v404, %v409
      %411 = vst [vmem:[#allocation3] sm:$0x3] %v408
      %412 = vst [vmem:[#allocation2] sm:$0x3] %v410
      %413 = vst [vmem:[%s141] sm:$0x3] %v410
      %p414 = scmp.lt.s32.totalorder %s13, 1
      %s415 = scalar_select %p414, %s13, 1
      %s416 = smul.addr %s415, 2
      %s417 = scalar_lea.vmem %s2, %s416
      // Predicated region
      $region33: #{forward.7} parent=27 // pred_check
        %p418 = pneg %p78
      $region34: #{forward.7} parent=27 // pred_check_branch
        %420 = sbr.rel (%p418) target = $region36
      $region35: #{forward.7} parent=27 // pred_region
        _
      $region36: #{forward.7} parent=27 // pred_fallthru
        _
    $region28: #{forward.7} parent=5 // pred_fallthru
      _
    %p421 = scmp.le.s32.totalorder 2, %s8
    // Predicated region
    $region37: #{forward.7} parent=5 // pred_check
      %p422 = pneg %p421
    $region38: #{forward.7} parent=5 // pred_check_branch
      %424 = sbr.rel (%p422) target = $region40
    $region39: #{forward.7} parent=5 // pred_region
      %s425 = ssub.s32 %s8, 2
      // Predicated region
      $region41: #{forward.7} parent=39 // pred_check
        %p426 = pneg %p84
      $region42: #{forward.7} parent=39 // pred_check_branch
        %428 = sbr.rel (%p426) target = $region44
      $region43: #{forward.7} parent=39 // pred_region
        %p429 = scmp.lt.s32.totalorder %s14, 1
        %s430 = scalar_select %p429, %s14, 1
        %s431 = smul.addr %s430, 2
        %s432 = scalar_lea.vmem %s2, %s431
      $region44: #{forward.7} parent=39 // pred_fallthru
        _
    $region40: #{forward.7} parent=5 // pred_fallthru
      _
  $region6: #{forward.7} parent=0 // loop_footer
    %s12 = sadd.s32 1, %s8
  $region7: #{forward.7} parent=0 // loop_footer_branch
    %7 = sbr.rel target = $region3
  $region8: #{forward.7} parent=0 // loop_exit
    _

// kernel: forward.6
$region0: #{forward.6}
  #allocation0 [shape = 'u32[]', space=smem, size = 0x4, offset = 0x4, fixed_abs, tag = 'smem constant byte address 0x4 - core index']
  #allocation1 [shape = 'u32[144,128]{1,0:T(1,128)}', space=vmem, size = 0x12000, scoped, tag = 'internal scratch']
  %s0 = inlined_call_operand.vmem [shape: f32[8,3136], index: 0, kind: input, shape index: {}]
  %s1 = inlined_call_operand.vmem [shape: f32[1,3136], index: 1, kind: input, shape index: {}]
  %s2 = inlined_call_operand.vmem [shape: f32[1,3136], index: 2, kind: input, shape index: {}]
  %s3 = inlined_call_operand.vmem [shape: f32[3136,64], index: 3, kind: input, shape index: {}]
  %s4 = inlined_call_operand.vmem [shape: f32[1,64], index: 4, kind: input, shape index: {}]
  %s5 = inlined_call_operand.vmem [shape: f32[64,512], index: 5, kind: input, shape index: {}]
  %s6 = inlined_call_operand.vmem [shape: f32[1,512], index: 6, kind: input, shape index: {}]
  %s7 = inlined_call_operand.vmem [shape: f32[8,512], index: 7, kind: output, shape index: {}]
  %s8 = sld [smem:[#allocation0]]
  $region38: #{forward.6} parent=0
    _
  %s10 = ssub.s32 1, %s8
  %s11 = scalar_select 0, %s10, %s8
  // Predicated region
  $region2: #{forward.6} parent=0 // pred_check
    _
  $region3: #{forward.6} parent=0 // pred_check_branch
    %13 = sbr.rel (0) target = $region5
  $region4: #{forward.6} parent=0 // pred_region
    _
  $region5: #{forward.6} parent=0 // pred_fallthru
    _
  // Predicated region
  $region6: #{forward.6} parent=0 // pred_check
    _
  $region7: #{forward.6} parent=0 // pred_check_branch
    %15 = sbr.rel (0) target = $region9
  $region8: #{forward.6} parent=0 // pred_region
    _
  $region9: #{forward.6} parent=0 // pred_fallthru
    _
  // Predicated region
  $region10: #{forward.6} parent=0 // pred_check
    _
  $region11: #{forward.6} parent=0 // pred_check_branch
    %17 = sbr.rel (0) target = $region13
  $region12: #{forward.6} parent=0 // pred_region
    _
  $region13: #{forward.6} parent=0 // pred_fallthru
    _
  // Predicated region
  $region14: #{forward.6} parent=0 // pred_check
    _
  $region15: #{forward.6} parent=0 // pred_check_branch
    %19 = sbr.rel (0) target = $region17
  $region16: #{forward.6} parent=0 // pred_region
    _
  $region17: #{forward.6} parent=0 // pred_fallthru
    _
  // Predicated region
  $region18: #{forward.6} parent=0 // pred_check
    _
  $region19: #{forward.6} parent=0 // pred_check_branch
    %21 = sbr.rel (0) target = $region21
  $region20: #{forward.6} parent=0 // pred_region
    _
  $region21: #{forward.6} parent=0 // pred_fallthru
    _
  // Predicated region
  $region22: #{forward.6} parent=0 // pred_check
    _
  $region23: #{forward.6} parent=0 // pred_check_branch
    %23 = sbr.rel (0) target = $region25
  $region24: #{forward.6} parent=0 // pred_region
    _
  $region25: #{forward.6} parent=0 // pred_fallthru
    _
  // Predicated region
  $region26: #{forward.6} parent=0 // pred_check
    _
  $region27: #{forward.6} parent=0 // pred_check_branch
    %25 = sbr.rel (0) target = $region29
  $region28: #{forward.6} parent=0 // pred_region
    _
  $region29: #{forward.6} parent=0 // pred_fallthru
    _
  %v26 = vld [vmem:[%s0] sm:$0xff]
  %v27 = vld [vmem:[%s0 + $0x8] sm:$0xff]
  %v28 = vld [vmem:[%s0 + $0x10] sm:$0xff]
  %v29 = vld [vmem:[%s0 + $0x18] sm:$0xff]
  %v30 = vld [vmem:[%s0 + $0x20] sm:$0xff]
  %v31 = vld [vmem:[%s0 + $0x28] sm:$0xff]
  %v32 = vld [vmem:[%s0 + $0x30] sm:$0xff]
  %v33 = vld [vmem:[%s0 + $0x38] sm:$0xff]
  %v34 = vld [vmem:[%s0 + $0x40] sm:$0xff]
  %v35 = vld [vmem:[%s0 + $0x48] sm:$0xff]
  %v36 = vld [vmem:[%s0 + $0x50] sm:$0xff]
  %v37 = vld [vmem:[%s0 + $0x58] sm:$0xff]
  %v38 = vld [vmem:[%s0 + $0x60] sm:$0xff]
  %v39 = vld [vmem:[%s0 + $0x68] sm:$0xff]
  %v40 = vld [vmem:[%s0 + $0x70] sm:$0xff]
  %v41 = vld [vmem:[%s0 + $0x78] sm:$0xff]
  %v42 = vld [vmem:[%s0 + $0x80] sm:$0xff]
  %v43 = vld [vmem:[%s0 + $0x88] sm:$0xff]
  %v44 = vld [vmem:[%s0 + $0x90] sm:$0xff]
  %v45 = vld [vmem:[%s0 + $0x98] sm:$0xff]
  %v46 = vld [vmem:[%s0 + $0xa0] sm:$0xff]
  %v47 = vld [vmem:[%s0 + $0xa8] sm:$0xff]
  %v48 = vld [vmem:[%s0 + $0xb0] sm:$0xff]
  %v49 = vld [vmem:[%s0 + $0xb8] sm:$0xff]
  %v50 = vld [vmem:[%s0 + $0xc0] sm:$0xff]
  %v51 = vld [vmem:[%s1] sm:$0xff]
  %v52 = vld [vmem:[%s1 + $0x8] sm:$0xff]
  %v53 = vld [vmem:[%s1 + $0x10] sm:$0xff]
  %v54 = vld [vmem:[%s1 + $0x18] sm:$0x1]
  %v59 = vlaneseq
  %v60 = vshrl.u32 %v59, 7
  %v61 = vsub.s32 0, %v60
  %v62 = vrot.slane %v51, %v61
  %v63 = vlaneseq
  %v64 = vshrl.u32 %v63, 7
  %v65 = vsub.s32 1, %v64
  %v66 = vrot.slane %v51, %v65
  %v67 = vlaneseq
  %v68 = vshrl.u32 %v67, 7
  %v69 = vsub.s32 2, %v68
  %v70 = vrot.slane %v51, %v69
  %v71 = vlaneseq
  %v72 = vshrl.u32 %v71, 7
  %v73 = vsub.s32 3, %v72
  %v74 = vrot.slane %v51, %v73
  %v75 = vlaneseq
  %v76 = vshrl.u32 %v75, 7
  %v77 = vsub.s32 4, %v76
  %v78 = vrot.slane %v51, %v77
  %v79 = vlaneseq
  %v80 = vshrl.u32 %v79, 7
  %v81 = vsub.s32 5, %v80
  %v82 = vrot.slane %v51, %v81
  %v83 = vlaneseq
  %v84 = vshrl.u32 %v83, 7
  %v85 = vsub.s32 6, %v84
  %v86 = vrot.slane %v51, %v85
  %v87 = vlaneseq
  %v88 = vshrl.u32 %v87, 7
  %v89 = vsub.s32 7, %v88
  %v90 = vrot.slane %v51, %v89
  %v91 = vlaneseq
  %v92 = vshrl.u32 %v91, 7
  %v93 = vsub.s32 0, %v92
  %v94 = vrot.slane %v52, %v93
  %v95 = vlaneseq
  %v96 = vshrl.u32 %v95, 7
  %v97 = vsub.s32 1, %v96
  %v98 = vrot.slane %v52, %v97
  %v99 = vlaneseq
  %v100 = vshrl.u32 %v99, 7
  %v101 = vsub.s32 2, %v100
  %v102 = vrot.slane %v52, %v101
  %v103 = vlaneseq
  %v104 = vshrl.u32 %v103, 7
  %v105 = vsub.s32 3, %v104
  %v106 = vrot.slane %v52, %v105
  %v107 = vlaneseq
  %v108 = vshrl.u32 %v107, 7
  %v109 = vsub.s32 4, %v108
  %v110 = vrot.slane %v52, %v109
  %v111 = vlaneseq
  %v112 = vshrl.u32 %v111, 7
  %v113 = vsub.s32 5, %v112
  %v114 = vrot.slane %v52, %v113
  %v115 = vlaneseq
  %v116 = vshrl.u32 %v115, 7
  %v117 = vsub.s32 6, %v116
  %v118 = vrot.slane %v52, %v117
  %v119 = vlaneseq
  %v120 = vshrl.u32 %v119, 7
  %v121 = vsub.s32 7, %v120
  %v122 = vrot.slane %v52, %v121
  %v123 = vlaneseq
  %v124 = vshrl.u32 %v123, 7
  %v125 = vsub.s32 0, %v124
  %v126 = vrot.slane %v53, %v125
  %v127 = vlaneseq
  %v128 = vshrl.u32 %v127, 7
  %v129 = vsub.s32 1, %v128
  %v130 = vrot.slane %v53, %v129
  %v131 = vlaneseq
  %v132 = vshrl.u32 %v131, 7
  %v133 = vsub.s32 2, %v132
  %v134 = vrot.slane %v53, %v133
  %v135 = vlaneseq
  %v136 = vshrl.u32 %v135, 7
  %v137 = vsub.s32 3, %v136
  %v138 = vrot.slane %v53, %v137
  %v139 = vlaneseq
  %v140 = vshrl.u32 %v139, 7
  %v141 = vsub.s32 4, %v140
  %v142 = vrot.slane %v53, %v141
  %v143 = vlaneseq
  %v144 = vshrl.u32 %v143, 7
  %v145 = vsub.s32 5, %v144
  %v146 = vrot.slane %v53, %v145
  %v147 = vlaneseq
  %v148 = vshrl.u32 %v147, 7
  %v149 = vsub.s32 6, %v148
  %v150 = vrot.slane %v53, %v149
  %v151 = vlaneseq
  %v152 = vshrl.u32 %v151, 7
  %v153 = vsub.s32 7, %v152
  %v154 = vrot.slane %v53, %v153
  %v155 = vlaneseq
  %v156 = vshrl.u32 %v155, 7
  %v157 = vsub.s32 0, %v156
  %v158 = vrot.slane %v54, %v157
  %v184 = vmul.f32 %v26, %v62
  %v185 = vmul.f32 %v27, %v66
  %v186 = vmul.f32 %v28, %v70
  %v187 = vmul.f32 %v29, %v74
  %v188 = vmul.f32 %v30, %v78
  %v189 = vmul.f32 %v31, %v82
  %v190 = vmul.f32 %v32, %v86
  %v191 = vmul.f32 %v33, %v90
  %v192 = vmul.f32 %v34, %v94
  %v193 = vmul.f32 %v35, %v98
  %v194 = vmul.f32 %v36, %v102
  %v195 = vmul.f32 %v37, %v106
  %v196 = vmul.f32 %v38, %v110
  %v197 = vmul.f32 %v39, %v114
  %v198 = vmul.f32 %v40, %v118
  %v199 = vmul.f32 %v41, %v122
  %v200 = vmul.f32 %v42, %v126
  %v201 = vmul.f32 %v43, %v130
  %v202 = vmul.f32 %v44, %v134
  %v203 = vmul.f32 %v45, %v138
  %v204 = vmul.f32 %v46, %v142
  %v205 = vmul.f32 %v47, %v146
  %v206 = vmul.f32 %v48, %v150
  %v207 = vmul.f32 %v49, %v154
  %v208 = vmul.f32 %v50, %v158
  %v209 = vld [vmem:[%s2] sm:$0xff]
  %v210 = vld [vmem:[%s2 + $0x8] sm:$0xff]
  %v211 = vld [vmem:[%s2 + $0x10] sm:$0xff]
  %v212 = vld [vmem:[%s2 + $0x18] sm:$0x1]
  %v217 = vlaneseq
  %v218 = vshrl.u32 %v217, 7
  %v219 = vsub.s32 0, %v218
  %v220 = vrot.slane %v209, %v219
  %v221 = vlaneseq
  %v222 = vshrl.u32 %v221, 7
  %v223 = vsub.s32 1, %v222
  %v224 = vrot.slane %v209, %v223
  %v225 = vlaneseq
  %v226 = vshrl.u32 %v225, 7
  %v227 = vsub.s32 2, %v226
  %v228 = vrot.slane %v209, %v227
  %v229 = vlaneseq
  %v230 = vshrl.u32 %v229, 7
  %v231 = vsub.s32 3, %v230
  %v232 = vrot.slane %v209, %v231
  %v233 = vlaneseq
  %v234 = vshrl.u32 %v233, 7
  %v235 = vsub.s32 4, %v234
  %v236 = vrot.slane %v209, %v235
  %v237 = vlaneseq
  %v238 = vshrl.u32 %v237, 7
  %v239 = vsub.s32 5, %v238
  %v240 = vrot.slane %v209, %v239
  %v241 = vlaneseq
  %v242 = vshrl.u32 %v241, 7
  %v243 = vsub.s32 6, %v242
  %v244 = vrot.slane %v209, %v243
  %v245 = vlaneseq
  %v246 = vshrl.u32 %v245, 7
  %v247 = vsub.s32 7, %v246
  %v248 = vrot.slane %v209, %v247
  %v249 = vlaneseq
  %v250 = vshrl.u32 %v249, 7
  %v251 = vsub.s32 0, %v250
  %v252 = vrot.slane %v210, %v251
  %v253 = vlaneseq
  %v254 = vshrl.u32 %v253, 7
  %v255 = vsub.s32 1, %v254
  %v256 = vrot.slane %v210, %v255
  %v257 = vlaneseq
  %v258 = vshrl.u32 %v257, 7
  %v259 = vsub.s32 2, %v258
  %v260 = vrot.slane %v210, %v259
  %v261 = vlaneseq
  %v262 = vshrl.u32 %v261, 7
  %v263 = vsub.s32 3, %v262
  %v264 = vrot.slane %v210, %v263
  %v265 = vlaneseq
  %v266 = vshrl.u32 %v265, 7
  %v267 = vsub.s32 4, %v266
  %v268 = vrot.slane %v210, %v267
  %v269 = vlaneseq
  %v270 = vshrl.u32 %v269, 7
  %v271 = vsub.s32 5, %v270
  %v272 = vrot.slane %v210, %v271
  %v273 = vlaneseq
  %v274 = vshrl.u32 %v273, 7
  %v275 = vsub.s32 6, %v274
  %v276 = vrot.slane %v210, %v275
  %v277 = vlaneseq
  %v278 = vshrl.u32 %v277, 7
  %v279 = vsub.s32 7, %v278
  %v280 = vrot.slane %v210, %v279
  %v281 = vlaneseq
  %v282 = vshrl.u32 %v281, 7
  %v283 = vsub.s32 0, %v282
  %v284 = vrot.slane %v211, %v283
  %v285 = vlaneseq
  %v286 = vshrl.u32 %v285, 7
  %v287 = vsub.s32 1, %v286
  %v288 = vrot.slane %v211, %v287
  %v289 = vlaneseq
  %v290 = vshrl.u32 %v289, 7
  %v291 = vsub.s32 2, %v290
  %v292 = vrot.slane %v211, %v291
  %v293 = vlaneseq
  %v294 = vshrl.u32 %v293, 7
  %v295 = vsub.s32 3, %v294
  %v296 = vrot.slane %v211, %v295
  %v297 = vlaneseq
  %v298 = vshrl.u32 %v297, 7
  %v299 = vsub.s32 4, %v298
  %v300 = vrot.slane %v211, %v299
  %v301 = vlaneseq
  %v302 = vshrl.u32 %v301, 7
  %v303 = vsub.s32 5, %v302
  %v304 = vrot.slane %v211, %v303
  %v305 = vlaneseq
  %v306 = vshrl.u32 %v305, 7
  %v307 = vsub.s32 6, %v306
  %v308 = vrot.slane %v211, %v307
  %v309 = vlaneseq
  %v310 = vshrl.u32 %v309, 7
  %v311 = vsub.s32 7, %v310
  %v312 = vrot.slane %v211, %v311
  %v313 = vlaneseq
  %v314 = vshrl.u32 %v313, 7
  %v315 = vsub.s32 0, %v314
  %v316 = vrot.slane %v212, %v315
  %v342 = vadd.f32 %v184, %v220
  %v343 = vadd.f32 %v185, %v224
  %v344 = vadd.f32 %v186, %v228
  %v345 = vadd.f32 %v187, %v232
  %v346 = vadd.f32 %v188, %v236
  %v347 = vadd.f32 %v189, %v240
  %v348 = vadd.f32 %v190, %v244
  %v349 = vadd.f32 %v191, %v248
  %v350 = vadd.f32 %v192, %v252
  %v351 = vadd.f32 %v193, %v256
  %v352 = vadd.f32 %v194, %v260
  %v353 = vadd.f32 %v195, %v264
  %v354 = vadd.f32 %v196, %v268
  %v355 = vadd.f32 %v197, %v272
  %v356 = vadd.f32 %v198, %v276
  %v357 = vadd.f32 %v199, %v280
  %v358 = vadd.f32 %v200, %v284
  %v359 = vadd.f32 %v201, %v288
  %v360 = vadd.f32 %v202, %v292
  %v361 = vadd.f32 %v203, %v296
  %v362 = vadd.f32 %v204, %v300
  %v363 = vadd.f32 %v205, %v304
  %v364 = vadd.f32 %v206, %v308
  %v365 = vadd.f32 %v207, %v312
  %v366 = vadd.f32 %v208, %v316
  %v367 = vmax.f32 %v342, 0.0
  %v368 = vmax.f32 %v343, 0.0
  %v369 = vmax.f32 %v344, 0.0
  %v370 = vmax.f32 %v345, 0.0
  %v371 = vmax.f32 %v346, 0.0
  %v372 = vmax.f32 %v347, 0.0
  %v373 = vmax.f32 %v348, 0.0
  %v374 = vmax.f32 %v349, 0.0
  %v375 = vmax.f32 %v350, 0.0
  %v376 = vmax.f32 %v351, 0.0
  %v377 = vmax.f32 %v352, 0.0
  %v378 = vmax.f32 %v353, 0.0
  %v379 = vmax.f32 %v354, 0.0
  %v380 = vmax.f32 %v355, 0.0
  %v381 = vmax.f32 %v356, 0.0
  %v382 = vmax.f32 %v357, 0.0
  %v383 = vmax.f32 %v358, 0.0
  %v384 = vmax.f32 %v359, 0.0
  %v385 = vmax.f32 %v360, 0.0
  %v386 = vmax.f32 %v361, 0.0
  %v387 = vmax.f32 %v362, 0.0
  %v388 = vmax.f32 %v363, 0.0
  %v389 = vmax.f32 %v364, 0.0
  %v390 = vmax.f32 %v365, 0.0
  %v391 = vmax.f32 %v366, 0.0
  %v392 = vld [vmem:[%s3] sm:$0xff]
  %v393 = vld [vmem:[%s3 + $0x8] sm:$0xff]
  %v394 = vld [vmem:[%s3 + $0x10] sm:$0xff]
  %v395 = vld [vmem:[%s3 + $0x18] sm:$0xff]
  %v396 = vld [vmem:[%s3 + $0x20] sm:$0xff]
  %v397 = vld [vmem:[%s3 + $0x28] sm:$0xff]
  %v398 = vld [vmem:[%s3 + $0x30] sm:$0xff]
  %v399 = vld [vmem:[%s3 + $0x38] sm:$0xff]
  %v400 = vld [vmem:[%s3 + $0x40] sm:$0xff]
  %v401 = vld [vmem:[%s3 + $0x48] sm:$0xff]
  %v402 = vld [vmem:[%s3 + $0x50] sm:$0xff]
  %v403 = vld [vmem:[%s3 + $0x58] sm:$0xff]
  %v404 = vld [vmem:[%s3 + $0x60] sm:$0xff]
  %v405 = vld [vmem:[%s3 + $0x68] sm:$0xff]
  %v406 = vld [vmem:[%s3 + $0x70] sm:$0xff]
  %v407 = vld [vmem:[%s3 + $0x78] sm:$0xff]
  %v408 = vld [vmem:[%s3 + $0x80] sm:$0xff]
  %v409 = vld [vmem:[%s3 + $0x88] sm:$0xff]
  %v410 = vld [vmem:[%s3 + $0x90] sm:$0xff]
  %v411 = vld [vmem:[%s3 + $0x98] sm:$0xff]
  %v412 = vld [vmem:[%s3 + $0xa0] sm:$0xff]
  %v413 = vld [vmem:[%s3 + $0xa8] sm:$0xff]
  %v414 = vld [vmem:[%s3 + $0xb0] sm:$0xff]
  %v415 = vld [vmem:[%s3 + $0xb8] sm:$0xff]
  %v416 = vld [vmem:[%s3 + $0xc0] sm:$0xff]
  %v417 = vld [vmem:[%s3 + $0xc8] sm:$0xff]
  %v418 = vld [vmem:[%s3 + $0xd0] sm:$0xff]
  %v419 = vld [vmem:[%s3 + $0xd8] sm:$0xff]
  %v420 = vld [vmem:[%s3 + $0xe0] sm:$0xff]
  %v421 = vld [vmem:[%s3 + $0xe8] sm:$0xff]
  %v422 = vld [vmem:[%s3 + $0xf0] sm:$0xff]
  %v423 = vld [vmem:[%s3 + $0xf8] sm:$0xff]
  %v424 = vld [vmem:[%s3 + $0x100] sm:$0xff]
  %v425 = vld [vmem:[%s3 + $0x108] sm:$0xff]
  %v426 = vld [vmem:[%s3 + $0x110] sm:$0xff]
  %v427 = vld [vmem:[%s3 + $0x118] sm:$0xff]
  %v428 = vld [vmem:[%s3 + $0x120] sm:$0xff]
  %v429 = vld [vmem:[%s3 + $0x128] sm:$0xff]
  %v430 = vld [vmem:[%s3 + $0x130] sm:$0xff]
  %v431 = vld [vmem:[%s3 + $0x138] sm:$0xff]
  %v432 = vld [vmem:[%s3 + $0x140] sm:$0xff]
  %v433 = vld [vmem:[%s3 + $0x148] sm:$0xff]
  %v434 = vld [vmem:[%s3 + $0x150] sm:$0xff]
  %v435 = vld [vmem:[%s3 + $0x158] sm:$0xff]
  %v436 = vld [vmem:[%s3 + $0x160] sm:$0xff]
  %v437 = vld [vmem:[%s3 + $0x168] sm:$0xff]
  %v438 = vld [vmem:[%s3 + $0x170] sm:$0xff]
  %v439 = vld [vmem:[%s3 + $0x178] sm:$0xff]
  %v440 = vld [vmem:[%s3 + $0x180] sm:$0xff]
  %v441 = vld [vmem:[%s3 + $0x188] sm:$0xff]
  %v442 = vld [vmem:[%s3 + $0x190] sm:$0xff]
  %v443 = vld [vmem:[%s3 + $0x198] sm:$0xff]
  %v444 = vld [vmem:[%s3 + $0x1a0] sm:$0xff]
  %v445 = vld [vmem:[%s3 + $0x1a8] sm:$0xff]
  %v446 = vld [vmem:[%s3 + $0x1b0] sm:$0xff]
  %v447 = vld [vmem:[%s3 + $0x1b8] sm:$0xff]
  %v448 = vld [vmem:[%s3 + $0x1c0] sm:$0xff]
  %v449 = vld [vmem:[%s3 + $0x1c8] sm:$0xff]
  %v450 = vld [vmem:[%s3 + $0x1d0] sm:$0xff]
  %v451 = vld [vmem:[%s3 + $0x1d8] sm:$0xff]
  %v452 = vld [vmem:[%s3 + $0x1e0] sm:$0xff]
  %v453 = vld [vmem:[%s3 + $0x1e8] sm:$0xff]
  %v454 = vld [vmem:[%s3 + $0x1f0] sm:$0xff]
  %v455 = vld [vmem:[%s3 + $0x1f8] sm:$0xff]
  %v456 = vld [vmem:[%s3 + $0x200] sm:$0xff]
  %v457 = vld [vmem:[%s3 + $0x208] sm:$0xff]
  %v458 = vld [vmem:[%s3 + $0x210] sm:$0xff]
  %v459 = vld [vmem:[%s3 + $0x218] sm:$0xff]
  %v460 = vld [vmem:[%s3 + $0x220] sm:$0xff]
  %v461 = vld [vmem:[%s3 + $0x228] sm:$0xff]
  %v462 = vld [vmem:[%s3 + $0x230] sm:$0xff]
  %v463 = vld [vmem:[%s3 + $0x238] sm:$0xff]
  %v464 = vld [vmem:[%s3 + $0x240] sm:$0xff]
  %v465 = vld [vmem:[%s3 + $0x248] sm:$0xff]
  %v466 = vld [vmem:[%s3 + $0x250] sm:$0xff]
  %v467 = vld [vmem:[%s3 + $0x258] sm:$0xff]
  %v468 = vld [vmem:[%s3 + $0x260] sm:$0xff]
  %v469 = vld [vmem:[%s3 + $0x268] sm:$0xff]
  %v470 = vld [vmem:[%s3 + $0x270] sm:$0xff]
  %v471 = vld [vmem:[%s3 + $0x278] sm:$0xff]
  %v472 = vld [vmem:[%s3 + $0x280] sm:$0xff]
  %v473 = vld [vmem:[%s3 + $0x288] sm:$0xff]
  %v474 = vld [vmem:[%s3 + $0x290] sm:$0xff]
  %v475 = vld [vmem:[%s3 + $0x298] sm:$0xff]
  %v476 = vld [vmem:[%s3 + $0x2a0] sm:$0xff]
  %v477 = vld [vmem:[%s3 + $0x2a8] sm:$0xff]
  %v478 = vld [vmem:[%s3 + $0x2b0] sm:$0xff]
  %v479 = vld [vmem:[%s3 + $0x2b8] sm:$0xff]
  %v480 = vld [vmem:[%s3 + $0x2c0] sm:$0xff]
  %v481 = vld [vmem:[%s3 + $0x2c8] sm:$0xff]
  %v482 = vld [vmem:[%s3 + $0x2d0] sm:$0xff]
  %v483 = vld [vmem:[%s3 + $0x2d8] sm:$0xff]
  %v484 = vld [vmem:[%s3 + $0x2e0] sm:$0xff]
  %v485 = vld [vmem:[%s3 + $0x2e8] sm:$0xff]
  %v486 = vld [vmem:[%s3 + $0x2f0] sm:$0xff]
  %v487 = vld [vmem:[%s3 + $0x2f8] sm:$0xff]
  %v488 = vld [vmem:[%s3 + $0x300] sm:$0xff]
  %v489 = vld [vmem:[%s3 + $0x308] sm:$0xff]
  %v490 = vld [vmem:[%s3 + $0x310] sm:$0xff]
  %v491 = vld [vmem:[%s3 + $0x318] sm:$0xff]
  %v492 = vld [vmem:[%s3 + $0x320] sm:$0xff]
  %v493 = vld [vmem:[%s3 + $0x328] sm:$0xff]
  %v494 = vld [vmem:[%s3 + $0x330] sm:$0xff]
  %v495 = vld [vmem:[%s3 + $0x338] sm:$0xff]
  %v496 = vld [vmem:[%s3 + $0x340] sm:$0xff]
  %v497 = vld [vmem:[%s3 + $0x348] sm:$0xff]
  %v498 = vld [vmem:[%s3 + $0x350] sm:$0xff]
  %v499 = vld [vmem:[%s3 + $0x358] sm:$0xff]
  %v500 = vld [vmem:[%s3 + $0x360] sm:$0xff]
  %v501 = vld [vmem:[%s3 + $0x368] sm:$0xff]
  %v502 = vld [vmem:[%s3 + $0x370] sm:$0xff]
  %v503 = vld [vmem:[%s3 + $0x378] sm:$0xff]
  %v504 = vld [vmem:[%s3 + $0x380] sm:$0xff]
  %v505 = vld [vmem:[%s3 + $0x388] sm:$0xff]
  %v506 = vld [vmem:[%s3 + $0x390] sm:$0xff]
  %v507 = vld [vmem:[%s3 + $0x398] sm:$0xff]
  %v508 = vld [vmem:[%s3 + $0x3a0] sm:$0xff]
  %v509 = vld [vmem:[%s3 + $0x3a8] sm:$0xff]
  %v510 = vld [vmem:[%s3 + $0x3b0] sm:$0xff]
  %v511 = vld [vmem:[%s3 + $0x3b8] sm:$0xff]
  %v512 = vld [vmem:[%s3 + $0x3c0] sm:$0xff]
  %v513 = vld [vmem:[%s3 + $0x3c8] sm:$0xff]
  %v514 = vld [vmem:[%s3 + $0x3d0] sm:$0xff]
  %v515 = vld [vmem:[%s3 + $0x3d8] sm:$0xff]
  %v516 = vld [vmem:[%s3 + $0x3e0] sm:$0xff]
  %v517 = vld [vmem:[%s3 + $0x3e8] sm:$0xff]
  %v518 = vld [vmem:[%s3 + $0x3f0] sm:$0xff]
  %v519 = vld [vmem:[%s3 + $0x3f8] sm:$0xff]
  %v520 = vld [vmem:[%s3 + $0x400] sm:$0xff]
  %v521 = vld [vmem:[%s3 + $0x408] sm:$0xff]
  %v522 = vld [vmem:[%s3 + $0x410] sm:$0xff]
  %v523 = vld [vmem:[%s3 + $0x418] sm:$0xff]
  %v524 = vld [vmem:[%s3 + $0x420] sm:$0xff]
  %v525 = vld [vmem:[%s3 + $0x428] sm:$0xff]
  %v526 = vld [vmem:[%s3 + $0x430] sm:$0xff]
  %v527 = vld [vmem:[%s3 + $0x438] sm:$0xff]
  %v528 = vld [vmem:[%s3 + $0x440] sm:$0xff]
  %v529 = vld [vmem:[%s3 + $0x448] sm:$0xff]
  %v530 = vld [vmem:[%s3 + $0x450] sm:$0xff]
  %v531 = vld [vmem:[%s3 + $0x458] sm:$0xff]
  %v532 = vld [vmem:[%s3 + $0x460] sm:$0xff]
  %v533 = vld [vmem:[%s3 + $0x468] sm:$0xff]
  %v534 = vld [vmem:[%s3 + $0x470] sm:$0xff]
  %v535 = vld [vmem:[%s3 + $0x478] sm:$0xff]
  %v536 = vld [vmem:[%s3 + $0x480] sm:$0xff]
  %v537 = vld [vmem:[%s3 + $0x488] sm:$0xff]
  %v538 = vld [vmem:[%s3 + $0x490] sm:$0xff]
  %v539 = vld [vmem:[%s3 + $0x498] sm:$0xff]
  %v540 = vld [vmem:[%s3 + $0x4a0] sm:$0xff]
  %v541 = vld [vmem:[%s3 + $0x4a8] sm:$0xff]
  %v542 = vld [vmem:[%s3 + $0x4b0] sm:$0xff]
  %v543 = vld [vmem:[%s3 + $0x4b8] sm:$0xff]
  %v544 = vld [vmem:[%s3 + $0x4c0] sm:$0xff]
  %v545 = vld [vmem:[%s3 + $0x4c8] sm:$0xff]
  %v546 = vld [vmem:[%s3 + $0x4d0] sm:$0xff]
  %v547 = vld [vmem:[%s3 + $0x4d8] sm:$0xff]
  %v548 = vld [vmem:[%s3 + $0x4e0] sm:$0xff]
  %v549 = vld [vmem:[%s3 + $0x4e8] sm:$0xff]
  %v550 = vld [vmem:[%s3 + $0x4f0] sm:$0xff]
  %v551 = vld [vmem:[%s3 + $0x4f8] sm:$0xff]
  %v552 = vld [vmem:[%s3 + $0x500] sm:$0xff]
  %v553 = vld [vmem:[%s3 + $0x508] sm:$0xff]
  %v554 = vld [vmem:[%s3 + $0x510] sm:$0xff]
  %v555 = vld [vmem:[%s3 + $0x518] sm:$0xff]
  %v556 = vld [vmem:[%s3 + $0x520] sm:$0xff]
  %v557 = vld [vmem:[%s3 + $0x528] sm:$0xff]
  %v558 = vld [vmem:[%s3 + $0x530] sm:$0xff]
  %v559 = vld [vmem:[%s3 + $0x538] sm:$0xff]
  %v560 = vld [vmem:[%s3 + $0x540] sm:$0xff]
  %v561 = vld [vmem:[%s3 + $0x548] sm:$0xff]
  %v562 = vld [vmem:[%s3 + $0x550] sm:$0xff]
  %v563 = vld [vmem:[%s3 + $0x558] sm:$0xff]
  %v564 = vld [vmem:[%s3 + $0x560] sm:$0xff]
  %v565 = vld [vmem:[%s3 + $0x568] sm:$0xff]
  %v566 = vld [vmem:[%s3 + $0x570] sm:$0xff]
  %v567 = vld [vmem:[%s3 + $0x578] sm:$0xff]
  %v568 = vld [vmem:[%s3 + $0x580] sm:$0xff]
  %v569 = vld [vmem:[%s3 + $0x588] sm:$0xff]
  %v570 = vld [vmem:[%s3 + $0x590] sm:$0xff]
  %v571 = vld [vmem:[%s3 + $0x598] sm:$0xff]
  %v572 = vld [vmem:[%s3 + $0x5a0] sm:$0xff]
  %v573 = vld [vmem:[%s3 + $0x5a8] sm:$0xff]
  %v574 = vld [vmem:[%s3 + $0x5b0] sm:$0xff]
  %v575 = vld [vmem:[%s3 + $0x5b8] sm:$0xff]
  %v576 = vld [vmem:[%s3 + $0x5c0] sm:$0xff]
  %v577 = vld [vmem:[%s3 + $0x5c8] sm:$0xff]
  %v578 = vld [vmem:[%s3 + $0x5d0] sm:$0xff]
  %v579 = vld [vmem:[%s3 + $0x5d8] sm:$0xff]
  %v580 = vld [vmem:[%s3 + $0x5e0] sm:$0xff]
  %v581 = vld [vmem:[%s3 + $0x5e8] sm:$0xff]
  %v582 = vld [vmem:[%s3 + $0x5f0] sm:$0xff]
  %v583 = vld [vmem:[%s3 + $0x5f8] sm:$0xff]
  %v584 = vld [vmem:[%s3 + $0x600] sm:$0xff]
  %v585 = vld [vmem:[%s3 + $0x608] sm:$0xff]
  %v586 = vld [vmem:[%s3 + $0x610] sm:$0xff]
  %v587 = vld [vmem:[%s3 + $0x618] sm:$0xff]
  %v588 = vld [vmem:[%s3 + $0x620] sm:$0xff]
  %v589 = vld [vmem:[%s3 + $0x628] sm:$0xff]
  %v590 = vld [vmem:[%s3 + $0x630] sm:$0xff]
  %v591 = vld [vmem:[%s3 + $0x638] sm:$0xff]
  %v592 = vld [vmem:[%s3 + $0x640] sm:$0xff]
  %v593 = vld [vmem:[%s3 + $0x648] sm:$0xff]
  %v594 = vld [vmem:[%s3 + $0x650] sm:$0xff]
  %v595 = vld [vmem:[%s3 + $0x658] sm:$0xff]
  %v596 = vld [vmem:[%s3 + $0x660] sm:$0xff]
  %v597 = vld [vmem:[%s3 + $0x668] sm:$0xff]
  %v598 = vld [vmem:[%s3 + $0x670] sm:$0xff]
  %v599 = vld [vmem:[%s3 + $0x678] sm:$0xff]
  %v600 = vld [vmem:[%s3 + $0x680] sm:$0xff]
  %v601 = vld [vmem:[%s3 + $0x688] sm:$0xff]
  %v602 = vld [vmem:[%s3 + $0x690] sm:$0xff]
  %v603 = vld [vmem:[%s3 + $0x698] sm:$0xff]
  %v604 = vld [vmem:[%s3 + $0x6a0] sm:$0xff]
  %v605 = vld [vmem:[%s3 + $0x6a8] sm:$0xff]
  %v606 = vld [vmem:[%s3 + $0x6b0] sm:$0xff]
  %v607 = vld [vmem:[%s3 + $0x6b8] sm:$0xff]
  %v608 = vld [vmem:[%s3 + $0x6c0] sm:$0xff]
  %v609 = vld [vmem:[%s3 + $0x6c8] sm:$0xff]
  %v610 = vld [vmem:[%s3 + $0x6d0] sm:$0xff]
  %v611 = vld [vmem:[%s3 + $0x6d8] sm:$0xff]
  %v612 = vld [vmem:[%s3 + $0x6e0] sm:$0xff]
  %v613 = vld [vmem:[%s3 + $0x6e8] sm:$0xff]
  %v614 = vld [vmem:[%s3 + $0x6f0] sm:$0xff]
  %v615 = vld [vmem:[%s3 + $0x6f8] sm:$0xff]
  %v616 = vld [vmem:[%s3 + $0x700] sm:$0xff]
  %v617 = vld [vmem:[%s3 + $0x708] sm:$0xff]
  %v618 = vld [vmem:[%s3 + $0x710] sm:$0xff]
  %v619 = vld [vmem:[%s3 + $0x718] sm:$0xff]
  %v620 = vld [vmem:[%s3 + $0x720] sm:$0xff]
  %v621 = vld [vmem:[%s3 + $0x728] sm:$0xff]
  %v622 = vld [vmem:[%s3 + $0x730] sm:$0xff]
  %v623 = vld [vmem:[%s3 + $0x738] sm:$0xff]
  %v624 = vld [vmem:[%s3 + $0x740] sm:$0xff]
  %v625 = vld [vmem:[%s3 + $0x748] sm:$0xff]
  %v626 = vld [vmem:[%s3 + $0x750] sm:$0xff]
  %v627 = vld [vmem:[%s3 + $0x758] sm:$0xff]
  %v628 = vld [vmem:[%s3 + $0x760] sm:$0xff]
  %v629 = vld [vmem:[%s3 + $0x768] sm:$0xff]
  %v630 = vld [vmem:[%s3 + $0x770] sm:$0xff]
  %v631 = vld [vmem:[%s3 + $0x778] sm:$0xff]
  %v632 = vld [vmem:[%s3 + $0x780] sm:$0xff]
  %v633 = vld [vmem:[%s3 + $0x788] sm:$0xff]
  %v634 = vld [vmem:[%s3 + $0x790] sm:$0xff]
  %v635 = vld [vmem:[%s3 + $0x798] sm:$0xff]
  %v636 = vld [vmem:[%s3 + $0x7a0] sm:$0xff]
  %v637 = vld [vmem:[%s3 + $0x7a8] sm:$0xff]
  %v638 = vld [vmem:[%s3 + $0x7b0] sm:$0xff]
  %v639 = vld [vmem:[%s3 + $0x7b8] sm:$0xff]
  %v640 = vld [vmem:[%s3 + $0x7c0] sm:$0xff]
  %v641 = vld [vmem:[%s3 + $0x7c8] sm:$0xff]
  %v642 = vld [vmem:[%s3 + $0x7d0] sm:$0xff]
  %v643 = vld [vmem:[%s3 + $0x7d8] sm:$0xff]
  %v644 = vld [vmem:[%s3 + $0x7e0] sm:$0xff]
  %v645 = vld [vmem:[%s3 + $0x7e8] sm:$0xff]
  %v646 = vld [vmem:[%s3 + $0x7f0] sm:$0xff]
  %v647 = vld [vmem:[%s3 + $0x7f8] sm:$0xff]
  %v648 = vld [vmem:[%s3 + $0x800] sm:$0xff]
  %v649 = vld [vmem:[%s3 + $0x808] sm:$0xff]
  %v650 = vld [vmem:[%s3 + $0x810] sm:$0xff]
  %v651 = vld [vmem:[%s3 + $0x818] sm:$0xff]
  %v652 = vld [vmem:[%s3 + $0x820] sm:$0xff]
  %v653 = vld [vmem:[%s3 + $0x828] sm:$0xff]
  %v654 = vld [vmem:[%s3 + $0x830] sm:$0xff]
  %v655 = vld [vmem:[%s3 + $0x838] sm:$0xff]
  %v656 = vld [vmem:[%s3 + $0x840] sm:$0xff]
  %v657 = vld [vmem:[%s3 + $0x848] sm:$0xff]
  %v658 = vld [vmem:[%s3 + $0x850] sm:$0xff]
  %v659 = vld [vmem:[%s3 + $0x858] sm:$0xff]
  %v660 = vld [vmem:[%s3 + $0x860] sm:$0xff]
  %v661 = vld [vmem:[%s3 + $0x868] sm:$0xff]
  %v662 = vld [vmem:[%s3 + $0x870] sm:$0xff]
  %v663 = vld [vmem:[%s3 + $0x878] sm:$0xff]
  %v664 = vld [vmem:[%s3 + $0x880] sm:$0xff]
  %v665 = vld [vmem:[%s3 + $0x888] sm:$0xff]
  %v666 = vld [vmem:[%s3 + $0x890] sm:$0xff]
  %v667 = vld [vmem:[%s3 + $0x898] sm:$0xff]
  %v668 = vld [vmem:[%s3 + $0x8a0] sm:$0xff]
  %v669 = vld [vmem:[%s3 + $0x8a8] sm:$0xff]
  %v670 = vld [vmem:[%s3 + $0x8b0] sm:$0xff]
  %v671 = vld [vmem:[%s3 + $0x8b8] sm:$0xff]
  %v672 = vld [vmem:[%s3 + $0x8c0] sm:$0xff]
  %v673 = vld [vmem:[%s3 + $0x8c8] sm:$0xff]
  %v674 = vld [vmem:[%s3 + $0x8d0] sm:$0xff]
  %v675 = vld [vmem:[%s3 + $0x8d8] sm:$0xff]
  %v676 = vld [vmem:[%s3 + $0x8e0] sm:$0xff]
  %v677 = vld [vmem:[%s3 + $0x8e8] sm:$0xff]
  %v678 = vld [vmem:[%s3 + $0x8f0] sm:$0xff]
  %v679 = vld [vmem:[%s3 + $0x8f8] sm:$0xff]
  %v680 = vld [vmem:[%s3 + $0x900] sm:$0xff]
  %v681 = vld [vmem:[%s3 + $0x908] sm:$0xff]
  %v682 = vld [vmem:[%s3 + $0x910] sm:$0xff]
  %v683 = vld [vmem:[%s3 + $0x918] sm:$0xff]
  %v684 = vld [vmem:[%s3 + $0x920] sm:$0xff]
  %v685 = vld [vmem:[%s3 + $0x928] sm:$0xff]
  %v686 = vld [vmem:[%s3 + $0x930] sm:$0xff]
  %v687 = vld [vmem:[%s3 + $0x938] sm:$0xff]
  %v688 = vld [vmem:[%s3 + $0x940] sm:$0xff]
  %v689 = vld [vmem:[%s3 + $0x948] sm:$0xff]
  %v690 = vld [vmem:[%s3 + $0x950] sm:$0xff]
  %v691 = vld [vmem:[%s3 + $0x958] sm:$0xff]
  %v692 = vld [vmem:[%s3 + $0x960] sm:$0xff]
  %v693 = vld [vmem:[%s3 + $0x968] sm:$0xff]
  %v694 = vld [vmem:[%s3 + $0x970] sm:$0xff]
  %v695 = vld [vmem:[%s3 + $0x978] sm:$0xff]
  %v696 = vld [vmem:[%s3 + $0x980] sm:$0xff]
  %v697 = vld [vmem:[%s3 + $0x988] sm:$0xff]
  %v698 = vld [vmem:[%s3 + $0x990] sm:$0xff]
  %v699 = vld [vmem:[%s3 + $0x998] sm:$0xff]
  %v700 = vld [vmem:[%s3 + $0x9a0] sm:$0xff]
  %v701 = vld [vmem:[%s3 + $0x9a8] sm:$0xff]
  %v702 = vld [vmem:[%s3 + $0x9b0] sm:$0xff]
  %v703 = vld [vmem:[%s3 + $0x9b8] sm:$0xff]
  %v704 = vld [vmem:[%s3 + $0x9c0] sm:$0xff]
  %v705 = vld [vmem:[%s3 + $0x9c8] sm:$0xff]
  %v706 = vld [vmem:[%s3 + $0x9d0] sm:$0xff]
  %v707 = vld [vmem:[%s3 + $0x9d8] sm:$0xff]
  %v708 = vld [vmem:[%s3 + $0x9e0] sm:$0xff]
  %v709 = vld [vmem:[%s3 + $0x9e8] sm:$0xff]
  %v710 = vld [vmem:[%s3 + $0x9f0] sm:$0xff]
  %v711 = vld [vmem:[%s3 + $0x9f8] sm:$0xff]
  %v712 = vld [vmem:[%s3 + $0xa00] sm:$0xff]
  %v713 = vld [vmem:[%s3 + $0xa08] sm:$0xff]
  %v714 = vld [vmem:[%s3 + $0xa10] sm:$0xff]
  %v715 = vld [vmem:[%s3 + $0xa18] sm:$0xff]
  %v716 = vld [vmem:[%s3 + $0xa20] sm:$0xff]
  %v717 = vld [vmem:[%s3 + $0xa28] sm:$0xff]
  %v718 = vld [vmem:[%s3 + $0xa30] sm:$0xff]
  %v719 = vld [vmem:[%s3 + $0xa38] sm:$0xff]
  %v720 = vld [vmem:[%s3 + $0xa40] sm:$0xff]
  %v721 = vld [vmem:[%s3 + $0xa48] sm:$0xff]
  %v722 = vld [vmem:[%s3 + $0xa50] sm:$0xff]
  %v723 = vld [vmem:[%s3 + $0xa58] sm:$0xff]
  %v724 = vld [vmem:[%s3 + $0xa60] sm:$0xff]
  %v725 = vld [vmem:[%s3 + $0xa68] sm:$0xff]
  %v726 = vld [vmem:[%s3 + $0xa70] sm:$0xff]
  %v727 = vld [vmem:[%s3 + $0xa78] sm:$0xff]
  %v728 = vld [vmem:[%s3 + $0xa80] sm:$0xff]
  %v729 = vld [vmem:[%s3 + $0xa88] sm:$0xff]
  %v730 = vld [vmem:[%s3 + $0xa90] sm:$0xff]
  %v731 = vld [vmem:[%s3 + $0xa98] sm:$0xff]
  %v732 = vld [vmem:[%s3 + $0xaa0] sm:$0xff]
  %v733 = vld [vmem:[%s3 + $0xaa8] sm:$0xff]
  %v734 = vld [vmem:[%s3 + $0xab0] sm:$0xff]
  %v735 = vld [vmem:[%s3 + $0xab8] sm:$0xff]
  %v736 = vld [vmem:[%s3 + $0xac0] sm:$0xff]
  %v737 = vld [vmem:[%s3 + $0xac8] sm:$0xff]
  %v738 = vld [vmem:[%s3 + $0xad0] sm:$0xff]
  %v739 = vld [vmem:[%s3 + $0xad8] sm:$0xff]
  %v740 = vld [vmem:[%s3 + $0xae0] sm:$0xff]
  %v741 = vld [vmem:[%s3 + $0xae8] sm:$0xff]
  %v742 = vld [vmem:[%s3 + $0xaf0] sm:$0xff]
  %v743 = vld [vmem:[%s3 + $0xaf8] sm:$0xff]
  %v744 = vld [vmem:[%s3 + $0xb00] sm:$0xff]
  %v745 = vld [vmem:[%s3 + $0xb08] sm:$0xff]
  %v746 = vld [vmem:[%s3 + $0xb10] sm:$0xff]
  %v747 = vld [vmem:[%s3 + $0xb18] sm:$0xff]
  %v748 = vld [vmem:[%s3 + $0xb20] sm:$0xff]
  %v749 = vld [vmem:[%s3 + $0xb28] sm:$0xff]
  %v750 = vld [vmem:[%s3 + $0xb30] sm:$0xff]
  %v751 = vld [vmem:[%s3 + $0xb38] sm:$0xff]
  %v752 = vld [vmem:[%s3 + $0xb40] sm:$0xff]
  %v753 = vld [vmem:[%s3 + $0xb48] sm:$0xff]
  %v754 = vld [vmem:[%s3 + $0xb50] sm:$0xff]
  %v755 = vld [vmem:[%s3 + $0xb58] sm:$0xff]
  %v756 = vld [vmem:[%s3 + $0xb60] sm:$0xff]
  %v757 = vld [vmem:[%s3 + $0xb68] sm:$0xff]
  %v758 = vld [vmem:[%s3 + $0xb70] sm:$0xff]
  %v759 = vld [vmem:[%s3 + $0xb78] sm:$0xff]
  %v760 = vld [vmem:[%s3 + $0xb80] sm:$0xff]
  %v761 = vld [vmem:[%s3 + $0xb88] sm:$0xff]
  %v762 = vld [vmem:[%s3 + $0xb90] sm:$0xff]
  %v763 = vld [vmem:[%s3 + $0xb98] sm:$0xff]
  %v764 = vld [vmem:[%s3 + $0xba0] sm:$0xff]
  %v765 = vld [vmem:[%s3 + $0xba8] sm:$0xff]
  %v766 = vld [vmem:[%s3 + $0xbb0] sm:$0xff]
  %v767 = vld [vmem:[%s3 + $0xbb8] sm:$0xff]
  %v768 = vld [vmem:[%s3 + $0xbc0] sm:$0xff]
  %v769 = vld [vmem:[%s3 + $0xbc8] sm:$0xff]
  %v770 = vld [vmem:[%s3 + $0xbd0] sm:$0xff]
  %v771 = vld [vmem:[%s3 + $0xbd8] sm:$0xff]
  %v772 = vld [vmem:[%s3 + $0xbe0] sm:$0xff]
  %v773 = vld [vmem:[%s3 + $0xbe8] sm:$0xff]
  %v774 = vld [vmem:[%s3 + $0xbf0] sm:$0xff]
  %v775 = vld [vmem:[%s3 + $0xbf8] sm:$0xff]
  %v776 = vld [vmem:[%s3 + $0xc00] sm:$0xff]
  %v777 = vld [vmem:[%s3 + $0xc08] sm:$0xff]
  %v778 = vld [vmem:[%s3 + $0xc10] sm:$0xff]
  %v779 = vld [vmem:[%s3 + $0xc18] sm:$0xff]
  %v780 = vld [vmem:[%s3 + $0xc20] sm:$0xff]
  %v781 = vld [vmem:[%s3 + $0xc28] sm:$0xff]
  %v782 = vld [vmem:[%s3 + $0xc30] sm:$0xff]
  %v783 = vld [vmem:[%s3 + $0xc38] sm:$0xff]
  %v784 = vld [vmem:[%s4] sm:$0x1]
  %v786 = vlaneseq
  %v787 = vshrl.u32 %v786, 7
  %v788 = vsub.s32 0, %v787
  %v789 = vrot.slane %v784, %v788
  %vm791 = vcmask 523264
  %v793 = vsel %vm791, %v391, 0
  %795 = vmatprep.subr.mxu0 0.0
  %796 = vmatpush1.msra.mxu0 %v392
  %797 = vmatprep.subr.mxu0 0.0
  %798 = vmatpush1.msra.mxu0 %v393
  %799 = vmatprep.subr.mxu0 0.0
  %800 = vmatpush1.msra.mxu0 %v394
  %801 = vmatprep.subr.mxu0 0.0
  %802 = vmatpush1.msra.mxu0 %v395
  %803 = vmatprep.subr.mxu0 0.0
  %804 = vmatpush1.msra.mxu0 %v396
  %805 = vmatprep.subr.mxu0 0.0
  %806 = vmatpush1.msra.mxu0 %v397
  %807 = vmatprep.subr.mxu0 0.0
  %808 = vmatpush1.msra.mxu0 %v398
  %809 = vmatprep.subr.mxu0 0.0
  %810 = vmatpush1.msra.mxu0 %v399
  %811 = vmatprep.subr.mxu0 0.0
  %812 = vmatpush1.msra.mxu0 %v400
  %813 = vmatprep.subr.mxu0 0.0
  %814 = vmatpush1.msra.mxu0 %v401
  %815 = vmatprep.subr.mxu0 0.0
  %816 = vmatpush1.msra.mxu0 %v402
  %817 = vmatprep.subr.mxu0 0.0
  %818 = vmatpush1.msra.mxu0 %v403
  %819 = vmatprep.subr.mxu0 0.0
  %820 = vmatpush1.msra.mxu0 %v404
  %821 = vmatprep.subr.mxu0 0.0
  %822 = vmatpush1.msra.mxu0 %v405
  %823 = vmatprep.subr.mxu0 0.0
  %824 = vmatpush1.msra.mxu0 %v406
  %825 = vmatprep.subr.mxu0 0.0
  %826 = vmatpush1.msra.mxu0 %v407
  %827 = vmatprep.subr.mxu0 0.0
  %828 = vmatpush1.msra.mxu0 %v408
  %829 = vmatprep.subr.mxu0 0.0
  %830 = vmatpush1.msra.mxu0 %v409
  %831 = vmatprep.subr.mxu0 0.0
  %832 = vmatpush1.msra.mxu0 %v410
  %833 = vmatprep.subr.mxu0 0.0
  %834 = vmatpush1.msra.mxu0 %v411
  %835 = vmatprep.subr.mxu0 0.0
  %836 = vmatpush1.msra.mxu0 %v412
  %837 = vmatprep.subr.mxu0 0.0
  %838 = vmatpush1.msra.mxu0 %v413
  %839 = vmatprep.subr.mxu0 0.0
  %840 = vmatpush1.msra.mxu0 %v414
  %841 = vmatprep.subr.mxu0 0.0
  %842 = vmatpush1.msra.mxu0 %v415
  %843 = vmatprep.subr.mxu0 0.0
  %844 = vmatpush1.msra.mxu0 %v416
  %845 = vmatprep.subr.mxu0 0.0
  %846 = vmatpush1.msra.mxu0 %v417
  %847 = vmatprep.subr.mxu0 0.0
  %848 = vmatpush1.msra.mxu0 %v418
  %849 = vmatprep.subr.mxu0 0.0
  %850 = vmatpush1.msra.mxu0 %v419
  %851 = vmatprep.subr.mxu0 0.0
  %852 = vmatpush1.msra.mxu0 %v420
  %853 = vmatprep.subr.mxu0 0.0
  %854 = vmatpush1.msra.mxu0 %v421
  %855 = vmatprep.subr.mxu0 0.0
  %856 = vmatpush1.msra.mxu0 %v422
  %857 = vmatprep.subr.mxu0 0.0
  %858 = vmatpush1.msra.mxu0 %v423
  %859 = vmatprep.mubr.f32.mxu0 %v368
  %860 = vmatmul.mubr.f32.gmra.mrb[0].mxu0 %v367
  %v861 = vpop.f32.mrb[0].mxu0
  %v862 = vadd.f32 %v789, %v861
  %v863 = vpop.f32.mrb[0].mxu0
  %864 = vdwg.mxu0
  %865 = vmatprep.subr.mxu0 0.0
  %866 = vmatpush1.msra.mxu0 %v424
  %867 = vmatprep.subr.mxu0 0.0
  %868 = vmatpush1.msra.mxu0 %v425
  %869 = vmatprep.subr.mxu0 0.0
  %870 = vmatpush1.msra.mxu0 %v426
  %871 = vmatprep.subr.mxu0 0.0
  %872 = vmatpush1.msra.mxu0 %v427
  %873 = vmatprep.subr.mxu0 0.0
  %874 = vmatpush1.msra.mxu0 %v428
  %875 = vmatprep.subr.mxu0 0.0
  %876 = vmatpush1.msra.mxu0 %v429
  %877 = vmatprep.subr.mxu0 0.0
  %878 = vmatpush1.msra.mxu0 %v430
  %879 = vmatprep.subr.mxu0 0.0
  %880 = vmatpush1.msra.mxu0 %v431
  %881 = vmatprep.subr.mxu0 0.0
  %882 = vmatpush1.msra.mxu0 %v432
  %883 = vmatprep.subr.mxu0 0.0
  %884 = vmatpush1.msra.mxu0 %v433
  %885 = vmatprep.subr.mxu0 0.0
  %886 = vmatpush1.msra.mxu0 %v434
  %887 = vmatprep.subr.mxu0 0.0
  %888 = vmatpush1.msra.mxu0 %v435
  %889 = vmatprep.subr.mxu0 0.0
  %890 = vmatpush1.msra.mxu0 %v436
  %891 = vmatprep.subr.mxu0 0.0
  %892 = vmatpush1.msra.mxu0 %v437
  %893 = vmatprep.subr.mxu0 0.0
  %894 = vmatpush1.msra.mxu0 %v438
  %895 = vmatprep.subr.mxu0 0.0
  %896 = vmatpush1.msra.mxu0 %v439
  %897 = vmatprep.subr.mxu0 0.0
  %898 = vmatpush1.msra.mxu0 %v440
  %899 = vmatprep.subr.mxu0 0.0
  %900 = vmatpush1.msra.mxu0 %v441
  %901 = vmatprep.subr.mxu0 0.0
  %902 = vmatpush1.msra.mxu0 %v442
  %903 = vmatprep.subr.mxu0 0.0
  %904 = vmatpush1.msra.mxu0 %v443
  %905 = vmatprep.subr.mxu0 0.0
  %906 = vmatpush1.msra.mxu0 %v444
  %907 = vmatprep.subr.mxu0 0.0
  %908 = vmatpush1.msra.mxu0 %v445
  %909 = vmatprep.subr.mxu0 0.0
  %910 = vmatpush1.msra.mxu0 %v446
  %911 = vmatprep.subr.mxu0 0.0
  %912 = vmatpush1.msra.mxu0 %v447
  %913 = vmatprep.subr.mxu0 0.0
  %914 = vmatpush1.msra.mxu0 %v448
  %915 = vmatprep.subr.mxu0 0.0
  %916 = vmatpush1.msra.mxu0 %v449
  %917 = vmatprep.subr.mxu0 0.0
  %918 = vmatpush1.msra.mxu0 %v450
  %919 = vmatprep.subr.mxu0 0.0
  %920 = vmatpush1.msra.mxu0 %v451
  %921 = vmatprep.subr.mxu0 0.0
  %922 = vmatpush1.msra.mxu0 %v452
  %923 = vmatprep.subr.mxu0 0.0
  %924 = vmatpush1.msra.mxu0 %v453
  %925 = vmatprep.subr.mxu0 0.0
  %926 = vmatpush1.msra.mxu0 %v454
  %927 = vmatprep.subr.mxu0 0.0
  %928 = vmatpush1.msra.mxu0 %v455
  %929 = vmatprep.mubr.f32.mxu0 %v370
  %930 = vmatmul.mubr.f32.gmra.mrb[0].mxu0 %v369
  %v931 = vpop.f32.mrb[0].mxu0
  %v932 = vadd.f32 %v862, %v931
  %v933 = vpop.f32.mrb[0].mxu0
  %934 = vdwg.mxu0
  %935 = vmatprep.subr.mxu0 0.0
  %936 = vmatpush1.msra.mxu0 %v456
  %937 = vmatprep.subr.mxu0 0.0
  %938 = vmatpush1.msra.mxu0 %v457
  %939 = vmatprep.subr.mxu0 0.0
  %940 = vmatpush1.msra.mxu0 %v458
  %941 = vmatprep.subr.mxu0 0.0
  %942 = vmatpush1.msra.mxu0 %v459
  %943 = vmatprep.subr.mxu0 0.0
  %944 = vmatpush1.msra.mxu0 %v460
  %945 = vmatprep.subr.mxu0 0.0
  %946 = vmatpush1.msra.mxu0 %v461
  %947 = vmatprep.subr.mxu0 0.0
  %948 = vmatpush1.msra.mxu0 %v462
  %949 = vmatprep.subr.mxu0 0.0
  %950 = vmatpush1.msra.mxu0 %v463
  %951 = vmatprep.subr.mxu0 0.0
  %952 = vmatpush1.msra.mxu0 %v464
  %953 = vmatprep.subr.mxu0 0.0
  %954 = vmatpush1.msra.mxu0 %v465
  %955 = vmatprep.subr.mxu0 0.0
  %956 = vmatpush1.msra.mxu0 %v466
  %957 = vmatprep.subr.mxu0 0.0
  %958 = vmatpush1.msra.mxu0 %v467
  %959 = vmatprep.subr.mxu0 0.0
  %960 = vmatpush1.msra.mxu0 %v468
  %961 = vmatprep.subr.mxu0 0.0
  %962 = vmatpush1.msra.mxu0 %v469
  %963 = vmatprep.subr.mxu0 0.0
  %964 = vmatpush1.msra.mxu0 %v470
  %965 = vmatprep.subr.mxu0 0.0
  %966 = vmatpush1.msra.mxu0 %v471
  %967 = vmatprep.subr.mxu0 0.0
  %968 = vmatpush1.msra.mxu0 %v472
  %969 = vmatprep.subr.mxu0 0.0
  %970 = vmatpush1.msra.mxu0 %v473
  %971 = vmatprep.subr.mxu0 0.0
  %972 = vmatpush1.msra.mxu0 %v474
  %973 = vmatprep.subr.mxu0 0.0
  %974 = vmatpush1.msra.mxu0 %v475
  %975 = vmatprep.subr.mxu0 0.0
  %976 = vmatpush1.msra.mxu0 %v476
  %977 = vmatprep.subr.mxu0 0.0
  %978 = vmatpush1.msra.mxu0 %v477
  %979 = vmatprep.subr.mxu0 0.0
  %980 = vmatpush1.msra.mxu0 %v478
  %981 = vmatprep.subr.mxu0 0.0
  %982 = vmatpush1.msra.mxu0 %v479
  %983 = vmatprep.subr.mxu0 0.0
  %984 = vmatpush1.msra.mxu0 %v480
  %985 = vmatprep.subr.mxu0 0.0
  %986 = vmatpush1.msra.mxu0 %v481
  %987 = vmatprep.subr.mxu0 0.0
  %988 = vmatpush1.msra.mxu0 %v482
  %989 = vmatprep.subr.mxu0 0.0
  %990 = vmatpush1.msra.mxu0 %v483
  %991 = vmatprep.subr.mxu0 0.0
  %992 = vmatpush1.msra.mxu0 %v484
  %993 = vmatprep.subr.mxu0 0.0
  %994 = vmatpush1.msra.mxu0 %v485
  %995 = vmatprep.subr.mxu0 0.0
  %996 = vmatpush1.msra.mxu0 %v486
  %997 = vmatprep.subr.mxu0 0.0
  %998 = vmatpush1.msra.mxu0 %v487
  %999 = vmatprep.mubr.f32.mxu0 %v372
  %1000 = vmatmul.mubr.f32.gmra.mrb[0].mxu0 %v371
  %v1001 = vpop.f32.mrb[0].mxu0
  %v1002 = vadd.f32 %v932, %v1001
  %v1003 = vpop.f32.mrb[0].mxu0
  %1004 = vdwg.mxu0
  %1005 = vmatprep.subr.mxu0 0.0
  %1006 = vmatpush1.msra.mxu0 %v488
  %1007 = vmatprep.subr.mxu0 0.0
  %1008 = vmatpush1.msra.mxu0 %v489
  %1009 = vmatprep.subr.mxu0 0.0
  %1010 = vmatpush1.msra.mxu0 %v490
  %1011 = vmatprep.subr.mxu0 0.0
  %1012 = vmatpush1.msra.mxu0 %v491
  %1013 = vmatprep.subr.mxu0 0.0
  %1014 = vmatpush1.msra.mxu0 %v492
  %1015 = vmatprep.subr.mxu0 0.0
  %1016 = vmatpush1.msra.mxu0 %v493
  %1017 = vmatprep.subr.mxu0 0.0
  %1018 = vmatpush1.msra.mxu0 %v494
  %1019 = vmatprep.subr.mxu0 0.0
  %1020 = vmatpush1.msra.mxu0 %v495
  %1021 = vmatprep.subr.mxu0 0.0
  %1022 = vmatpush1.msra.mxu0 %v496
  %1023 = vmatprep.subr.mxu0 0.0
  %1024 = vmatpush1.msra.mxu0 %v497
  %1025 = vmatprep.subr.mxu0 0.0
  %1026 = vmatpush1.msra.mxu0 %v498
  %1027 = vmatprep.subr.mxu0 0.0
  %1028 = vmatpush1.msra.mxu0 %v499
  %1029 = vmatprep.subr.mxu0 0.0
  %1030 = vmatpush1.msra.mxu0 %v500
  %1031 = vmatprep.subr.mxu0 0.0
  %1032 = vmatpush1.msra.mxu0 %v501
  %1033 = vmatprep.subr.mxu0 0.0
  %1034 = vmatpush1.msra.mxu0 %v502
  %1035 = vmatprep.subr.mxu0 0.0
  %1036 = vmatpush1.msra.mxu0 %v503
  %1037 = vmatprep.subr.mxu0 0.0
  %1038 = vmatpush1.msra.mxu0 %v504
  %1039 = vmatprep.subr.mxu0 0.0
  %1040 = vmatpush1.msra.mxu0 %v505
  %1041 = vmatprep.subr.mxu0 0.0
  %1042 = vmatpush1.msra.mxu0 %v506
  %1043 = vmatprep.subr.mxu0 0.0
  %1044 = vmatpush1.msra.mxu0 %v507
  %1045 = vmatprep.subr.mxu0 0.0
  %1046 = vmatpush1.msra.mxu0 %v508
  %1047 = vmatprep.subr.mxu0 0.0
  %1048 = vmatpush1.msra.mxu0 %v509
  %1049 = vmatprep.subr.mxu0 0.0
  %1050 = vmatpush1.msra.mxu0 %v510
  %1051 = vmatprep.subr.mxu0 0.0
  %1052 = vmatpush1.msra.mxu0 %v511
  %1053 = vmatprep.subr.mxu0 0.0
  %1054 = vmatpush1.msra.mxu0 %v512
  %1055 = vmatprep.subr.mxu0 0.0
  %1056 = vmatpush1.msra.mxu0 %v513
  %1057 = vmatprep.subr.mxu0 0.0
  %1058 = vmatpush1.msra.mxu0 %v514
  %1059 = vmatprep.subr.mxu0 0.0
  %1060 = vmatpush1.msra.mxu0 %v515
  %1061 = vmatprep.subr.mxu0 0.0
  %1062 = vmatpush1.msra.mxu0 %v516
  %1063 = vmatprep.subr.mxu0 0.0
  %1064 = vmatpush1.msra.mxu0 %v517
  %1065 = vmatprep.subr.mxu0 0.0
  %1066 = vmatpush1.msra.mxu0 %v518
  %1067 = vmatprep.subr.mxu0 0.0
  %1068 = vmatpush1.msra.mxu0 %v519
  %1069 = vmatprep.mubr.f32.mxu0 %v374
  %1070 = vmatmul.mubr.f32.gmra.mrb[0].mxu0 %v373
  %v1071 = vpop.f32.mrb[0].mxu0
  %v1072 = vadd.f32 %v1002, %v1071
  %v1073 = vpop.f32.mrb[0].mxu0
  %1074 = vdwg.mxu0
  %1075 = vmatprep.subr.mxu0 0.0
  %1076 = vmatpush1.msra.mxu0 %v520
  %1077 = vmatprep.subr.mxu0 0.0
  %1078 = vmatpush1.msra.mxu0 %v521
  %1079 = vmatprep.subr.mxu0 0.0
  %1080 = vmatpush1.msra.mxu0 %v522
  %1081 = vmatprep.subr.mxu0 0.0
  %1082 = vmatpush1.msra.mxu0 %v523
  %1083 = vmatprep.subr.mxu0 0.0
  %1084 = vmatpush1.msra.mxu0 %v524
  %1085 = vmatprep.subr.mxu0 0.0
  %1086 = vmatpush1.msra.mxu0 %v525
  %1087 = vmatprep.subr.mxu0 0.0
  %1088 = vmatpush1.msra.mxu0 %v526
  %1089 = vmatprep.subr.mxu0 0.0
  %1090 = vmatpush1.msra.mxu0 %v527
  %1091 = vmatprep.subr.mxu0 0.0
  %1092 = vmatpush1.msra.mxu0 %v528
  %1093 = vmatprep.subr.mxu0 0.0
  %1094 = vmatpush1.msra.mxu0 %v529
  %1095 = vmatprep.subr.mxu0 0.0
  %1096 = vmatpush1.msra.mxu0 %v530
  %1097 = vmatprep.subr.mxu0 0.0
  %1098 = vmatpush1.msra.mxu0 %v531
  %1099 = vmatprep.subr.mxu0 0.0
  %1100 = vmatpush1.msra.mxu0 %v532
  %1101 = vmatprep.subr.mxu0 0.0
  %1102 = vmatpush1.msra.mxu0 %v533
  %1103 = vmatprep.subr.mxu0 0.0
  %1104 = vmatpush1.msra.mxu0 %v534
  %1105 = vmatprep.subr.mxu0 0.0
  %1106 = vmatpush1.msra.mxu0 %v535
  %1107 = vmatprep.subr.mxu0 0.0
  %1108 = vmatpush1.msra.mxu0 %v536
  %1109 = vmatprep.subr.mxu0 0.0
  %1110 = vmatpush1.msra.mxu0 %v537
  %1111 = vmatprep.subr.mxu0 0.0
  %1112 = vmatpush1.msra.mxu0 %v538
  %1113 = vmatprep.subr.mxu0 0.0
  %1114 = vmatpush1.msra.mxu0 %v539
  %1115 = vmatprep.subr.mxu0 0.0
  %1116 = vmatpush1.msra.mxu0 %v540
  %1117 = vmatprep.subr.mxu0 0.0
  %1118 = vmatpush1.msra.mxu0 %v541
  %1119 = vmatprep.subr.mxu0 0.0
  %1120 = vmatpush1.msra.mxu0 %v542
  %1121 = vmatprep.subr.mxu0 0.0
  %1122 = vmatpush1.msra.mxu0 %v543
  %1123 = vmatprep.subr.mxu0 0.0
  %1124 = vmatpush1.msra.mxu0 %v544
  %1125 = vmatprep.subr.mxu0 0.0
  %1126 = vmatpush1.msra.mxu0 %v545
  %1127 = vmatprep.subr.mxu0 0.0
  %1128 = vmatpush1.msra.mxu0 %v546
  %1129 = vmatprep.subr.mxu0 0.0
  %1130 = vmatpush1.msra.mxu0 %v547
  %1131 = vmatprep.subr.mxu0 0.0
  %1132 = vmatpush1.msra.mxu0 %v548
  %1133 = vmatprep.subr.mxu0 0.0
  %1134 = vmatpush1.msra.mxu0 %v549
  %1135 = vmatprep.subr.mxu0 0.0
  %1136 = vmatpush1.msra.mxu0 %v550
  %1137 = vmatprep.subr.mxu0 0.0
  %1138 = vmatpush1.msra.mxu0 %v551
  %1139 = vmatprep.mubr.f32.mxu0 %v376
  %1140 = vmatmul.mubr.f32.gmra.mrb[0].mxu0 %v375
  %v1141 = vpop.f32.mrb[0].mxu0
  %v1142 = vadd.f32 %v1072, %v1141
  %v1143 = vpop.f32.mrb[0].mxu0
  %1144 = vdwg.mxu0
  %1145 = vmatprep.subr.mxu0 0.0
  %1146 = vmatpush1.msra.mxu0 %v552
  %1147 = vmatprep.subr.mxu0 0.0
  %1148 = vmatpush1.msra.mxu0 %v553
  %1149 = vmatprep.subr.mxu0 0.0
  %1150 = vmatpush1.msra.mxu0 %v554
  %1151 = vmatprep.subr.mxu0 0.0
  %1152 = vmatpush1.msra.mxu0 %v555
  %1153 = vmatprep.subr.mxu0 0.0
  %1154 = vmatpush1.msra.mxu0 %v556
  %1155 = vmatprep.subr.mxu0 0.0
  %1156 = vmatpush1.msra.mxu0 %v557
  %1157 = vmatprep.subr.mxu0 0.0
  %1158 = vmatpush1.msra.mxu0 %v558
  %1159 = vmatprep.subr.mxu0 0.0
  %1160 = vmatpush1.msra.mxu0 %v559
  %1161 = vmatprep.subr.mxu0 0.0
  %1162 = vmatpush1.msra.mxu0 %v560
  %1163 = vmatprep.subr.mxu0 0.0
  %1164 = vmatpush1.msra.mxu0 %v561
  %1165 = vmatprep.subr.mxu0 0.0
  %1166 = vmatpush1.msra.mxu0 %v562
  %1167 = vmatprep.subr.mxu0 0.0
  %1168 = vmatpush1.msra.mxu0 %v563
  %1169 = vmatprep.subr.mxu0 0.0
  %1170 = vmatpush1.msra.mxu0 %v564
  %1171 = vmatprep.subr.mxu0 0.0
  %1172 = vmatpush1.msra.mxu0 %v565
  %1173 = vmatprep.subr.mxu0 0.0
  %1174 = vmatpush1.msra.mxu0 %v566
  %1175 = vmatprep.subr.mxu0 0.0
  %1176 = vmatpush1.msra.mxu0 %v567
  %1177 = vmatprep.subr.mxu0 0.0
  %1178 = vmatpush1.msra.mxu0 %v568
  %1179 = vmatprep.subr.mxu0 0.0
  %1180 = vmatpush1.msra.mxu0 %v569
  %1181 = vmatprep.subr.mxu0 0.0
  %1182 = vmatpush1.msra.mxu0 %v570
  %1183 = vmatprep.subr.mxu0 0.0
  %1184 = vmatpush1.msra.mxu0 %v571
  %1185 = vmatprep.subr.mxu0 0.0
  %1186 = vmatpush1.msra.mxu0 %v572
  %1187 = vmatprep.subr.mxu0 0.0
  %1188 = vmatpush1.msra.mxu0 %v573
  %1189 = vmatprep.subr.mxu0 0.0
  %1190 = vmatpush1.msra.mxu0 %v574
  %1191 = vmatprep.subr.mxu0 0.0
  %1192 = vmatpush1.msra.mxu0 %v575
  %1193 = vmatprep.subr.mxu0 0.0
  %1194 = vmatpush1.msra.mxu0 %v576
  %1195 = vmatprep.subr.mxu0 0.0
  %1196 = vmatpush1.msra.mxu0 %v577
  %1197 = vmatprep.subr.mxu0 0.0
  %1198 = vmatpush1.msra.mxu0 %v578
  %1199 = vmatprep.subr.mxu0 0.0
  %1200 = vmatpush1.msra.mxu0 %v579
  %1201 = vmatprep.subr.mxu0 0.0
  %1202 = vmatpush1.msra.mxu0 %v580
  %1203 = vmatprep.subr.mxu0 0.0
  %1204 = vmatpush1.msra.mxu0 %v581
  %1205 = vmatprep.subr.mxu0 0.0
  %1206 = vmatpush1.msra.mxu0 %v582
  %1207 = vmatprep.subr.mxu0 0.0
  %1208 = vmatpush1.msra.mxu0 %v583
  %1209 = vmatprep.mubr.f32.mxu0 %v378
  %1210 = vmatmul.mubr.f32.gmra.mrb[0].mxu0 %v377
  %v1211 = vpop.f32.mrb[0].mxu0
  %v1212 = vadd.f32 %v1142, %v1211
  %v1213 = vpop.f32.mrb[0].mxu0
  %1214 = vdwg.mxu0
  %1215 = vmatprep.subr.mxu0 0.0
  %1216 = vmatpush1.msra.mxu0 %v584
  %1217 = vmatprep.subr.mxu0 0.0
  %1218 = vmatpush1.msra.mxu0 %v585
  %1219 = vmatprep.subr.mxu0 0.0
  %1220 = vmatpush1.msra.mxu0 %v586
  %1221 = vmatprep.subr.mxu0 0.0
  %1222 = vmatpush1.msra.mxu0 %v587
  %1223 = vmatprep.subr.mxu0 0.0
  %1224 = vmatpush1.msra.mxu0 %v588
  %1225 = vmatprep.subr.mxu0 0.0
  %1226 = vmatpush1.msra.mxu0 %v589
  %1227 = vmatprep.subr.mxu0 0.0
  %1228 = vmatpush1.msra.mxu0 %v590
  %1229 = vmatprep.subr.mxu0 0.0
  %1230 = vmatpush1.msra.mxu0 %v591
  %1231 = vmatprep.subr.mxu0 0.0
  %1232 = vmatpush1.msra.mxu0 %v592
  %1233 = vmatprep.subr.mxu0 0.0
  %1234 = vmatpush1.msra.mxu0 %v593
  %1235 = vmatprep.subr.mxu0 0.0
  %1236 = vmatpush1.msra.mxu0 %v594
  %1237 = vmatprep.subr.mxu0 0.0
  %1238 = vmatpush1.msra.mxu0 %v595
  %1239 = vmatprep.subr.mxu0 0.0
  %1240 = vmatpush1.msra.mxu0 %v596
  %1241 = vmatprep.subr.mxu0 0.0
  %1242 = vmatpush1.msra.mxu0 %v597
  %1243 = vmatprep.subr.mxu0 0.0
  %1244 = vmatpush1.msra.mxu0 %v598
  %1245 = vmatprep.subr.mxu0 0.0
  %1246 = vmatpush1.msra.mxu0 %v599
  %1247 = vmatprep.subr.mxu0 0.0
  %1248 = vmatpush1.msra.mxu0 %v600
  %1249 = vmatprep.subr.mxu0 0.0
  %1250 = vmatpush1.msra.mxu0 %v601
  %1251 = vmatprep.subr.mxu0 0.0
  %1252 = vmatpush1.msra.mxu0 %v602
  %1253 = vmatprep.subr.mxu0 0.0
  %1254 = vmatpush1.msra.mxu0 %v603
  %1255 = vmatprep.subr.mxu0 0.0
  %1256 = vmatpush1.msra.mxu0 %v604
  %1257 = vmatprep.subr.mxu0 0.0
  %1258 = vmatpush1.msra.mxu0 %v605
  %1259 = vmatprep.subr.mxu0 0.0
  %1260 = vmatpush1.msra.mxu0 %v606
  %1261 = vmatprep.subr.mxu0 0.0
  %1262 = vmatpush1.msra.mxu0 %v607
  %1263 = vmatprep.subr.mxu0 0.0
  %1264 = vmatpush1.msra.mxu0 %v608
  %1265 = vmatprep.subr.mxu0 0.0
  %1266 = vmatpush1.msra.mxu0 %v609
  %1267 = vmatprep.subr.mxu0 0.0
  %1268 = vmatpush1.msra.mxu0 %v610
  %1269 = vmatprep.subr.mxu0 0.0
  %1270 = vmatpush1.msra.mxu0 %v611
  %1271 = vmatprep.subr.mxu0 0.0
  %1272 = vmatpush1.msra.mxu0 %v612
  %1273 = vmatprep.subr.mxu0 0.0
  %1274 = vmatpush1.msra.mxu0 %v613
  %1275 = vmatprep.subr.mxu0 0.0
  %1276 = vmatpush1.msra.mxu0 %v614
  %1277 = vmatprep.subr.mxu0 0.0
  %1278 = vmatpush1.msra.mxu0 %v615
  %1279 = vmatprep.mubr.f32.mxu0 %v380
  %1280 = vmatmul.mubr.f32.gmra.mrb[0].mxu0 %v379
  %v1281 = vpop.f32.mrb[0].mxu0
  %v1282 = vadd.f32 %v1212, %v1281
  %v1283 = vpop.f32.mrb[0].mxu0
  %1284 = vdwg.mxu0
  %1285 = vmatprep.subr.mxu0 0.0
  %1286 = vmatpush1.msra.mxu0 %v616
  %1287 = vmatprep.subr.mxu0 0.0
  %1288 = vmatpush1.msra.mxu0 %v617
  %1289 = vmatprep.subr.mxu0 0.0
  %1290 = vmatpush1.msra.mxu0 %v618
  %1291 = vmatprep.subr.mxu0 0.0
  %1292 = vmatpush1.msra.mxu0 %v619
  %1293 = vmatprep.subr.mxu0 0.0
  %1294 = vmatpush1.msra.mxu0 %v620
  %1295 = vmatprep.subr.mxu0 0.0
  %1296 = vmatpush1.msra.mxu0 %v621
  %1297 = vmatprep.subr.mxu0 0.0
  %1298 = vmatpush1.msra.mxu0 %v622
  %1299 = vmatprep.subr.mxu0 0.0
  %1300 = vmatpush1.msra.mxu0 %v623
  %1301 = vmatprep.subr.mxu0 0.0
  %1302 = vmatpush1.msra.mxu0 %v624
  %1303 = vmatprep.subr.mxu0 0.0
  %1304 = vmatpush1.msra.mxu0 %v625
  %1305 = vmatprep.subr.mxu0 0.0
  %1306 = vmatpush1.msra.mxu0 %v626
  %1307 = vmatprep.subr.mxu0 0.0
  %1308 = vmatpush1.msra.mxu0 %v627
  %1309 = vmatprep.subr.mxu0 0.0
  %1310 = vmatpush1.msra.mxu0 %v628
  %1311 = vmatprep.subr.mxu0 0.0
  %1312 = vmatpush1.msra.mxu0 %v629
  %1313 = vmatprep.subr.mxu0 0.0
  %1314 = vmatpush1.msra.mxu0 %v630
  %1315 = vmatprep.subr.mxu0 0.0
  %1316 = vmatpush1.msra.mxu0 %v631
  %1317 = vmatprep.subr.mxu0 0.0
  %1318 = vmatpush1.msra.mxu0 %v632
  %1319 = vmatprep.subr.mxu0 0.0
  %1320 = vmatpush1.msra.mxu0 %v633
  %1321 = vmatprep.subr.mxu0 0.0
  %1322 = vmatpush1.msra.mxu0 %v634
  %1323 = vmatprep.subr.mxu0 0.0
  %1324 = vmatpush1.msra.mxu0 %v635
  %1325 = vmatprep.subr.mxu0 0.0
  %1326 = vmatpush1.msra.mxu0 %v636
  %1327 = vmatprep.subr.mxu0 0.0
  %1328 = vmatpush1.msra.mxu0 %v637
  %1329 = vmatprep.subr.mxu0 0.0
  %1330 = vmatpush1.msra.mxu0 %v638
  %1331 = vmatprep.subr.mxu0 0.0
  %1332 = vmatpush1.msra.mxu0 %v639
  %1333 = vmatprep.subr.mxu0 0.0
  %1334 = vmatpush1.msra.mxu0 %v640
  %1335 = vmatprep.subr.mxu0 0.0
  %1336 = vmatpush1.msra.mxu0 %v641
  %1337 = vmatprep.subr.mxu0 0.0
  %1338 = vmatpush1.msra.mxu0 %v642
  %1339 = vmatprep.subr.mxu0 0.0
  %1340 = vmatpush1.msra.mxu0 %v643
  %1341 = vmatprep.subr.mxu0 0.0
  %1342 = vmatpush1.msra.mxu0 %v644
  %1343 = vmatprep.subr.mxu0 0.0
  %1344 = vmatpush1.msra.mxu0 %v645
  %1345 = vmatprep.subr.mxu0 0.0
  %1346 = vmatpush1.msra.mxu0 %v646
  %1347 = vmatprep.subr.mxu0 0.0
  %1348 = vmatpush1.msra.mxu0 %v647
  %1349 = vmatprep.mubr.f32.mxu0 %v382
  %1350 = vmatmul.mubr.f32.gmra.mrb[0].mxu0 %v381
  %v1351 = vpop.f32.mrb[0].mxu0
  %v1352 = vadd.f32 %v1282, %v1351
  %v1353 = vpop.f32.mrb[0].mxu0
  %1354 = vdwg.mxu0
  %1355 = vmatprep.subr.mxu0 0.0
  %1356 = vmatpush1.msra.mxu0 %v648
  %1357 = vmatprep.subr.mxu0 0.0
  %1358 = vmatpush1.msra.mxu0 %v649
  %1359 = vmatprep.subr.mxu0 0.0
  %1360 = vmatpush1.msra.mxu0 %v650
  %1361 = vmatprep.subr.mxu0 0.0
  %1362 = vmatpush1.msra.mxu0 %v651
  %1363 = vmatprep.subr.mxu0 0.0
  %1364 = vmatpush1.msra.mxu0 %v652
  %1365 = vmatprep.subr.mxu0 0.0
  %1366 = vmatpush1.msra.mxu0 %v653
  %1367 = vmatprep.subr.mxu0 0.0
  %1368 = vmatpush1.msra.mxu0 %v654
  %1369 = vmatprep.subr.mxu0 0.0
  %1370 = vmatpush1.msra.mxu0 %v655
  %1371 = vmatprep.subr.mxu0 0.0
  %1372 = vmatpush1.msra.mxu0 %v656
  %1373 = vmatprep.subr.mxu0 0.0
  %1374 = vmatpush1.msra.mxu0 %v657
  %1375 = vmatprep.subr.mxu0 0.0
  %1376 = vmatpush1.msra.mxu0 %v658
  %1377 = vmatprep.subr.mxu0 0.0
  %1378 = vmatpush1.msra.mxu0 %v659
  %1379 = vmatprep.subr.mxu0 0.0
  %1380 = vmatpush1.msra.mxu0 %v660
  %1381 = vmatprep.subr.mxu0 0.0
  %1382 = vmatpush1.msra.mxu0 %v661
  %1383 = vmatprep.subr.mxu0 0.0
  %1384 = vmatpush1.msra.mxu0 %v662
  %1385 = vmatprep.subr.mxu0 0.0
  %1386 = vmatpush1.msra.mxu0 %v663
  %1387 = vmatprep.subr.mxu0 0.0
  %1388 = vmatpush1.msra.mxu0 %v664
  %1389 = vmatprep.subr.mxu0 0.0
  %1390 = vmatpush1.msra.mxu0 %v665
  %1391 = vmatprep.subr.mxu0 0.0
  %1392 = vmatpush1.msra.mxu0 %v666
  %1393 = vmatprep.subr.mxu0 0.0
  %1394 = vmatpush1.msra.mxu0 %v667
  %1395 = vmatprep.subr.mxu0 0.0
  %1396 = vmatpush1.msra.mxu0 %v668
  %1397 = vmatprep.subr.mxu0 0.0
  %1398 = vmatpush1.msra.mxu0 %v669
  %1399 = vmatprep.subr.mxu0 0.0
  %1400 = vmatpush1.msra.mxu0 %v670
  %1401 = vmatprep.subr.mxu0 0.0
  %1402 = vmatpush1.msra.mxu0 %v671
  %1403 = vmatprep.subr.mxu0 0.0
  %1404 = vmatpush1.msra.mxu0 %v672
  %1405 = vmatprep.subr.mxu0 0.0
  %1406 = vmatpush1.msra.mxu0 %v673
  %1407 = vmatprep.subr.mxu0 0.0
  %1408 = vmatpush1.msra.mxu0 %v674
  %1409 = vmatprep.subr.mxu0 0.0
  %1410 = vmatpush1.msra.mxu0 %v675
  %1411 = vmatprep.subr.mxu0 0.0
  %1412 = vmatpush1.msra.mxu0 %v676
  %1413 = vmatprep.subr.mxu0 0.0
  %1414 = vmatpush1.msra.mxu0 %v677
  %1415 = vmatprep.subr.mxu0 0.0
  %1416 = vmatpush1.msra.mxu0 %v678
  %1417 = vmatprep.subr.mxu0 0.0
  %1418 = vmatpush1.msra.mxu0 %v679
  %1419 = vmatprep.mubr.f32.mxu0 %v384
  %1420 = vmatmul.mubr.f32.gmra.mrb[0].mxu0 %v383
  %v1421 = vpop.f32.mrb[0].mxu0
  %v1422 = vadd.f32 %v1352, %v1421
  %v1423 = vpop.f32.mrb[0].mxu0
  %1424 = vdwg.mxu0
  %1425 = vmatprep.subr.mxu0 0.0
  %1426 = vmatpush1.msra.mxu0 %v680
  %1427 = vmatprep.subr.mxu0 0.0
  %1428 = vmatpush1.msra.mxu0 %v681
  %1429 = vmatprep.subr.mxu0 0.0
  %1430 = vmatpush1.msra.mxu0 %v682
  %1431 = vmatprep.subr.mxu0 0.0
  %1432 = vmatpush1.msra.mxu0 %v683
  %1433 = vmatprep.subr.mxu0 0.0
  %1434 = vmatpush1.msra.mxu0 %v684
  %1435 = vmatprep.subr.mxu0 0.0
  %1436 = vmatpush1.msra.mxu0 %v685
  %1437 = vmatprep.subr.mxu0 0.0
  %1438 = vmatpush1.msra.mxu0 %v686
  %1439 = vmatprep.subr.mxu0 0.0
  %1440 = vmatpush1.msra.mxu0 %v687
  %1441 = vmatprep.subr.mxu0 0.0
  %1442 = vmatpush1.msra.mxu0 %v688
  %1443 = vmatprep.subr.mxu0 0.0
  %1444 = vmatpush1.msra.mxu0 %v689
  %1445 = vmatprep.subr.mxu0 0.0
  %1446 = vmatpush1.msra.mxu0 %v690
  %1447 = vmatprep.subr.mxu0 0.0
  %1448 = vmatpush1.msra.mxu0 %v691
  %1449 = vmatprep.subr.mxu0 0.0
  %1450 = vmatpush1.msra.mxu0 %v692
  %1451 = vmatprep.subr.mxu0 0.0
  %1452 = vmatpush1.msra.mxu0 %v693
  %1453 = vmatprep.subr.mxu0 0.0
  %1454 = vmatpush1.msra.mxu0 %v694
  %1455 = vmatprep.subr.mxu0 0.0
  %1456 = vmatpush1.msra.mxu0 %v695
  %1457 = vmatprep.subr.mxu0 0.0
  %1458 = vmatpush1.msra.mxu0 %v696
  %1459 = vmatprep.subr.mxu0 0.0
  %1460 = vmatpush1.msra.mxu0 %v697
  %1461 = vmatprep.subr.mxu0 0.0
  %1462 = vmatpush1.msra.mxu0 %v698
  %1463 = vmatprep.subr.mxu0 0.0
  %1464 = vmatpush1.msra.mxu0 %v699
  %1465 = vmatprep.subr.mxu0 0.0
  %1466 = vmatpush1.msra.mxu0 %v700
  %1467 = vmatprep.subr.mxu0 0.0
  %1468 = vmatpush1.msra.mxu0 %v701
  %1469 = vmatprep.subr.mxu0 0.0
  %1470 = vmatpush1.msra.mxu0 %v702
  %1471 = vmatprep.subr.mxu0 0.0
  %1472 = vmatpush1.msra.mxu0 %v703
  %1473 = vmatprep.subr.mxu0 0.0
  %1474 = vmatpush1.msra.mxu0 %v704
  %1475 = vmatprep.subr.mxu0 0.0
  %1476 = vmatpush1.msra.mxu0 %v705
  %1477 = vmatprep.subr.mxu0 0.0
  %1478 = vmatpush1.msra.mxu0 %v706
  %1479 = vmatprep.subr.mxu0 0.0
  %1480 = vmatpush1.msra.mxu0 %v707
  %1481 = vmatprep.subr.mxu0 0.0
  %1482 = vmatpush1.msra.mxu0 %v708
  %1483 = vmatprep.subr.mxu0 0.0
  %1484 = vmatpush1.msra.mxu0 %v709
  %1485 = vmatprep.subr.mxu0 0.0
  %1486 = vmatpush1.msra.mxu0 %v710
  %1487 = vmatprep.subr.mxu0 0.0
  %1488 = vmatpush1.msra.mxu0 %v711
  %1489 = vmatprep.mubr.f32.mxu0 %v386
  %1490 = vmatmul.mubr.f32.gmra.mrb[0].mxu0 %v385
  %v1491 = vpop.f32.mrb[0].mxu0
  %v1492 = vadd.f32 %v1422, %v1491
  %v1493 = vpop.f32.mrb[0].mxu0
  %1494 = vdwg.mxu0
  %1495 = vmatprep.subr.mxu0 0.0
  %1496 = vmatpush1.msra.mxu0 %v712
  %1497 = vmatprep.subr.mxu0 0.0
  %1498 = vmatpush1.msra.mxu0 %v713
  %1499 = vmatprep.subr.mxu0 0.0
  %1500 = vmatpush1.msra.mxu0 %v714
  %1501 = vmatprep.subr.mxu0 0.0
  %1502 = vmatpush1.msra.mxu0 %v715
  %1503 = vmatprep.subr.mxu0 0.0
  %1504 = vmatpush1.msra.mxu0 %v716
  %1505 = vmatprep.subr.mxu0 0.0
  %1506 = vmatpush1.msra.mxu0 %v717
  %1507 = vmatprep.subr.mxu0 0.0
  %1508 = vmatpush1.msra.mxu0 %v718
  %1509 = vmatprep.subr.mxu0 0.0
  %1510 = vmatpush1.msra.mxu0 %v719
  %1511 = vmatprep.subr.mxu0 0.0
  %1512 = vmatpush1.msra.mxu0 %v720
  %1513 = vmatprep.subr.mxu0 0.0
  %1514 = vmatpush1.msra.mxu0 %v721
  %1515 = vmatprep.subr.mxu0 0.0
  %1516 = vmatpush1.msra.mxu0 %v722
  %1517 = vmatprep.subr.mxu0 0.0
  %1518 = vmatpush1.msra.mxu0 %v723
  %1519 = vmatprep.subr.mxu0 0.0
  %1520 = vmatpush1.msra.mxu0 %v724
  %1521 = vmatprep.subr.mxu0 0.0
  %1522 = vmatpush1.msra.mxu0 %v725
  %1523 = vmatprep.subr.mxu0 0.0
  %1524 = vmatpush1.msra.mxu0 %v726
  %1525 = vmatprep.subr.mxu0 0.0
  %1526 = vmatpush1.msra.mxu0 %v727
  %1527 = vmatprep.subr.mxu0 0.0
  %1528 = vmatpush1.msra.mxu0 %v728
  %1529 = vmatprep.subr.mxu0 0.0
  %1530 = vmatpush1.msra.mxu0 %v729
  %1531 = vmatprep.subr.mxu0 0.0
  %1532 = vmatpush1.msra.mxu0 %v730
  %1533 = vmatprep.subr.mxu0 0.0
  %1534 = vmatpush1.msra.mxu0 %v731
  %1535 = vmatprep.subr.mxu0 0.0
  %1536 = vmatpush1.msra.mxu0 %v732
  %1537 = vmatprep.subr.mxu0 0.0
  %1538 = vmatpush1.msra.mxu0 %v733
  %1539 = vmatprep.subr.mxu0 0.0
  %1540 = vmatpush1.msra.mxu0 %v734
  %1541 = vmatprep.subr.mxu0 0.0
  %1542 = vmatpush1.msra.mxu0 %v735
  %1543 = vmatprep.subr.mxu0 0.0
  %1544 = vmatpush1.msra.mxu0 %v736
  %1545 = vmatprep.subr.mxu0 0.0
  %1546 = vmatpush1.msra.mxu0 %v737
  %1547 = vmatprep.subr.mxu0 0.0
  %1548 = vmatpush1.msra.mxu0 %v738
  %1549 = vmatprep.subr.mxu0 0.0
  %1550 = vmatpush1.msra.mxu0 %v739
  %1551 = vmatprep.subr.mxu0 0.0
  %1552 = vmatpush1.msra.mxu0 %v740
  %1553 = vmatprep.subr.mxu0 0.0
  %1554 = vmatpush1.msra.mxu0 %v741
  %1555 = vmatprep.subr.mxu0 0.0
  %1556 = vmatpush1.msra.mxu0 %v742
  %1557 = vmatprep.subr.mxu0 0.0
  %1558 = vmatpush1.msra.mxu0 %v743
  %1559 = vmatprep.mubr.f32.mxu0 %v388
  %1560 = vmatmul.mubr.f32.gmra.mrb[0].mxu0 %v387
  %v1561 = vpop.f32.mrb[0].mxu0
  %v1562 = vadd.f32 %v1492, %v1561
  %v1563 = vpop.f32.mrb[0].mxu0
  %1564 = vdwg.mxu0
  %1565 = vmatprep.subr.mxu0 0.0
  %1566 = vmatpush1.msra.mxu0 %v744
  %1567 = vmatprep.subr.mxu0 0.0
  %1568 = vmatpush1.msra.mxu0 %v745
  %1569 = vmatprep.subr.mxu0 0.0
  %1570 = vmatpush1.msra.mxu0 %v746
  %1571 = vmatprep.subr.mxu0 0.0
  %1572 = vmatpush1.msra.mxu0 %v747
  %1573 = vmatprep.subr.mxu0 0.0
  %1574 = vmatpush1.msra.mxu0 %v748
  %1575 = vmatprep.subr.mxu0 0.0
  %1576 = vmatpush1.msra.mxu0 %v749
  %1577 = vmatprep.subr.mxu0 0.0
  %1578 = vmatpush1.msra.mxu0 %v750
  %1579 = vmatprep.subr.mxu0 0.0
  %1580 = vmatpush1.msra.mxu0 %v751
  %1581 = vmatprep.subr.mxu0 0.0
  %1582 = vmatpush1.msra.mxu0 %v752
  %1583 = vmatprep.subr.mxu0 0.0
  %1584 = vmatpush1.msra.mxu0 %v753
  %1585 = vmatprep.subr.mxu0 0.0
  %1586 = vmatpush1.msra.mxu0 %v754
  %1587 = vmatprep.subr.mxu0 0.0
  %1588 = vmatpush1.msra.mxu0 %v755
  %1589 = vmatprep.subr.mxu0 0.0
  %1590 = vmatpush1.msra.mxu0 %v756
  %1591 = vmatprep.subr.mxu0 0.0
  %1592 = vmatpush1.msra.mxu0 %v757
  %1593 = vmatprep.subr.mxu0 0.0
  %1594 = vmatpush1.msra.mxu0 %v758
  %1595 = vmatprep.subr.mxu0 0.0
  %1596 = vmatpush1.msra.mxu0 %v759
  %1597 = vmatprep.subr.mxu0 0.0
  %1598 = vmatpush1.msra.mxu0 %v760
  %1599 = vmatprep.subr.mxu0 0.0
  %1600 = vmatpush1.msra.mxu0 %v761
  %1601 = vmatprep.subr.mxu0 0.0
  %1602 = vmatpush1.msra.mxu0 %v762
  %1603 = vmatprep.subr.mxu0 0.0
  %1604 = vmatpush1.msra.mxu0 %v763
  %1605 = vmatprep.subr.mxu0 0.0
  %1606 = vmatpush1.msra.mxu0 %v764
  %1607 = vmatprep.subr.mxu0 0.0
  %1608 = vmatpush1.msra.mxu0 %v765
  %1609 = vmatprep.subr.mxu0 0.0
  %1610 = vmatpush1.msra.mxu0 %v766
  %1611 = vmatprep.subr.mxu0 0.0
  %1612 = vmatpush1.msra.mxu0 %v767
  %1613 = vmatprep.subr.mxu0 0.0
  %1614 = vmatpush1.msra.mxu0 %v768
  %1615 = vmatprep.subr.mxu0 0.0
  %1616 = vmatpush1.msra.mxu0 %v769
  %1617 = vmatprep.subr.mxu0 0.0
  %1618 = vmatpush1.msra.mxu0 %v770
  %1619 = vmatprep.subr.mxu0 0.0
  %1620 = vmatpush1.msra.mxu0 %v771
  %1621 = vmatprep.subr.mxu0 0.0
  %1622 = vmatpush1.msra.mxu0 %v772
  %1623 = vmatprep.subr.mxu0 0.0
  %1624 = vmatpush1.msra.mxu0 %v773
  %1625 = vmatprep.subr.mxu0 0.0
  %1626 = vmatpush1.msra.mxu0 %v774
  %1627 = vmatprep.subr.mxu0 0.0
  %1628 = vmatpush1.msra.mxu0 %v775
  %1629 = vmatprep.mubr.f32.mxu0 %v390
  %1630 = vmatmul.mubr.f32.gmra.mrb[0].mxu0 %v389
  %v1631 = vpop.f32.mrb[0].mxu0
  %v1632 = vadd.f32 %v1562, %v1631
  %v1633 = vpop.f32.mrb[0].mxu0
  %1634 = vdwg.mxu0
  %1635 = vmatprep.subr.mxu0 0.0
  %1636 = vmatpush1.msra.mxu0 %v776
  %1637 = vmatprep.subr.mxu0 0.0
  %1638 = vmatpush1.msra.mxu0 %v777
  %1639 = vmatprep.subr.mxu0 0.0
  %1640 = vmatpush1.msra.mxu0 %v778
  %1641 = vmatprep.subr.mxu0 0.0
  %1642 = vmatpush1.msra.mxu0 %v779
  %1643 = vmatprep.subr.mxu0 0.0
  %1644 = vmatpush1.msra.mxu0 %v780
  %1645 = vmatprep.subr.mxu0 0.0
  %1646 = vmatpush1.msra.mxu0 %v781
  %1647 = vmatprep.subr.mxu0 0.0
  %1648 = vmatpush1.msra.mxu0 %v782
  %1649 = vmatprep.subr.mxu0 0.0
  %1650 = vmatpush1.msra.mxu0 %v783
  %1651 = vmatprep.subr.mxu0 0.0
  %1652 = vmatpush1.msra.mxu0 0.0
  %1653 = vmatprep.subr.mxu0 0.0
  %1654 = vmatpush1.msra.mxu0 0.0
  %1655 = vmatprep.subr.mxu0 0.0
  %1656 = vmatpush1.msra.mxu0 0.0
  %1657 = vmatprep.subr.mxu0 0.0
  %1658 = vmatpush1.msra.mxu0 0.0
  %1659 = vmatprep.subr.mxu0 0.0
  %1660 = vmatpush1.msra.mxu0 0.0
  %1661 = vmatprep.subr.mxu0 0.0
  %1662 = vmatpush1.msra.mxu0 0.0
  %1663 = vmatprep.subr.mxu0 0.0
  %1664 = vmatpush1.msra.mxu0 0.0
  %1665 = vmatprep.subr.mxu0 0.0
  %1666 = vmatpush1.msra.mxu0 0.0
  %1667 = vmatprep.subr.mxu0 0.0
  %1668 = vmatpush1.msra.mxu0 0.0
  %1669 = vmatprep.subr.mxu0 0.0
  %1670 = vmatpush1.msra.mxu0 0.0
  %1671 = vmatprep.subr.mxu0 0.0
  %1672 = vmatpush1.msra.mxu0 0.0
  %1673 = vmatprep.subr.mxu0 0.0
  %1674 = vmatpush1.msra.mxu0 0.0
  %1675 = vmatprep.subr.mxu0 0.0
  %1676 = vmatpush1.msra.mxu0 0.0
  %1677 = vmatprep.subr.mxu0 0.0
  %1678 = vmatpush1.msra.mxu0 0.0
  %1679 = vmatprep.subr.mxu0 0.0
  %1680 = vmatpush1.msra.mxu0 0.0
  %1681 = vmatprep.subr.mxu0 0.0
  %1682 = vmatpush1.msra.mxu0 0.0
  %1683 = vmatprep.subr.mxu0 0.0
  %1684 = vmatpush1.msra.mxu0 0.0
  %1685 = vmatprep.subr.mxu0 0.0
  %1686 = vmatpush1.msra.mxu0 0.0
  %1687 = vmatprep.subr.mxu0 0.0
  %1688 = vmatpush1.msra.mxu0 0.0
  %1689 = vmatprep.subr.mxu0 0.0
  %1690 = vmatpush1.msra.mxu0 0.0
  %1691 = vmatprep.subr.mxu0 0.0
  %1692 = vmatpush1.msra.mxu0 0.0
  %1693 = vmatprep.subr.mxu0 0.0
  %1694 = vmatpush1.msra.mxu0 0.0
  %1695 = vmatprep.subr.mxu0 0.0
  %1696 = vmatpush1.msra.mxu0 0.0
  %1697 = vmatprep.subr.mxu0 0.0
  %1698 = vmatpush1.msra.mxu0 0.0
  %1699 = vmatprep.mubr.f32.mxu0 0.0
  %1700 = vmatmul.mubr.f32.gmra.mrb[0].mxu0 %v793
  %v1701 = vpop.f32.mrb[0].mxu0
  %v1702 = vadd.f32 %v1632, %v1701
  %v1703 = vpop.f32.mrb[0].mxu0
  %1704 = vdwg.mxu0
  %v1705 = vld [vmem:[%s5] sm:$0xff]
  %v1706 = vld [vmem:[%s5 + $0x8] sm:$0xff]
  %v1707 = vld [vmem:[%s5 + $0x10] sm:$0xff]
  %v1708 = vld [vmem:[%s5 + $0x18] sm:$0xff]
  %v1709 = vld [vmem:[%s5 + $0x20] sm:$0xff]
  %v1710 = vld [vmem:[%s5 + $0x28] sm:$0xff]
  %v1711 = vld [vmem:[%s5 + $0x30] sm:$0xff]
  %v1712 = vld [vmem:[%s5 + $0x38] sm:$0xff]
  %v1713 = vld [vmem:[%s5 + $0x40] sm:$0xff]
  %v1714 = vld [vmem:[%s5 + $0x48] sm:$0xff]
  %v1715 = vld [vmem:[%s5 + $0x50] sm:$0xff]
  %v1716 = vld [vmem:[%s5 + $0x58] sm:$0xff]
  %v1717 = vld [vmem:[%s5 + $0x60] sm:$0xff]
  %v1718 = vld [vmem:[%s5 + $0x68] sm:$0xff]
  %v1719 = vld [vmem:[%s5 + $0x70] sm:$0xff]
  %v1720 = vld [vmem:[%s5 + $0x78] sm:$0xff]
  %v1721 = vld [vmem:[%s5 + $0x80] sm:$0xff]
  %v1722 = vld [vmem:[%s5 + $0x88] sm:$0xff]
  %v1723 = vld [vmem:[%s5 + $0x90] sm:$0xff]
  %v1724 = vld [vmem:[%s5 + $0x98] sm:$0xff]
  %v1725 = vld [vmem:[%s5 + $0xa0] sm:$0xff]
  %v1726 = vld [vmem:[%s5 + $0xa8] sm:$0xff]
  %v1727 = vld [vmem:[%s5 + $0xb0] sm:$0xff]
  %v1728 = vld [vmem:[%s5 + $0xb8] sm:$0xff]
  %v1729 = vld [vmem:[%s5 + $0xc0] sm:$0xff]
  %v1730 = vld [vmem:[%s5 + $0xc8] sm:$0xff]
  %v1731 = vld [vmem:[%s5 + $0xd0] sm:$0xff]
  %v1732 = vld [vmem:[%s5 + $0xd8] sm:$0xff]
  %v1733 = vld [vmem:[%s5 + $0xe0] sm:$0xff]
  %v1734 = vld [vmem:[%s5 + $0xe8] sm:$0xff]
  %v1735 = vld [vmem:[%s5 + $0xf0] sm:$0xff]
  %v1736 = vld [vmem:[%s5 + $0xf8] sm:$0xff]
  %v1737 = vld [vmem:[%s6] sm:$0xf]
  %v1739 = vlaneseq
  %v1740 = vshrl.u32 %v1739, 7
  %v1741 = vsub.s32 0, %v1740
  %v1742 = vrot.slane %v1737, %v1741
  %v1743 = vlaneseq
  %v1744 = vshrl.u32 %v1743, 7
  %v1745 = vsub.s32 1, %v1744
  %v1746 = vrot.slane %v1737, %v1745
  %v1747 = vlaneseq
  %v1748 = vshrl.u32 %v1747, 7
  %v1749 = vsub.s32 2, %v1748
  %v1750 = vrot.slane %v1737, %v1749
  %v1751 = vlaneseq
  %v1752 = vshrl.u32 %v1751, 7
  %v1753 = vsub.s32 3, %v1752
  %v1754 = vrot.slane %v1737, %v1753
  %v1760 = vsel %vm791, %v1702, 0
  %1762 = vmatprep.subr.mxu0 %v1706
  %1763 = vmatpush1.msra.mxu0 %v1705
  %1764 = vmatprep.subr.mxu0 %v1710
  %1765 = vmatpush1.msra.mxu0 %v1709
  %1766 = vmatprep.subr.mxu0 %v1714
  %1767 = vmatpush1.msra.mxu0 %v1713
  %1768 = vmatprep.subr.mxu0 %v1718
  %1769 = vmatpush1.msra.mxu0 %v1717
  %1770 = vmatprep.subr.mxu0 %v1722
  %1771 = vmatpush1.msra.mxu0 %v1721
  %1772 = vmatprep.subr.mxu0 %v1726
  %1773 = vmatpush1.msra.mxu0 %v1725
  %1774 = vmatprep.subr.mxu0 %v1730
  %1775 = vmatpush1.msra.mxu0 %v1729
  %1776 = vmatprep.subr.mxu0 %v1734
  %1777 = vmatpush1.msra.mxu0 %v1733
  %1778 = vmatprep.subr.mxu0 0.0
  %1779 = vmatpush1.msra.mxu0 0.0
  %1780 = vmatprep.subr.mxu0 0.0
  %1781 = vmatpush1.msra.mxu0 0.0
  %1782 = vmatprep.subr.mxu0 0.0
  %1783 = vmatpush1.msra.mxu0 0.0
  %1784 = vmatprep.subr.mxu0 0.0
  %1785 = vmatpush1.msra.mxu0 0.0
  %1786 = vmatprep.subr.mxu0 0.0
  %1787 = vmatpush1.msra.mxu0 0.0
  %1788 = vmatprep.subr.mxu0 0.0
  %1789 = vmatpush1.msra.mxu0 0.0
  %1790 = vmatprep.subr.mxu0 0.0
  %1791 = vmatpush1.msra.mxu0 0.0
  %1792 = vmatprep.subr.mxu0 0.0
  %1793 = vmatpush1.msra.mxu0 0.0
  %1794 = vmatprep.subr.mxu0 0.0
  %1795 = vmatpush1.msra.mxu0 0.0
  %1796 = vmatprep.subr.mxu0 0.0
  %1797 = vmatpush1.msra.mxu0 0.0
  %1798 = vmatprep.subr.mxu0 0.0
  %1799 = vmatpush1.msra.mxu0 0.0
  %1800 = vmatprep.subr.mxu0 0.0
  %1801 = vmatpush1.msra.mxu0 0.0
  %1802 = vmatprep.subr.mxu0 0.0
  %1803 = vmatpush1.msra.mxu0 0.0
  %1804 = vmatprep.subr.mxu0 0.0
  %1805 = vmatpush1.msra.mxu0 0.0
  %1806 = vmatprep.subr.mxu0 0.0
  %1807 = vmatpush1.msra.mxu0 0.0
  %1808 = vmatprep.subr.mxu0 0.0
  %1809 = vmatpush1.msra.mxu0 0.0
  %1810 = vmatprep.subr.mxu0 0.0
  %1811 = vmatpush1.msra.mxu0 0.0
  %1812 = vmatprep.subr.mxu0 0.0
  %1813 = vmatpush1.msra.mxu0 0.0
  %1814 = vmatprep.subr.mxu0 0.0
  %1815 = vmatpush1.msra.mxu0 0.0
  %1816 = vmatprep.subr.mxu0 0.0
  %1817 = vmatpush1.msra.mxu0 0.0
  %1818 = vmatprep.subr.mxu0 0.0
  %1819 = vmatpush1.msra.mxu0 0.0
  %1820 = vmatprep.subr.mxu0 0.0
  %1821 = vmatpush1.msra.mxu0 0.0
  %1822 = vmatprep.subr.mxu0 0.0
  %1823 = vmatpush1.msra.mxu0 0.0
  %1824 = vmatprep.subr.mxu0 0.0
  %1825 = vmatpush1.msra.mxu0 0.0
  %1826 = vmatprep.mubr.f32.mxu0 0.0
  %1827 = vmatmul.mubr.f32.gmra.mrb[0].mxu0 %v1760
  %v1828 = vpop.f32.mrb[0].mxu0
  %v1829 = vadd.f32 %v1742, %v1828
  %v1830 = vpop.f32.mrb[0].mxu0
  %v1831 = vadd.f32 %v1746, %v1830
  %1832 = vdwg.mxu0
  %1833 = vmatprep.subr.mxu0 %v1708
  %1834 = vmatpush1.msra.mxu0 %v1707
  %1835 = vmatprep.subr.mxu0 %v1712
  %1836 = vmatpush1.msra.mxu0 %v1711
  %1837 = vmatprep.subr.mxu0 %v1716
  %1838 = vmatpush1.msra.mxu0 %v1715
  %1839 = vmatprep.subr.mxu0 %v1720
  %1840 = vmatpush1.msra.mxu0 %v1719
  %1841 = vmatprep.subr.mxu0 %v1724
  %1842 = vmatpush1.msra.mxu0 %v1723
  %1843 = vmatprep.subr.mxu0 %v1728
  %1844 = vmatpush1.msra.mxu0 %v1727
  %1845 = vmatprep.subr.mxu0 %v1732
  %1846 = vmatpush1.msra.mxu0 %v1731
  %1847 = vmatprep.subr.mxu0 %v1736
  %1848 = vmatpush1.msra.mxu0 %v1735
  %1849 = vmatprep.subr.mxu0 0.0
  %1850 = vmatpush1.msra.mxu0 0.0
  %1851 = vmatprep.subr.mxu0 0.0
  %1852 = vmatpush1.msra.mxu0 0.0
  %1853 = vmatprep.subr.mxu0 0.0
  %1854 = vmatpush1.msra.mxu0 0.0
  %1855 = vmatprep.subr.mxu0 0.0
  %1856 = vmatpush1.msra.mxu0 0.0
  %1857 = vmatprep.subr.mxu0 0.0
  %1858 = vmatpush1.msra.mxu0 0.0
  %1859 = vmatprep.subr.mxu0 0.0
  %1860 = vmatpush1.msra.mxu0 0.0
  %1861 = vmatprep.subr.mxu0 0.0
  %1862 = vmatpush1.msra.mxu0 0.0
  %1863 = vmatprep.subr.mxu0 0.0
  %1864 = vmatpush1.msra.mxu0 0.0
  %1865 = vmatprep.subr.mxu0 0.0
  %1866 = vmatpush1.msra.mxu0 0.0
  %1867 = vmatprep.subr.mxu0 0.0
  %1868 = vmatpush1.msra.mxu0 0.0
  %1869 = vmatprep.subr.mxu0 0.0
  %1870 = vmatpush1.msra.mxu0 0.0
  %1871 = vmatprep.subr.mxu0 0.0
  %1872 = vmatpush1.msra.mxu0 0.0
  %1873 = vmatprep.subr.mxu0 0.0
  %1874 = vmatpush1.msra.mxu0 0.0
  %1875 = vmatprep.subr.mxu0 0.0
  %1876 = vmatpush1.msra.mxu0 0.0
  %1877 = vmatprep.subr.mxu0 0.0
  %1878 = vmatpush1.msra.mxu0 0.0
  %1879 = vmatprep.subr.mxu0 0.0
  %1880 = vmatpush1.msra.mxu0 0.0
  %1881 = vmatprep.subr.mxu0 0.0
  %1882 = vmatpush1.msra.mxu0 0.0
  %1883 = vmatprep.subr.mxu0 0.0
  %1884 = vmatpush1.msra.mxu0 0.0
  %1885 = vmatprep.subr.mxu0 0.0
  %1886 = vmatpush1.msra.mxu0 0.0
  %1887 = vmatprep.subr.mxu0 0.0
  %1888 = vmatpush1.msra.mxu0 0.0
  %1889 = vmatprep.subr.mxu0 0.0
  %1890 = vmatpush1.msra.mxu0 0.0
  %1891 = vmatprep.subr.mxu0 0.0
  %1892 = vmatpush1.msra.mxu0 0.0
  %1893 = vmatprep.subr.mxu0 0.0
  %1894 = vmatpush1.msra.mxu0 0.0
  %1895 = vmatprep.subr.mxu0 0.0
  %1896 = vmatpush1.msra.mxu0 0.0
  %1897 = vmatprep.mubr.f32.mxu0 0.0
  %1898 = vmatmul.mubr.f32.gmra.mrb[0].mxu0 %v1760
  %v1899 = vpop.f32.mrb[0].mxu0
  %v1900 = vadd.f32 %v1750, %v1899
  %v1901 = vpop.f32.mrb[0].mxu0
  %v1902 = vadd.f32 %v1754, %v1901
  %1903 = vdwg.mxu0
  %1904 = vst [vmem:[%s7] sm:$0xff] %v1829
  %1905 = vst [vmem:[%s7 + $0x8] sm:$0xff] %v1831
  %1906 = vst [vmem:[%s7 + $0x10] sm:$0xff] %v1900
  %1907 = vst [vmem:[%s7 + $0x18] sm:$0xff] %v1902
  // Predicated region
  $region30: #{forward.6} parent=0 // pred_check
    _
  $region31: #{forward.6} parent=0 // pred_check_branch
    %1909 = sbr.rel (0) target = $region33
  $region32: #{forward.6} parent=0 // pred_region
    _
  $region33: #{forward.6} parent=0 // pred_fallthru
    _
  // Predicated region
  $region34: #{forward.6} parent=0 // pred_check
    _
  $region35: #{forward.6} parent=0 // pred_check_branch
    %1911 = sbr.rel (0) target = $region37
  $region36: #{forward.6} parent=0 // pred_region
    _
  $region37: #{forward.6} parent=0 // pred_fallthru
    _

</llo_original>
